<compile_context>
chip_gen: v7x
topology: tpu7x:2x2x1
jax: 0.10.0
libtpu: 0.0.40
codegen_flags: <defaults>
</compile_context>

<pallas_src>
import functools

import numpy as np

import jax
import jax.numpy as jnp
from jax.experimental import pallas as pl
from jax.experimental.pallas import tpu as pltpu


_K = 5          # conv kernel size (all layers)
_STRIDE = 2     # conv stride (all layers)
_EPS = 1e-5     # BatchNorm eps


def _out_size(n_in, pad):
    return (n_in + 2 * pad - _K) // _STRIDE + 1


# --------------------- constant builders (trace-time, jit-cached) ----------- #

def _col_select_np(w_in, w_out, pad):
    """T[kj, wi, wo] = 1 iff wi == stride*wo + kj - pad  (W gather + zero pad)."""
    t = np.zeros((_K, w_in, w_out), np.float32)
    for kj in range(_K):
        for wo in range(w_out):
            wi = _STRIDE * wo + kj - pad
            if 0 <= wi < w_in:
                t[kj, wi, wo] = 1.0
    return t


def _u_cat(w, w_in, w_out, pad):
    """All-5-H-tap weight matrix U[(ki, wi, ci), (wo, co)]: a single MXU matmul
    rows_cat @ U evaluates the whole 5x5/stride-2/padded conv once rows_cat holds
    the 5 H-gathered input slabs concatenated along lanes."""
    t = jnp.asarray(_col_select_np(w_in, w_out, pad))          # (5, Win, Wout)
    u = jnp.einsum('abic,bwv->awivc', w, t)                    # (5, Win, Cin, Wout, Cout)
    _, _, cin, cout = w.shape
    return u.reshape(_K * w_in * cin, w_out * cout)


def _s_stack_np(n, h_in, h_out, pad):
    """Stacked 0/1 H-gather (all 5 taps in one matrix): block ki maps output row
    (b, ho) to input row 2*ho + ki - pad; rows in the zero padding stay all-zero."""
    m = n * h_out
    s = np.zeros((_K * m, n * h_in), np.float32)
    for ki in range(_K):
        for b in range(n):
            for ho in range(h_out):
                h = _STRIDE * ho + ki - pad
                if 0 <= h < h_in:
                    s[ki * m + b * h_out + ho, b * h_in + h] = 1.0
    return s


def _channel_fold_np(w_out, cout):
    """(Wout*Cout, Cout): sums the Wout column groups per channel."""
    return np.kron(np.ones((w_out, 1), np.float32), np.eye(cout, dtype=np.float32))


def _channel_bcast_np(w_out, cout):
    """(Cout, Wout*Cout): broadcasts per-channel values to all Wout groups."""
    return np.kron(np.ones((1, w_out), np.float32), np.eye(cout, dtype=np.float32))


def _pregather_layer1(x_nchw, pad, cin_p):
    """Layer-1 H-gather done in the wrapper (plain XLA): returns the lane-dense
    rows_cat operand (N*Hout, 5*W*Cin_p) the kernel feeds straight to the MXU."""
    n, cin, h, w = x_nchw.shape
    h_out = _out_size(h, pad)
    x = jnp.transpose(x_nchw, (0, 2, 3, 1)).astype(jnp.float32)          # NHWC
    x = jnp.pad(x, ((0, 0), (0, 0), (0, 0), (0, cin_p - cin)))           # C: 3 -> 4
    xp = jnp.pad(x, ((0, 0), (pad, pad), (0, 0), (0, 0)))                # zero-pad H
    slabs = []
    for ki in range(_K):
        sl = xp[:, ki:ki + _STRIDE * h_out:_STRIDE, :, :]                # (N, Hout, W, Cin_p)
        slabs.append(sl.reshape(n * h_out, w * cin_p))
    return jnp.concatenate(slabs, axis=1)                                # (N*Hout, 5*W*Cin_p)


def _full_spec(shape):
    # Single block covering the full array (everything resides in VMEM).
    return pl.BlockSpec(shape, lambda i: (0,) * len(shape))


# --------------------------- model (params + fwd) --------------------------- #

def init_params(key, conv_dim=64):
    """Deterministic synthetic parameters (shapes match the PyTorch module)."""
    ks = jax.random.split(key, 10)

    def conv_w(k_, cin, cout, ksz=5):
        return 0.05 * jax.random.normal(k_, (ksz, ksz, cin, cout), jnp.float32)

    return {
        "w1": conv_w(ks[0], 3, conv_dim),
        "g1": 1.0 + 0.1 * jax.random.normal(ks[1], (conv_dim,), jnp.float32),
        "b1": 0.1 * jax.random.normal(ks[2], (conv_dim,), jnp.float32),
        "w2": conv_w(ks[3], conv_dim, conv_dim * 2),
        "g2": 1.0 + 0.1 * jax.random.normal(ks[4], (conv_dim * 2,), jnp.float32),
        "b2": 0.1 * jax.random.normal(ks[5], (conv_dim * 2,), jnp.float32),
        "w3": conv_w(ks[6], conv_dim * 2, conv_dim * 4),
        "g3": 1.0 + 0.1 * jax.random.normal(ks[7], (conv_dim * 4,), jnp.float32),
        "b3": 0.1 * jax.random.normal(ks[8], (conv_dim * 4,), jnp.float32),
        "w4": conv_w(ks[9], conv_dim * 4, 1),
    }


@jax.jit
def dc_discriminator_forward(params, x_nchw):
    n, cin, h, w = x_nchw.shape
    pads = (2, 2, 2, 1)                               # assignment's conv(): stride=2, k=5
    wts = [params["w1"], params["w2"], params["w3"], params["w4"]]
    couts = [int(wt.shape[3]) for wt in wts]

    hs, wss = [h], [w]
    for p in pads:
        hs.append(_out_size(hs[-1], p))
        wss.append(_out_size(wss[-1], p))

    cin_p = cin + ((-cin) % 4)                        # 3 -> 4: layer-1 lanes = W*4 = 128
    w1p = jnp.pad(wts[0], ((0, 0), (0, 0), (0, cin_p - cin), (0, 0)))

    bf16 = jnp.bfloat16
    rc1 = _pregather_layer1(x_nchw, pads[0], cin_p).astype(bf16)   # (N*H1, 5*W*Cin_p)

    u1 = _u_cat(w1p, wss[0], wss[1], pads[0]).astype(bf16)
    u2 = _u_cat(wts[1], wss[1], wss[2], pads[1]).astype(bf16)
    u3 = _u_cat(wts[2], wss[2], wss[3], pads[2]).astype(bf16)
    w4row = _u_cat(wts[3], wss[3], wss[4], pads[3]).reshape(1, -1).astype(jnp.float32)

    s2 = jnp.asarray(_s_stack_np(n, hs[1], hs[2], pads[1]), bf16)  # exact 0/1 in bf16
    s3 = jnp.asarray(_s_stack_np(n, hs[2], hs[3], pads[2]), bf16)

    p1 = jnp.asarray(_channel_fold_np(wss[1], couts[0]))
    q1 = jnp.asarray(_channel_bcast_np(wss[1], couts[0]))
    p2 = jnp.asarray(_channel_fold_np(wss[2], couts[1]))
    q2 = jnp.asarray(_channel_bcast_np(wss[2], couts[1]))
    p3 = jnp.asarray(_channel_fold_np(wss[3], couts[2]))
    q3 = jnp.asarray(_channel_bcast_np(wss[3], couts[2]))
    g1 = params["g1"].reshape(1, couts[0]).astype(jnp.float32)
    b1 = params["b1"].reshape(1, couts[0]).astype(jnp.float32)
    g2 = params["g2"].reshape(1, couts[1]).astype(jnp.float32)
    b2 = params["b2"].reshape(1, couts[1]).astype(jnp.float32)
    g3 = params["g3"].reshape(1, couts[2]).astype(jnp.float32)
    b3 = params["b3"].reshape(1, couts[2]).astype(jnp.float32)

    m2, m3 = n * hs[2], n * hs[3]
    wc3 = wss[3] * couts[2]
    inv1 = 1.0 / float(n * hs[1] * wss[1])
    inv2 = 1.0 / float(n * hs[2] * wss[2])
    inv3 = 1.0 / float(n * hs[3] * wss[3])
    h3, pad4 = hs[3], pads[3]

    def kernel(rc1_ref, u1_ref, p1_ref, q1_ref, g1_ref, b1_ref,
               s2_ref, u2_ref, p2_ref, q2_ref, g2_ref, b2_ref,
               s3_ref, u3_ref, p3_ref, q3_ref, g3_ref, b3_ref,
               w4_ref, o_ref):
        """Whole discriminator in one kernel; every intermediate stays in VMEM."""

        def bn_relu(y, p_ref, q_ref, g_ref, b_ref, inv_m):
            # Train-mode BatchNorm2d (biased variance, eps=1e-5) + ReLU, single
            # pass; stats and scale/shift broadcast each use ONE small MXU dot.
            stats = jnp.concatenate(
                [jnp.sum(y, axis=0, keepdims=True),
                 jnp.sum(y * y, axis=0, keepdims=True)], axis=0)          # (2, W*C)
            mom = jnp.dot(stats, p_ref[...],
                          preferred_element_type=jnp.float32) * inv_m     # (2, C)
            mean, ex2 = mom[0:1, :], mom[1:2, :]
            var = ex2 - mean * mean                                       # biased, f32
            scale = g_ref[...] * jax.lax.rsqrt(var + _EPS)
            shift = b_ref[...] - mean * scale
            cols = jnp.dot(jnp.concatenate([scale, shift], axis=0), q_ref[...],
                           preferred_element_type=jnp.float32)            # (2, W*C)
            return jnp.maximum(y * cols[0:1, :] + cols[1:2, :], 0.0)

        def gather_rows(y, s_ref, m_out):
            # One small 0/1 bf16 matmul fetches all 5 H-tap slabs (incl. the zero
            # padding rows); taps are then laid out along lanes for the big dot.
            r = jnp.dot(s_ref[...], y.astype(jnp.bfloat16),
                        preferred_element_type=jnp.float32)
            taps = [r[ki * m_out:(ki + 1) * m_out, :] for ki in range(_K)]
            return jnp.concatenate(taps, axis=1).astype(jnp.bfloat16)

        def conv(rows_cat, u_ref):
            # Entire 5x5 conv = one MXU matmul (bf16 operands, f32 accumulate).
            return jnp.dot(rows_cat, u_ref[...], preferred_element_type=jnp.float32)

        # layer 1 (rows pre-gathered in the wrapper)            32 -> 16
        y1 = bn_relu(conv(rc1_ref[...], u1_ref), p1_ref, q1_ref, g1_ref, b1_ref, inv1)
        # layer 2                                               16 -> 8
        y2 = bn_relu(conv(gather_rows(y1, s2_ref, m2), u2_ref),
                     p2_ref, q2_ref, g2_ref, b2_ref, inv2)
        # layer 3                                                8 -> 4
        y3 = bn_relu(conv(gather_rows(y2, s3_ref, m3), u3_ref),
                     p3_ref, q3_ref, g3_ref, b3_ref, inv3)

        # layer 4 (Cout=1, 1x1 spatial, no BN/ReLU): gather = static row slices
        # of y3, contraction = VPU multiply + lane reduction (no degenerate MXU).
        taps4 = []
        for ki in range(_K):
            hrow = ki - pad4                     # = 2*ho + ki - pad with ho == 0
            if 0 <= hrow < h3:
                rows = [y3[b * h3 + hrow: b * h3 + hrow + 1, :] for b in range(n)]
                taps4.append(rows[0] if n == 1 else jnp.concatenate(rows, axis=0))
            else:
                taps4.append(jnp.zeros((n, wc3), jnp.float32))
        rc4 = jnp.concatenate(taps4, axis=1)                               # (N, 5*W*C)
        o_ref[...] = jnp.sum(rc4 * w4_ref[...], axis=1, keepdims=True)

    args = [rc1, u1, p1, q1, g1, b1,
            s2, u2, p2, q2, g2, b2,
            s3, u3, p3, q3, g3, b3,
            w4row]

    out2d = pl.pallas_call(
        kernel,
        grid=(1,),
        in_specs=[_full_spec(a.shape) for a in args],
        out_specs=_full_spec((n, 1)),
        out_shape=jax.ShapeDtypeStruct((n, 1), jnp.float32),
        compiler_params=pltpu.CompilerParams(
            dimension_semantics=("arbitrary",),
            vmem_limit_bytes=16 * 1024 * 1024,
        ),
    )(*args)

    out = out2d.reshape(-1)
    if out.shape != (n,):
        raise ValueError('expect {} x 1, but get {}'.format(n, out.shape))
    return out


# --------------------------- pure-JAX reference ----------------------------- #

def _reference_forward(params, x_nchw):
    x = jnp.transpose(x_nchw, (0, 2, 3, 1)).astype(jnp.float32)   # NHWC

    def conv(y, w, pad):
        return jax.lax.conv_general_dilated(
            y, w, window_strides=(2, 2), padding=[(pad, pad), (pad, pad)],
            dimension_numbers=("NHWC", "HWIO", "NHWC"))

    def bn_relu(y, g, b):
        mean = jnp.mean(y, axis=(0, 1, 2), keepdims=True)
        var = jnp.mean(jnp.square(y - mean), axis=(0, 1, 2), keepdims=True)
        y = (y - mean) * jax.lax.rsqrt(var + _EPS) * g + b
        return jnp.maximum(y, 0.0)

    y = bn_relu(conv(x, params["w1"], 2), params["g1"], params["b1"])
    y = bn_relu(conv(y, params["w2"], 2), params["g2"], params["b2"])
    y = bn_relu(conv(y, params["w3"], 2), params["g3"], params["b3"])
    y = conv(y, params["w4"], 1)
    return y.reshape(x.shape[0])


# ----------------------------------- main ----------------------------------- #

if __name__ == "__main__":
    key = jax.random.PRNGKey(0)
    k_param, k_x = jax.random.split(key)

    conv_dim = 16                      # small conv_dim (module default is 64)
    batch = 2
    # Input must be 3x32x32 so conv4 reduces to 1x1 and the shape check passes.
    x = jax.random.normal(k_x, (batch, 3, 32, 32), jnp.float32)

    params = init_params(k_param, conv_dim=conv_dim)

    out = jax.block_until_ready(dc_discriminator_forward(params, x))
    ref = jax.block_until_ready(_reference_forward(params, x))

    assert out.shape == (batch,) and out.dtype == jnp.float32
    err = float(jnp.max(jnp.abs(out - ref)))
    assert err < 5e-2, "kernel/reference mismatch: max abs err = %g" % err
    print("KERNEL_OK")
</pallas_src>

<mosaic_0001>
module attributes {stable_mosaic.version = 11 : i64} {
  func.func @kernel(%arg0: i32, %arg1: memref<32x640xbf16, #tpu.memory_space<vmem>>, %arg2: memref<640x256xbf16, #tpu.memory_space<vmem>>, %arg3: memref<256x16xf32, #tpu.memory_space<vmem>>, %arg4: memref<16x256xf32, #tpu.memory_space<vmem>>, %arg5: memref<1x16xf32, #tpu.memory_space<vmem>>, %arg6: memref<1x16xf32, #tpu.memory_space<vmem>>, %arg7: memref<80x32xbf16, #tpu.memory_space<vmem>>, %arg8: memref<1280x256xbf16, #tpu.memory_space<vmem>>, %arg9: memref<256x32xf32, #tpu.memory_space<vmem>>, %arg10: memref<32x256xf32, #tpu.memory_space<vmem>>, %arg11: memref<1x32xf32, #tpu.memory_space<vmem>>, %arg12: memref<1x32xf32, #tpu.memory_space<vmem>>, %arg13: memref<40x16xbf16, #tpu.memory_space<vmem>>, %arg14: memref<1280x256xbf16, #tpu.memory_space<vmem>>, %arg15: memref<256x64xf32, #tpu.memory_space<vmem>>, %arg16: memref<64x256xf32, #tpu.memory_space<vmem>>, %arg17: memref<1x64xf32, #tpu.memory_space<vmem>>, %arg18: memref<1x64xf32, #tpu.memory_space<vmem>>, %arg19: memref<1x1280xf32, #tpu.memory_space<vmem>>, %arg20: memref<2x1xf32, #tpu.memory_space<vmem>>) attributes {dimension_semantics = [#tpu.dimension_semantics<arbitrary>], iteration_bounds = array<i64: 1>, scalar_prefetch = 0 : i64, scratch_operands = 0 : i64, tpu.core_type = #tpu.core_type<tc>, window_params = [{pipeline_mode = #tpu.pipeline_mode<synchronous>, transform_indices = @transform_0, window_bounds = array<i64: 32, 640>}, {pipeline_mode = #tpu.pipeline_mode<synchronous>, transform_indices = @transform_1, window_bounds = array<i64: 640, 256>}, {pipeline_mode = #tpu.pipeline_mode<synchronous>, transform_indices = @transform_2, window_bounds = array<i64: 256, 16>}, {pipeline_mode = #tpu.pipeline_mode<synchronous>, transform_indices = @transform_3, window_bounds = array<i64: 16, 256>}, {pipeline_mode = #tpu.pipeline_mode<synchronous>, transform_indices = @transform_4, window_bounds = array<i64: 1, 16>}, {pipeline_mode = #tpu.pipeline_mode<synchronous>, transform_indices = @transform_5, window_bounds = array<i64: 1, 16>}, {pipeline_mode = #tpu.pipeline_mode<synchronous>, transform_indices = @transform_6, window_bounds = array<i64: 80, 32>}, {pipeline_mode = #tpu.pipeline_mode<synchronous>, transform_indices = @transform_7, window_bounds = array<i64: 1280, 256>}, {pipeline_mode = #tpu.pipeline_mode<synchronous>, transform_indices = @transform_8, window_bounds = array<i64: 256, 32>}, {pipeline_mode = #tpu.pipeline_mode<synchronous>, transform_indices = @transform_9, window_bounds = array<i64: 32, 256>}, {pipeline_mode = #tpu.pipeline_mode<synchronous>, transform_indices = @transform_10, window_bounds = array<i64: 1, 32>}, {pipeline_mode = #tpu.pipeline_mode<synchronous>, transform_indices = @transform_11, window_bounds = array<i64: 1, 32>}, {pipeline_mode = #tpu.pipeline_mode<synchronous>, transform_indices = @transform_12, window_bounds = array<i64: 40, 16>}, {pipeline_mode = #tpu.pipeline_mode<synchronous>, transform_indices = @transform_13, window_bounds = array<i64: 1280, 256>}, {pipeline_mode = #tpu.pipeline_mode<synchronous>, transform_indices = @transform_14, window_bounds = array<i64: 256, 64>}, {pipeline_mode = #tpu.pipeline_mode<synchronous>, transform_indices = @transform_15, window_bounds = array<i64: 64, 256>}, {pipeline_mode = #tpu.pipeline_mode<synchronous>, transform_indices = @transform_16, window_bounds = array<i64: 1, 64>}, {pipeline_mode = #tpu.pipeline_mode<synchronous>, transform_indices = @transform_17, window_bounds = array<i64: 1, 64>}, {pipeline_mode = #tpu.pipeline_mode<synchronous>, transform_indices = @transform_18, window_bounds = array<i64: 1, 1280>}, {pipeline_mode = #tpu.pipeline_mode<synchronous>, transform_indices = @transform_19, window_bounds = array<i64: 2, 1>}]} {
    %c0 = arith.constant 0 : index
    %c0_0 = arith.constant 0 : index
    %0 = vector.load %arg1[%c0, %c0_0] : memref<32x640xbf16, #tpu.memory_space<vmem>>, vector<32x640xbf16>
    %c0_1 = arith.constant 0 : index
    %c0_2 = arith.constant 0 : index
    %1 = vector.load %arg2[%c0_1, %c0_2] : memref<640x256xbf16, #tpu.memory_space<vmem>>, vector<640x256xbf16>
    %cst = arith.constant dense<0.000000e+00> : vector<32x256xf32>
    %2 = tpu.matmul %0, %1, %cst {dimension_numbers = #tpu.dot_dimension_numbers<[1], [0], [0], [1], [0, 0, 1, 1], [], []>} : vector<32x640xbf16>, vector<640x256xbf16>, vector<32x256xf32> -> vector<32x256xf32>
    %cst_3 = arith.constant dense<0.000000e+00> : vector<256xf32>
    %3 = vector.multi_reduction <add>, %2, %cst_3 [0] : vector<32x256xf32> to vector<256xf32>
    %4 = vector.shape_cast %3 : vector<256xf32> to vector<1x256xf32>
    %5 = arith.mulf %2, %2 : vector<32x256xf32>
    %cst_4 = arith.constant dense<0.000000e+00> : vector<256xf32>
    %6 = vector.multi_reduction <add>, %5, %cst_4 [0] : vector<32x256xf32> to vector<256xf32>
    %7 = vector.shape_cast %6 : vector<256xf32> to vector<1x256xf32>
    %8 = tpu.concatenate %4, %7 in 0 : vector<1x256xf32>, vector<1x256xf32> -> vector<2x256xf32>
    %c0_5 = arith.constant 0 : index
    %c0_6 = arith.constant 0 : index
    %9 = vector.load %arg3[%c0_5, %c0_6] : memref<256x16xf32, #tpu.memory_space<vmem>>, vector<256x16xf32>
    %cst_7 = arith.constant dense<0.000000e+00> : vector<2x16xf32>
    %10 = tpu.matmul %8, %9, %cst_7 {dimension_numbers = #tpu.dot_dimension_numbers<[1], [0], [0], [1], [0, 0, 1, 1], [], []>} : vector<2x256xf32>, vector<256x16xf32>, vector<2x16xf32> -> vector<2x16xf32>
    %cst_8 = arith.constant 0.001953125 : f32
    %11 = vector.broadcast %cst_8 : f32 to vector<2x16xf32>
    %12 = arith.mulf %10, %11 : vector<2x16xf32>
    %13 = vector.extract_strided_slice %12 {offsets = [0, 0], sizes = [1, 16], strides = [1, 1]} : vector<2x16xf32> to vector<1x16xf32>
    %14 = vector.extract_strided_slice %12 {offsets = [1, 0], sizes = [1, 16], strides = [1, 1]} : vector<2x16xf32> to vector<1x16xf32>
    %15 = arith.mulf %13, %13 : vector<1x16xf32>
    %16 = arith.subf %14, %15 : vector<1x16xf32>
    %c0_9 = arith.constant 0 : index
    %c0_10 = arith.constant 0 : index
    %17 = vector.load %arg5[%c0_9, %c0_10] : memref<1x16xf32, #tpu.memory_space<vmem>>, vector<1x16xf32>
    %cst_11 = arith.constant 9.99999974E-6 : f32
    %18 = vector.broadcast %cst_11 : f32 to vector<1x16xf32>
    %19 = arith.addf %16, %18 : vector<1x16xf32>
    %20 = math.rsqrt %19 : vector<1x16xf32>
    %21 = arith.mulf %17, %20 : vector<1x16xf32>
    %c0_12 = arith.constant 0 : index
    %c0_13 = arith.constant 0 : index
    %22 = vector.load %arg6[%c0_12, %c0_13] : memref<1x16xf32, #tpu.memory_space<vmem>>, vector<1x16xf32>
    %23 = arith.mulf %13, %21 : vector<1x16xf32>
    %24 = arith.subf %22, %23 : vector<1x16xf32>
    %25 = tpu.concatenate %21, %24 in 0 : vector<1x16xf32>, vector<1x16xf32> -> vector<2x16xf32>
    %c0_14 = arith.constant 0 : index
    %c0_15 = arith.constant 0 : index
    %26 = vector.load %arg4[%c0_14, %c0_15] : memref<16x256xf32, #tpu.memory_space<vmem>>, vector<16x256xf32>
    %cst_16 = arith.constant dense<0.000000e+00> : vector<2x256xf32>
    %27 = tpu.matmul %25, %26, %cst_16 {dimension_numbers = #tpu.dot_dimension_numbers<[1], [0], [0], [1], [0, 0, 1, 1], [], []>} : vector<2x16xf32>, vector<16x256xf32>, vector<2x256xf32> -> vector<2x256xf32>
    %28 = vector.extract_strided_slice %27 {offsets = [0, 0], sizes = [1, 256], strides = [1, 1]} : vector<2x256xf32> to vector<1x256xf32>
    %29 = vector.broadcast %28 : vector<1x256xf32> to vector<32x256xf32>
    %30 = arith.mulf %2, %29 : vector<32x256xf32>
    %31 = vector.extract_strided_slice %27 {offsets = [1, 0], sizes = [1, 256], strides = [1, 1]} : vector<2x256xf32> to vector<1x256xf32>
    %32 = vector.broadcast %31 : vector<1x256xf32> to vector<32x256xf32>
    %33 = arith.addf %30, %32 : vector<32x256xf32>
    %cst_17 = arith.constant 0.000000e+00 : f32
    %34 = vector.broadcast %cst_17 : f32 to vector<32x256xf32>
    %35 = arith.maximumf %33, %34 : vector<32x256xf32>
    %c0_18 = arith.constant 0 : index
    %c0_19 = arith.constant 0 : index
    %36 = vector.load %arg7[%c0_18, %c0_19] : memref<80x32xbf16, #tpu.memory_space<vmem>>, vector<80x32xbf16>
    %37 = arith.truncf %35 : vector<32x256xf32> to vector<32x256xbf16>
    %cst_20 = arith.constant dense<0.000000e+00> : vector<80x256xf32>
    %38 = tpu.matmul %36, %37, %cst_20 {dimension_numbers = #tpu.dot_dimension_numbers<[1], [0], [0], [1], [0, 0, 1, 1], [], []>} : vector<80x32xbf16>, vector<32x256xbf16>, vector<80x256xf32> -> vector<80x256xf32>
    %39 = vector.extract_strided_slice %38 {offsets = [0, 0], sizes = [16, 256], strides = [1, 1]} : vector<80x256xf32> to vector<16x256xf32>
    %40 = vector.extract_strided_slice %38 {offsets = [16, 0], sizes = [16, 256], strides = [1, 1]} : vector<80x256xf32> to vector<16x256xf32>
    %41 = vector.extract_strided_slice %38 {offsets = [32, 0], sizes = [16, 256], strides = [1, 1]} : vector<80x256xf32> to vector<16x256xf32>
    %42 = vector.extract_strided_slice %38 {offsets = [48, 0], sizes = [16, 256], strides = [1, 1]} : vector<80x256xf32> to vector<16x256xf32>
    %43 = vector.extract_strided_slice %38 {offsets = [64, 0], sizes = [16, 256], strides = [1, 1]} : vector<80x256xf32> to vector<16x256xf32>
    %44 = tpu.concatenate %39, %40, %41, %42, %43 in 1 : vector<16x256xf32>, vector<16x256xf32>, vector<16x256xf32>, vector<16x256xf32>, vector<16x256xf32> -> vector<16x1280xf32>
    %45 = arith.truncf %44 : vector<16x1280xf32> to vector<16x1280xbf16>
    %c0_21 = arith.constant 0 : index
    %c0_22 = arith.constant 0 : index
    %46 = vector.load %arg8[%c0_21, %c0_22] : memref<1280x256xbf16, #tpu.memory_space<vmem>>, vector<1280x256xbf16>
    %cst_23 = arith.constant dense<0.000000e+00> : vector<16x256xf32>
    %47 = tpu.matmul %45, %46, %cst_23 {dimension_numbers = #tpu.dot_dimension_numbers<[1], [0], [0], [1], [0, 0, 1, 1], [], []>} : vector<16x1280xbf16>, vector<1280x256xbf16>, vector<16x256xf32> -> vector<16x256xf32>
    %cst_24 = arith.constant dense<0.000000e+00> : vector<256xf32>
    %48 = vector.multi_reduction <add>, %47, %cst_24 [0] : vector<16x256xf32> to vector<256xf32>
    %49 = vector.shape_cast %48 : vector<256xf32> to vector<1x256xf32>
    %50 = arith.mulf %47, %47 : vector<16x256xf32>
    %cst_25 = arith.constant dense<0.000000e+00> : vector<256xf32>
    %51 = vector.multi_reduction <add>, %50, %cst_25 [0] : vector<16x256xf32> to vector<256xf32>
    %52 = vector.shape_cast %51 : vector<256xf32> to vector<1x256xf32>
    %53 = tpu.concatenate %49, %52 in 0 : vector<1x256xf32>, vector<1x256xf32> -> vector<2x256xf32>
    %c0_26 = arith.constant 0 : index
    %c0_27 = arith.constant 0 : index
    %54 = vector.load %arg9[%c0_26, %c0_27] : memref<256x32xf32, #tpu.memory_space<vmem>>, vector<256x32xf32>
    %cst_28 = arith.constant dense<0.000000e+00> : vector<2x32xf32>
    %55 = tpu.matmul %53, %54, %cst_28 {dimension_numbers = #tpu.dot_dimension_numbers<[1], [0], [0], [1], [0, 0, 1, 1], [], []>} : vector<2x256xf32>, vector<256x32xf32>, vector<2x32xf32> -> vector<2x32xf32>
    %cst_29 = arith.constant 7.812500e-03 : f32
    %56 = vector.broadcast %cst_29 : f32 to vector<2x32xf32>
    %57 = arith.mulf %55, %56 : vector<2x32xf32>
    %58 = vector.extract_strided_slice %57 {offsets = [0, 0], sizes = [1, 32], strides = [1, 1]} : vector<2x32xf32> to vector<1x32xf32>
    %59 = vector.extract_strided_slice %57 {offsets = [1, 0], sizes = [1, 32], strides = [1, 1]} : vector<2x32xf32> to vector<1x32xf32>
    %60 = arith.mulf %58, %58 : vector<1x32xf32>
    %61 = arith.subf %59, %60 : vector<1x32xf32>
    %c0_30 = arith.constant 0 : index
    %c0_31 = arith.constant 0 : index
    %62 = vector.load %arg11[%c0_30, %c0_31] : memref<1x32xf32, #tpu.memory_space<vmem>>, vector<1x32xf32>
    %cst_32 = arith.constant 9.99999974E-6 : f32
    %63 = vector.broadcast %cst_32 : f32 to vector<1x32xf32>
    %64 = arith.addf %61, %63 : vector<1x32xf32>
    %65 = math.rsqrt %64 : vector<1x32xf32>
    %66 = arith.mulf %62, %65 : vector<1x32xf32>
    %c0_33 = arith.constant 0 : index
    %c0_34 = arith.constant 0 : index
    %67 = vector.load %arg12[%c0_33, %c0_34] : memref<1x32xf32, #tpu.memory_space<vmem>>, vector<1x32xf32>
    %68 = arith.mulf %58, %66 : vector<1x32xf32>
    %69 = arith.subf %67, %68 : vector<1x32xf32>
    %70 = tpu.concatenate %66, %69 in 0 : vector<1x32xf32>, vector<1x32xf32> -> vector<2x32xf32>
    %c0_35 = arith.constant 0 : index
    %c0_36 = arith.constant 0 : index
    %71 = vector.load %arg10[%c0_35, %c0_36] : memref<32x256xf32, #tpu.memory_space<vmem>>, vector<32x256xf32>
    %cst_37 = arith.constant dense<0.000000e+00> : vector<2x256xf32>
    %72 = tpu.matmul %70, %71, %cst_37 {dimension_numbers = #tpu.dot_dimension_numbers<[1], [0], [0], [1], [0, 0, 1, 1], [], []>} : vector<2x32xf32>, vector<32x256xf32>, vector<2x256xf32> -> vector<2x256xf32>
    %73 = vector.extract_strided_slice %72 {offsets = [0, 0], sizes = [1, 256], strides = [1, 1]} : vector<2x256xf32> to vector<1x256xf32>
    %74 = vector.broadcast %73 : vector<1x256xf32> to vector<16x256xf32>
    %75 = arith.mulf %47, %74 : vector<16x256xf32>
    %76 = vector.extract_strided_slice %72 {offsets = [1, 0], sizes = [1, 256], strides = [1, 1]} : vector<2x256xf32> to vector<1x256xf32>
    %77 = vector.broadcast %76 : vector<1x256xf32> to vector<16x256xf32>
    %78 = arith.addf %75, %77 : vector<16x256xf32>
    %cst_38 = arith.constant 0.000000e+00 : f32
    %79 = vector.broadcast %cst_38 : f32 to vector<16x256xf32>
    %80 = arith.maximumf %78, %79 : vector<16x256xf32>
    %c0_39 = arith.constant 0 : index
    %c0_40 = arith.constant 0 : index
    %81 = vector.load %arg13[%c0_39, %c0_40] : memref<40x16xbf16, #tpu.memory_space<vmem>>, vector<40x16xbf16>
    %82 = arith.truncf %80 : vector<16x256xf32> to vector<16x256xbf16>
    %cst_41 = arith.constant dense<0.000000e+00> : vector<40x256xf32>
    %83 = tpu.matmul %81, %82, %cst_41 {dimension_numbers = #tpu.dot_dimension_numbers<[1], [0], [0], [1], [0, 0, 1, 1], [], []>} : vector<40x16xbf16>, vector<16x256xbf16>, vector<40x256xf32> -> vector<40x256xf32>
    %84 = vector.extract_strided_slice %83 {offsets = [0, 0], sizes = [8, 256], strides = [1, 1]} : vector<40x256xf32> to vector<8x256xf32>
    %85 = vector.extract_strided_slice %83 {offsets = [8, 0], sizes = [8, 256], strides = [1, 1]} : vector<40x256xf32> to vector<8x256xf32>
    %86 = vector.extract_strided_slice %83 {offsets = [16, 0], sizes = [8, 256], strides = [1, 1]} : vector<40x256xf32> to vector<8x256xf32>
    %87 = vector.extract_strided_slice %83 {offsets = [24, 0], sizes = [8, 256], strides = [1, 1]} : vector<40x256xf32> to vector<8x256xf32>
    %88 = vector.extract_strided_slice %83 {offsets = [32, 0], sizes = [8, 256], strides = [1, 1]} : vector<40x256xf32> to vector<8x256xf32>
    %89 = tpu.concatenate %84, %85, %86, %87, %88 in 1 : vector<8x256xf32>, vector<8x256xf32>, vector<8x256xf32>, vector<8x256xf32>, vector<8x256xf32> -> vector<8x1280xf32>
    %90 = arith.truncf %89 : vector<8x1280xf32> to vector<8x1280xbf16>
    %c0_42 = arith.constant 0 : index
    %c0_43 = arith.constant 0 : index
    %91 = vector.load %arg14[%c0_42, %c0_43] : memref<1280x256xbf16, #tpu.memory_space<vmem>>, vector<1280x256xbf16>
    %cst_44 = arith.constant dense<0.000000e+00> : vector<8x256xf32>
    %92 = tpu.matmul %90, %91, %cst_44 {dimension_numbers = #tpu.dot_dimension_numbers<[1], [0], [0], [1], [0, 0, 1, 1], [], []>} : vector<8x1280xbf16>, vector<1280x256xbf16>, vector<8x256xf32> -> vector<8x256xf32>
    %cst_45 = arith.constant dense<0.000000e+00> : vector<256xf32>
    %93 = vector.multi_reduction <add>, %92, %cst_45 [0] : vector<8x256xf32> to vector<256xf32>
    %94 = vector.shape_cast %93 : vector<256xf32> to vector<1x256xf32>
    %95 = arith.mulf %92, %92 : vector<8x256xf32>
    %cst_46 = arith.constant dense<0.000000e+00> : vector<256xf32>
    %96 = vector.multi_reduction <add>, %95, %cst_46 [0] : vector<8x256xf32> to vector<256xf32>
    %97 = vector.shape_cast %96 : vector<256xf32> to vector<1x256xf32>
    %98 = tpu.concatenate %94, %97 in 0 : vector<1x256xf32>, vector<1x256xf32> -> vector<2x256xf32>
    %c0_47 = arith.constant 0 : index
    %c0_48 = arith.constant 0 : index
    %99 = vector.load %arg15[%c0_47, %c0_48] : memref<256x64xf32, #tpu.memory_space<vmem>>, vector<256x64xf32>
    %cst_49 = arith.constant dense<0.000000e+00> : vector<2x64xf32>
    %100 = tpu.matmul %98, %99, %cst_49 {dimension_numbers = #tpu.dot_dimension_numbers<[1], [0], [0], [1], [0, 0, 1, 1], [], []>} : vector<2x256xf32>, vector<256x64xf32>, vector<2x64xf32> -> vector<2x64xf32>
    %cst_50 = arith.constant 3.125000e-02 : f32
    %101 = vector.broadcast %cst_50 : f32 to vector<2x64xf32>
    %102 = arith.mulf %100, %101 : vector<2x64xf32>
    %103 = vector.extract_strided_slice %102 {offsets = [0, 0], sizes = [1, 64], strides = [1, 1]} : vector<2x64xf32> to vector<1x64xf32>
    %104 = vector.extract_strided_slice %102 {offsets = [1, 0], sizes = [1, 64], strides = [1, 1]} : vector<2x64xf32> to vector<1x64xf32>
    %105 = arith.mulf %103, %103 : vector<1x64xf32>
    %106 = arith.subf %104, %105 : vector<1x64xf32>
    %c0_51 = arith.constant 0 : index
    %c0_52 = arith.constant 0 : index
    %107 = vector.load %arg17[%c0_51, %c0_52] : memref<1x64xf32, #tpu.memory_space<vmem>>, vector<1x64xf32>
    %cst_53 = arith.constant 9.99999974E-6 : f32
    %108 = vector.broadcast %cst_53 : f32 to vector<1x64xf32>
    %109 = arith.addf %106, %108 : vector<1x64xf32>
    %110 = math.rsqrt %109 : vector<1x64xf32>
    %111 = arith.mulf %107, %110 : vector<1x64xf32>
    %c0_54 = arith.constant 0 : index
    %c0_55 = arith.constant 0 : index
    %112 = vector.load %arg18[%c0_54, %c0_55] : memref<1x64xf32, #tpu.memory_space<vmem>>, vector<1x64xf32>
    %113 = arith.mulf %103, %111 : vector<1x64xf32>
    %114 = arith.subf %112, %113 : vector<1x64xf32>
    %115 = tpu.concatenate %111, %114 in 0 : vector<1x64xf32>, vector<1x64xf32> -> vector<2x64xf32>
    %c0_56 = arith.constant 0 : index
    %c0_57 = arith.constant 0 : index
    %116 = vector.load %arg16[%c0_56, %c0_57] : memref<64x256xf32, #tpu.memory_space<vmem>>, vector<64x256xf32>
    %cst_58 = arith.constant dense<0.000000e+00> : vector<2x256xf32>
    %117 = tpu.matmul %115, %116, %cst_58 {dimension_numbers = #tpu.dot_dimension_numbers<[1], [0], [0], [1], [0, 0, 1, 1], [], []>} : vector<2x64xf32>, vector<64x256xf32>, vector<2x256xf32> -> vector<2x256xf32>
    %118 = vector.extract_strided_slice %117 {offsets = [0, 0], sizes = [1, 256], strides = [1, 1]} : vector<2x256xf32> to vector<1x256xf32>
    %119 = vector.broadcast %118 : vector<1x256xf32> to vector<8x256xf32>
    %120 = arith.mulf %92, %119 : vector<8x256xf32>
    %121 = vector.extract_strided_slice %117 {offsets = [1, 0], sizes = [1, 256], strides = [1, 1]} : vector<2x256xf32> to vector<1x256xf32>
    %122 = vector.broadcast %121 : vector<1x256xf32> to vector<8x256xf32>
    %123 = arith.addf %120, %122 : vector<8x256xf32>
    %cst_59 = arith.constant 0.000000e+00 : f32
    %124 = vector.broadcast %cst_59 : f32 to vector<8x256xf32>
    %125 = arith.maximumf %123, %124 : vector<8x256xf32>
    %cst_60 = arith.constant 0.000000e+00 : f32
    %126 = vector.broadcast %cst_60 : f32 to vector<2x256xf32>
    %127 = vector.extract_strided_slice %125 {offsets = [0, 0], sizes = [1, 256], strides = [1, 1]} : vector<8x256xf32> to vector<1x256xf32>
    %128 = vector.extract_strided_slice %125 {offsets = [4, 0], sizes = [1, 256], strides = [1, 1]} : vector<8x256xf32> to vector<1x256xf32>
    %129 = tpu.concatenate %127, %128 in 0 : vector<1x256xf32>, vector<1x256xf32> -> vector<2x256xf32>
    %130 = vector.extract_strided_slice %125 {offsets = [1, 0], sizes = [1, 256], strides = [1, 1]} : vector<8x256xf32> to vector<1x256xf32>
    %131 = vector.extract_strided_slice %125 {offsets = [5, 0], sizes = [1, 256], strides = [1, 1]} : vector<8x256xf32> to vector<1x256xf32>
    %132 = tpu.concatenate %130, %131 in 0 : vector<1x256xf32>, vector<1x256xf32> -> vector<2x256xf32>
    %133 = vector.extract_strided_slice %125 {offsets = [2, 0], sizes = [1, 256], strides = [1, 1]} : vector<8x256xf32> to vector<1x256xf32>
    %134 = vector.extract_strided_slice %125 {offsets = [6, 0], sizes = [1, 256], strides = [1, 1]} : vector<8x256xf32> to vector<1x256xf32>
    %135 = tpu.concatenate %133, %134 in 0 : vector<1x256xf32>, vector<1x256xf32> -> vector<2x256xf32>
    %136 = vector.extract_strided_slice %125 {offsets = [3, 0], sizes = [1, 256], strides = [1, 1]} : vector<8x256xf32> to vector<1x256xf32>
    %137 = vector.extract_strided_slice %125 {offsets = [7, 0], sizes = [1, 256], strides = [1, 1]} : vector<8x256xf32> to vector<1x256xf32>
    %138 = tpu.concatenate %136, %137 in 0 : vector<1x256xf32>, vector<1x256xf32> -> vector<2x256xf32>
    %139 = tpu.concatenate %126, %129, %132, %135, %138 in 1 : vector<2x256xf32>, vector<2x256xf32>, vector<2x256xf32>, vector<2x256xf32>, vector<2x256xf32> -> vector<2x1280xf32>
    %c0_61 = arith.constant 0 : index
    %c0_62 = arith.constant 0 : index
    %140 = vector.load %arg19[%c0_61, %c0_62] : memref<1x1280xf32, #tpu.memory_space<vmem>>, vector<1x1280xf32>
    %141 = vector.broadcast %140 : vector<1x1280xf32> to vector<2x1280xf32>
    %142 = arith.mulf %139, %141 : vector<2x1280xf32>
    %cst_63 = arith.constant dense<0.000000e+00> : vector<2xf32>
    %143 = vector.multi_reduction <add>, %142, %cst_63 [1] : vector<2x1280xf32> to vector<2xf32>
    %144 = vector.shape_cast %143 : vector<2xf32> to vector<2x1xf32>
    %c0_64 = arith.constant 0 : index
    %c0_65 = arith.constant 0 : index
    %145 = vector.load %arg20[%c0_64, %c0_65] : memref<2x1xf32, #tpu.memory_space<vmem>>, vector<2x1xf32>
    tpu.vector_store %arg20[%c0_64, %c0_65], %144 {strides = array<i32>} : memref<2x1xf32, #tpu.memory_space<vmem>>, vector<2x1xf32>,
    return
  }
  func.func @transform_0(%arg0: i32) -> (i32, i32) {
    %c0_i32 = arith.constant 0 : i32
    %c0_i32_0 = arith.constant 0 : i32
    %c0_i32_1 = arith.constant 0 : i32
    return %c0_i32, %c0_i32_0 : i32, i32
  }
  func.func @transform_1(%arg0: i32) -> (i32, i32) {
    %c0_i32 = arith.constant 0 : i32
    %c0_i32_0 = arith.constant 0 : i32
    %c0_i32_1 = arith.constant 0 : i32
    return %c0_i32, %c0_i32_0 : i32, i32
  }
  func.func @transform_2(%arg0: i32) -> (i32, i32) {
    %c0_i32 = arith.constant 0 : i32
    %c0_i32_0 = arith.constant 0 : i32
    %c0_i32_1 = arith.constant 0 : i32
    return %c0_i32, %c0_i32_0 : i32, i32
  }
  func.func @transform_3(%arg0: i32) -> (i32, i32) {
    %c0_i32 = arith.constant 0 : i32
    %c0_i32_0 = arith.constant 0 : i32
    %c0_i32_1 = arith.constant 0 : i32
    return %c0_i32, %c0_i32_0 : i32, i32
  }
  func.func @transform_4(%arg0: i32) -> (i32, i32) {
    %c0_i32 = arith.constant 0 : i32
    %c0_i32_0 = arith.constant 0 : i32
    %c0_i32_1 = arith.constant 0 : i32
    return %c0_i32, %c0_i32_0 : i32, i32
  }
  func.func @transform_5(%arg0: i32) -> (i32, i32) {
    %c0_i32 = arith.constant 0 : i32
    %c0_i32_0 = arith.constant 0 : i32
    %c0_i32_1 = arith.constant 0 : i32
    return %c0_i32, %c0_i32_0 : i32, i32
  }
  func.func @transform_6(%arg0: i32) -> (i32, i32) {
    %c0_i32 = arith.constant 0 : i32
    %c0_i32_0 = arith.constant 0 : i32
    %c0_i32_1 = arith.constant 0 : i32
    return %c0_i32, %c0_i32_0 : i32, i32
  }
  func.func @transform_7(%arg0: i32) -> (i32, i32) {
    %c0_i32 = arith.constant 0 : i32
    %c0_i32_0 = arith.constant 0 : i32
    %c0_i32_1 = arith.constant 0 : i32
    return %c0_i32, %c0_i32_0 : i32, i32
  }
  func.func @transform_8(%arg0: i32) -> (i32, i32) {
    %c0_i32 = arith.constant 0 : i32
    %c0_i32_0 = arith.constant 0 : i32
    %c0_i32_1 = arith.constant 0 : i32
    return %c0_i32, %c0_i32_0 : i32, i32
  }
  func.func @transform_9(%arg0: i32) -> (i32, i32) {
    %c0_i32 = arith.constant 0 : i32
    %c0_i32_0 = arith.constant 0 : i32
    %c0_i32_1 = arith.constant 0 : i32
    return %c0_i32, %c0_i32_0 : i32, i32
  }
  func.func @transform_10(%arg0: i32) -> (i32, i32) {
    %c0_i32 = arith.constant 0 : i32
    %c0_i32_0 = arith.constant 0 : i32
    %c0_i32_1 = arith.constant 0 : i32
    return %c0_i32, %c0_i32_0 : i32, i32
  }
  func.func @transform_11(%arg0: i32) -> (i32, i32) {
    %c0_i32 = arith.constant 0 : i32
    %c0_i32_0 = arith.constant 0 : i32
    %c0_i32_1 = arith.constant 0 : i32
    return %c0_i32, %c0_i32_0 : i32, i32
  }
  func.func @transform_12(%arg0: i32) -> (i32, i32) {
    %c0_i32 = arith.constant 0 : i32
    %c0_i32_0 = arith.constant 0 : i32
    %c0_i32_1 = arith.constant 0 : i32
    return %c0_i32, %c0_i32_0 : i32, i32
  }
  func.func @transform_13(%arg0: i32) -> (i32, i32) {
    %c0_i32 = arith.constant 0 : i32
    %c0_i32_0 = arith.constant 0 : i32
    %c0_i32_1 = arith.constant 0 : i32
    return %c0_i32, %c0_i32_0 : i32, i32
  }
  func.func @transform_14(%arg0: i32) -> (i32, i32) {
    %c0_i32 = arith.constant 0 : i32
    %c0_i32_0 = arith.constant 0 : i32
    %c0_i32_1 = arith.constant 0 : i32
    return %c0_i32, %c0_i32_0 : i32, i32
  }
  func.func @transform_15(%arg0: i32) -> (i32, i32) {
    %c0_i32 = arith.constant 0 : i32
    %c0_i32_0 = arith.constant 0 : i32
    %c0_i32_1 = arith.constant 0 : i32
    return %c0_i32, %c0_i32_0 : i32, i32
  }
  func.func @transform_16(%arg0: i32) -> (i32, i32) {
    %c0_i32 = arith.constant 0 : i32
    %c0_i32_0 = arith.constant 0 : i32
    %c0_i32_1 = arith.constant 0 : i32
    return %c0_i32, %c0_i32_0 : i32, i32
  }
  func.func @transform_17(%arg0: i32) -> (i32, i32) {
    %c0_i32 = arith.constant 0 : i32
    %c0_i32_0 = arith.constant 0 : i32
    %c0_i32_1 = arith.constant 0 : i32
    return %c0_i32, %c0_i32_0 : i32, i32
  }
  func.func @transform_18(%arg0: i32) -> (i32, i32) {
    %c0_i32 = arith.constant 0 : i32
    %c0_i32_0 = arith.constant 0 : i32
    %c0_i32_1 = arith.constant 0 : i32
    return %c0_i32, %c0_i32_0 : i32, i32
  }
  func.func @transform_19(%arg0: i32) -> (i32, i32) {
    %c0_i32 = arith.constant 0 : i32
    %c0_i32_0 = arith.constant 0 : i32
    %c0_i32_1 = arith.constant 0 : i32
    return %c0_i32, %c0_i32_0 : i32, i32
  }
}

</mosaic_0001>

<llo_original>
// kernel: dc_discriminator_forward.1
$region0: #{dc_discriminator_forward.1}
  #allocation0 [shape = 'u32[]', space=smem, size = 0x4, offset = 0x4, fixed_abs, tag = 'smem constant byte address 0x4 - core index']
  #allocation1 [shape = 'u32[144,128]{1,0:T(1,128)}', space=vmem, size = 0x12000, scoped, tag = 'internal scratch']
  %s0 = inlined_call_operand.vmem [shape: bf16[32,640], index: 0, kind: input, shape index: {}]
  %s1 = inlined_call_operand.vmem [shape: bf16[640,256], index: 1, kind: input, shape index: {}]
  %s2 = inlined_call_operand.vmem [shape: f32[256,16], index: 2, kind: input, shape index: {}]
  %s3 = inlined_call_operand.vmem [shape: f32[16,256], index: 3, kind: input, shape index: {}]
  %s4 = inlined_call_operand.vmem [shape: f32[1,16], index: 4, kind: input, shape index: {}]
  %s5 = inlined_call_operand.vmem [shape: f32[1,16], index: 5, kind: input, shape index: {}]
  %s6 = inlined_call_operand.vmem [shape: bf16[80,32], index: 6, kind: input, shape index: {}]
  %s7 = inlined_call_operand.vmem [shape: bf16[1280,256], index: 7, kind: input, shape index: {}]
  %s8 = inlined_call_operand.vmem [shape: f32[256,32], index: 8, kind: input, shape index: {}]
  %s9 = inlined_call_operand.vmem [shape: f32[32,256], index: 9, kind: input, shape index: {}]
  %s10 = inlined_call_operand.vmem [shape: f32[1,32], index: 10, kind: input, shape index: {}]
  %s11 = inlined_call_operand.vmem [shape: f32[1,32], index: 11, kind: input, shape index: {}]
  %s12 = inlined_call_operand.vmem [shape: bf16[40,16], index: 12, kind: input, shape index: {}]
  %s13 = inlined_call_operand.vmem [shape: bf16[1280,256], index: 13, kind: input, shape index: {}]
  %s14 = inlined_call_operand.vmem [shape: f32[256,64], index: 14, kind: input, shape index: {}]
  %s15 = inlined_call_operand.vmem [shape: f32[64,256], index: 15, kind: input, shape index: {}]
  %s16 = inlined_call_operand.vmem [shape: f32[1,64], index: 16, kind: input, shape index: {}]
  %s17 = inlined_call_operand.vmem [shape: f32[1,64], index: 17, kind: input, shape index: {}]
  %s18 = inlined_call_operand.vmem [shape: f32[1,1280], index: 18, kind: input, shape index: {}]
  %s19 = inlined_call_operand.vmem [shape: f32[2,1], index: 19, kind: output, shape index: {}]
  %s20 = sld [smem:[#allocation0]]
  $region86: #{dc_discriminator_forward.1} parent=0
    _
  %s22 = ssub.s32 1, %s20
  %s23 = scalar_select 0, %s22, %s20
  // Predicated region
  $region2: #{dc_discriminator_forward.1} parent=0 // pred_check
    _
  $region3: #{dc_discriminator_forward.1} parent=0 // pred_check_branch
    %25 = sbr.rel (0) target = $region5
  $region4: #{dc_discriminator_forward.1} parent=0 // pred_region
    _
  $region5: #{dc_discriminator_forward.1} parent=0 // pred_fallthru
    _
  // Predicated region
  $region6: #{dc_discriminator_forward.1} parent=0 // pred_check
    _
  $region7: #{dc_discriminator_forward.1} parent=0 // pred_check_branch
    %27 = sbr.rel (0) target = $region9
  $region8: #{dc_discriminator_forward.1} parent=0 // pred_region
    _
  $region9: #{dc_discriminator_forward.1} parent=0 // pred_fallthru
    _
  // Predicated region
  $region10: #{dc_discriminator_forward.1} parent=0 // pred_check
    _
  $region11: #{dc_discriminator_forward.1} parent=0 // pred_check_branch
    %29 = sbr.rel (0) target = $region13
  $region12: #{dc_discriminator_forward.1} parent=0 // pred_region
    _
  $region13: #{dc_discriminator_forward.1} parent=0 // pred_fallthru
    _
  // Predicated region
  $region14: #{dc_discriminator_forward.1} parent=0 // pred_check
    _
  $region15: #{dc_discriminator_forward.1} parent=0 // pred_check_branch
    %31 = sbr.rel (0) target = $region17
  $region16: #{dc_discriminator_forward.1} parent=0 // pred_region
    _
  $region17: #{dc_discriminator_forward.1} parent=0 // pred_fallthru
    _
  // Predicated region
  $region18: #{dc_discriminator_forward.1} parent=0 // pred_check
    _
  $region19: #{dc_discriminator_forward.1} parent=0 // pred_check_branch
    %33 = sbr.rel (0) target = $region21
  $region20: #{dc_discriminator_forward.1} parent=0 // pred_region
    _
  $region21: #{dc_discriminator_forward.1} parent=0 // pred_fallthru
    _
  // Predicated region
  $region22: #{dc_discriminator_forward.1} parent=0 // pred_check
    _
  $region23: #{dc_discriminator_forward.1} parent=0 // pred_check_branch
    %35 = sbr.rel (0) target = $region25
  $region24: #{dc_discriminator_forward.1} parent=0 // pred_region
    _
  $region25: #{dc_discriminator_forward.1} parent=0 // pred_fallthru
    _
  // Predicated region
  $region26: #{dc_discriminator_forward.1} parent=0 // pred_check
    _
  $region27: #{dc_discriminator_forward.1} parent=0 // pred_check_branch
    %37 = sbr.rel (0) target = $region29
  $region28: #{dc_discriminator_forward.1} parent=0 // pred_region
    _
  $region29: #{dc_discriminator_forward.1} parent=0 // pred_fallthru
    _
  // Predicated region
  $region30: #{dc_discriminator_forward.1} parent=0 // pred_check
    _
  $region31: #{dc_discriminator_forward.1} parent=0 // pred_check_branch
    %39 = sbr.rel (0) target = $region33
  $region32: #{dc_discriminator_forward.1} parent=0 // pred_region
    _
  $region33: #{dc_discriminator_forward.1} parent=0 // pred_fallthru
    _
  // Predicated region
  $region34: #{dc_discriminator_forward.1} parent=0 // pred_check
    _
  $region35: #{dc_discriminator_forward.1} parent=0 // pred_check_branch
    %41 = sbr.rel (0) target = $region37
  $region36: #{dc_discriminator_forward.1} parent=0 // pred_region
    _
  $region37: #{dc_discriminator_forward.1} parent=0 // pred_fallthru
    _
  // Predicated region
  $region38: #{dc_discriminator_forward.1} parent=0 // pred_check
    _
  $region39: #{dc_discriminator_forward.1} parent=0 // pred_check_branch
    %43 = sbr.rel (0) target = $region41
  $region40: #{dc_discriminator_forward.1} parent=0 // pred_region
    _
  $region41: #{dc_discriminator_forward.1} parent=0 // pred_fallthru
    _
  // Predicated region
  $region42: #{dc_discriminator_forward.1} parent=0 // pred_check
    _
  $region43: #{dc_discriminator_forward.1} parent=0 // pred_check_branch
    %45 = sbr.rel (0) target = $region45
  $region44: #{dc_discriminator_forward.1} parent=0 // pred_region
    _
  $region45: #{dc_discriminator_forward.1} parent=0 // pred_fallthru
    _
  // Predicated region
  $region46: #{dc_discriminator_forward.1} parent=0 // pred_check
    _
  $region47: #{dc_discriminator_forward.1} parent=0 // pred_check_branch
    %47 = sbr.rel (0) target = $region49
  $region48: #{dc_discriminator_forward.1} parent=0 // pred_region
    _
  $region49: #{dc_discriminator_forward.1} parent=0 // pred_fallthru
    _
  // Predicated region
  $region50: #{dc_discriminator_forward.1} parent=0 // pred_check
    _
  $region51: #{dc_discriminator_forward.1} parent=0 // pred_check_branch
    %49 = sbr.rel (0) target = $region53
  $region52: #{dc_discriminator_forward.1} parent=0 // pred_region
    _
  $region53: #{dc_discriminator_forward.1} parent=0 // pred_fallthru
    _
  // Predicated region
  $region54: #{dc_discriminator_forward.1} parent=0 // pred_check
    _
  $region55: #{dc_discriminator_forward.1} parent=0 // pred_check_branch
    %51 = sbr.rel (0) target = $region57
  $region56: #{dc_discriminator_forward.1} parent=0 // pred_region
    _
  $region57: #{dc_discriminator_forward.1} parent=0 // pred_fallthru
    _
  // Predicated region
  $region58: #{dc_discriminator_forward.1} parent=0 // pred_check
    _
  $region59: #{dc_discriminator_forward.1} parent=0 // pred_check_branch
    %53 = sbr.rel (0) target = $region61
  $region60: #{dc_discriminator_forward.1} parent=0 // pred_region
    _
  $region61: #{dc_discriminator_forward.1} parent=0 // pred_fallthru
    _
  // Predicated region
  $region62: #{dc_discriminator_forward.1} parent=0 // pred_check
    _
  $region63: #{dc_discriminator_forward.1} parent=0 // pred_check_branch
    %55 = sbr.rel (0) target = $region65
  $region64: #{dc_discriminator_forward.1} parent=0 // pred_region
    _
  $region65: #{dc_discriminator_forward.1} parent=0 // pred_fallthru
    _
  // Predicated region
  $region66: #{dc_discriminator_forward.1} parent=0 // pred_check
    _
  $region67: #{dc_discriminator_forward.1} parent=0 // pred_check_branch
    %57 = sbr.rel (0) target = $region69
  $region68: #{dc_discriminator_forward.1} parent=0 // pred_region
    _
  $region69: #{dc_discriminator_forward.1} parent=0 // pred_fallthru
    _
  // Predicated region
  $region70: #{dc_discriminator_forward.1} parent=0 // pred_check
    _
  $region71: #{dc_discriminator_forward.1} parent=0 // pred_check_branch
    %59 = sbr.rel (0) target = $region73
  $region72: #{dc_discriminator_forward.1} parent=0 // pred_region
    _
  $region73: #{dc_discriminator_forward.1} parent=0 // pred_fallthru
    _
  // Predicated region
  $region74: #{dc_discriminator_forward.1} parent=0 // pred_check
    _
  $region75: #{dc_discriminator_forward.1} parent=0 // pred_check_branch
    %61 = sbr.rel (0) target = $region77
  $region76: #{dc_discriminator_forward.1} parent=0 // pred_region
    _
  $region77: #{dc_discriminator_forward.1} parent=0 // pred_fallthru
    _
  %v63 = vld [vmem:[%s0] sm:$0xff]
  %v64 = vld [vmem:[%s0 + $0x8] sm:$0xff]
  %v65 = vld [vmem:[%s0 + $0x10] sm:$0xf]
  %v66 = vld [vmem:[%s0 + $0x14] sm:$0xff]
  %v67 = vld [vmem:[%s0 + $0x1c] sm:$0xff]
  %v68 = vld [vmem:[%s0 + $0x24] sm:$0xf]
  %v69 = vld [vmem:[%s0 + $0x28] sm:$0xff]
  %v70 = vld [vmem:[%s0 + $0x30] sm:$0xff]
  %v71 = vld [vmem:[%s0 + $0x38] sm:$0xf]
  %v72 = vld [vmem:[%s0 + $0x3c] sm:$0xff]
  %v73 = vld [vmem:[%s0 + $0x44] sm:$0xff]
  %v74 = vld [vmem:[%s0 + $0x4c] sm:$0xf]
  %v75 = vld [vmem:[%s1] sm:$0xff]
  %v76 = vld [vmem:[%s1 + $0x8] sm:$0xff]
  %v77 = vld [vmem:[%s1 + $0x10] sm:$0xff]
  %v78 = vld [vmem:[%s1 + $0x18] sm:$0xff]
  %v79 = vld [vmem:[%s1 + $0x20] sm:$0xff]
  %v80 = vld [vmem:[%s1 + $0x28] sm:$0xff]
  %v81 = vld [vmem:[%s1 + $0x30] sm:$0xff]
  %v82 = vld [vmem:[%s1 + $0x38] sm:$0xff]
  %v83 = vld [vmem:[%s1 + $0x40] sm:$0xff]
  %v84 = vld [vmem:[%s1 + $0x48] sm:$0xff]
  %v85 = vld [vmem:[%s1 + $0x50] sm:$0xff]
  %v86 = vld [vmem:[%s1 + $0x58] sm:$0xff]
  %v87 = vld [vmem:[%s1 + $0x60] sm:$0xff]
  %v88 = vld [vmem:[%s1 + $0x68] sm:$0xff]
  %v89 = vld [vmem:[%s1 + $0x70] sm:$0xff]
  %v90 = vld [vmem:[%s1 + $0x78] sm:$0xff]
  %v91 = vld [vmem:[%s1 + $0x80] sm:$0xff]
  %v92 = vld [vmem:[%s1 + $0x88] sm:$0xff]
  %v93 = vld [vmem:[%s1 + $0x90] sm:$0xff]
  %v94 = vld [vmem:[%s1 + $0x98] sm:$0xff]
  %v95 = vld [vmem:[%s1 + $0xa0] sm:$0xff]
  %v96 = vld [vmem:[%s1 + $0xa8] sm:$0xff]
  %v97 = vld [vmem:[%s1 + $0xb0] sm:$0xff]
  %v98 = vld [vmem:[%s1 + $0xb8] sm:$0xff]
  %v99 = vld [vmem:[%s1 + $0xc0] sm:$0xff]
  %v100 = vld [vmem:[%s1 + $0xc8] sm:$0xff]
  %v101 = vld [vmem:[%s1 + $0xd0] sm:$0xff]
  %v102 = vld [vmem:[%s1 + $0xd8] sm:$0xff]
  %v103 = vld [vmem:[%s1 + $0xe0] sm:$0xff]
  %v104 = vld [vmem:[%s1 + $0xe8] sm:$0xff]
  %v105 = vld [vmem:[%s1 + $0xf0] sm:$0xff]
  %v106 = vld [vmem:[%s1 + $0xf8] sm:$0xff]
  %v107 = vld [vmem:[%s1 + $0x100] sm:$0xff]
  %v108 = vld [vmem:[%s1 + $0x108] sm:$0xff]
  %v109 = vld [vmem:[%s1 + $0x110] sm:$0xff]
  %v110 = vld [vmem:[%s1 + $0x118] sm:$0xff]
  %v111 = vld [vmem:[%s1 + $0x120] sm:$0xff]
  %v112 = vld [vmem:[%s1 + $0x128] sm:$0xff]
  %v113 = vld [vmem:[%s1 + $0x130] sm:$0xff]
  %v114 = vld [vmem:[%s1 + $0x138] sm:$0xff]
  %v115 = vld [vmem:[%s1 + $0x140] sm:$0xff]
  %v116 = vld [vmem:[%s1 + $0x148] sm:$0xff]
  %v117 = vld [vmem:[%s1 + $0x150] sm:$0xff]
  %v118 = vld [vmem:[%s1 + $0x158] sm:$0xff]
  %v119 = vld [vmem:[%s1 + $0x160] sm:$0xff]
  %v120 = vld [vmem:[%s1 + $0x168] sm:$0xff]
  %v121 = vld [vmem:[%s1 + $0x170] sm:$0xff]
  %v122 = vld [vmem:[%s1 + $0x178] sm:$0xff]
  %v123 = vld [vmem:[%s1 + $0x180] sm:$0xff]
  %v124 = vld [vmem:[%s1 + $0x188] sm:$0xff]
  %v125 = vld [vmem:[%s1 + $0x190] sm:$0xff]
  %v126 = vld [vmem:[%s1 + $0x198] sm:$0xff]
  %v127 = vld [vmem:[%s1 + $0x1a0] sm:$0xff]
  %v128 = vld [vmem:[%s1 + $0x1a8] sm:$0xff]
  %v129 = vld [vmem:[%s1 + $0x1b0] sm:$0xff]
  %v130 = vld [vmem:[%s1 + $0x1b8] sm:$0xff]
  %v131 = vld [vmem:[%s1 + $0x1c0] sm:$0xff]
  %v132 = vld [vmem:[%s1 + $0x1c8] sm:$0xff]
  %v133 = vld [vmem:[%s1 + $0x1d0] sm:$0xff]
  %v134 = vld [vmem:[%s1 + $0x1d8] sm:$0xff]
  %v135 = vld [vmem:[%s1 + $0x1e0] sm:$0xff]
  %v136 = vld [vmem:[%s1 + $0x1e8] sm:$0xff]
  %v137 = vld [vmem:[%s1 + $0x1f0] sm:$0xff]
  %v138 = vld [vmem:[%s1 + $0x1f8] sm:$0xff]
  %v139 = vld [vmem:[%s1 + $0x200] sm:$0xff]
  %v140 = vld [vmem:[%s1 + $0x208] sm:$0xff]
  %v141 = vld [vmem:[%s1 + $0x210] sm:$0xff]
  %v142 = vld [vmem:[%s1 + $0x218] sm:$0xff]
  %v143 = vld [vmem:[%s1 + $0x220] sm:$0xff]
  %v144 = vld [vmem:[%s1 + $0x228] sm:$0xff]
  %v145 = vld [vmem:[%s1 + $0x230] sm:$0xff]
  %v146 = vld [vmem:[%s1 + $0x238] sm:$0xff]
  %v147 = vld [vmem:[%s1 + $0x240] sm:$0xff]
  %v148 = vld [vmem:[%s1 + $0x248] sm:$0xff]
  %v149 = vld [vmem:[%s1 + $0x250] sm:$0xff]
  %v150 = vld [vmem:[%s1 + $0x258] sm:$0xff]
  %v151 = vld [vmem:[%s1 + $0x260] sm:$0xff]
  %v152 = vld [vmem:[%s1 + $0x268] sm:$0xff]
  %v153 = vld [vmem:[%s1 + $0x270] sm:$0xff]
  %v154 = vld [vmem:[%s1 + $0x278] sm:$0xff]
  %v167 = vunpack.c.l.b16 %v63
  %v168 = vunpack.c.h.b16 %v63
  %v169 = vunpack.c.l.b16 %v64
  %v170 = vunpack.c.h.b16 %v64
  %v171 = vunpack.c.l.b16 %v65
  %v172 = vunpack.c.l.b16 %v66
  %v173 = vunpack.c.h.b16 %v66
  %v174 = vunpack.c.l.b16 %v67
  %v175 = vunpack.c.h.b16 %v67
  %v176 = vunpack.c.l.b16 %v68
  %v177 = vunpack.c.l.b16 %v69
  %v178 = vunpack.c.h.b16 %v69
  %v179 = vunpack.c.l.b16 %v70
  %v180 = vunpack.c.h.b16 %v70
  %v181 = vunpack.c.l.b16 %v71
  %v182 = vunpack.c.l.b16 %v72
  %v183 = vunpack.c.h.b16 %v72
  %v184 = vunpack.c.l.b16 %v73
  %v185 = vunpack.c.h.b16 %v73
  %v186 = vunpack.c.l.b16 %v74
  %v187 = vpack.c.b16 %v172, %v167
  %v188 = vpack.c.b16 %v173, %v168
  %v189 = vpack.c.b16 %v174, %v169
  %v190 = vpack.c.b16 %v175, %v170
  %v191 = vpack.c.b16 %v176, %v171
  %v192 = vpack.c.b16 %v182, %v177
  %v193 = vpack.c.b16 %v183, %v178
  %v194 = vpack.c.b16 %v184, %v179
  %v195 = vpack.c.b16 %v185, %v180
  %v196 = vpack.c.b16 %v186, %v181
  %v287 = vunpack.c.l.b16 %v75
  %v288 = vunpack.c.h.b16 %v75
  %v289 = vunpack.c.l.b16 %v76
  %v290 = vunpack.c.h.b16 %v76
  %v291 = vunpack.c.l.b16 %v77
  %v292 = vunpack.c.h.b16 %v77
  %v293 = vunpack.c.l.b16 %v78
  %v294 = vunpack.c.h.b16 %v78
  %v295 = vunpack.c.l.b16 %v79
  %v296 = vunpack.c.h.b16 %v79
  %v297 = vunpack.c.l.b16 %v80
  %v298 = vunpack.c.h.b16 %v80
  %v299 = vunpack.c.l.b16 %v81
  %v300 = vunpack.c.h.b16 %v81
  %v301 = vunpack.c.l.b16 %v82
  %v302 = vunpack.c.h.b16 %v82
  %v303 = vunpack.c.l.b16 %v83
  %v304 = vunpack.c.h.b16 %v83
  %v305 = vunpack.c.l.b16 %v84
  %v306 = vunpack.c.h.b16 %v84
  %v307 = vunpack.c.l.b16 %v85
  %v308 = vunpack.c.h.b16 %v85
  %v309 = vunpack.c.l.b16 %v86
  %v310 = vunpack.c.h.b16 %v86
  %v311 = vunpack.c.l.b16 %v87
  %v312 = vunpack.c.h.b16 %v87
  %v313 = vunpack.c.l.b16 %v88
  %v314 = vunpack.c.h.b16 %v88
  %v315 = vunpack.c.l.b16 %v89
  %v316 = vunpack.c.h.b16 %v89
  %v317 = vunpack.c.l.b16 %v90
  %v318 = vunpack.c.h.b16 %v90
  %v319 = vunpack.c.l.b16 %v91
  %v320 = vunpack.c.h.b16 %v91
  %v321 = vunpack.c.l.b16 %v92
  %v322 = vunpack.c.h.b16 %v92
  %v323 = vunpack.c.l.b16 %v93
  %v324 = vunpack.c.h.b16 %v93
  %v325 = vunpack.c.l.b16 %v94
  %v326 = vunpack.c.h.b16 %v94
  %v327 = vunpack.c.l.b16 %v95
  %v328 = vunpack.c.h.b16 %v95
  %v329 = vunpack.c.l.b16 %v96
  %v330 = vunpack.c.h.b16 %v96
  %v331 = vunpack.c.l.b16 %v97
  %v332 = vunpack.c.h.b16 %v97
  %v333 = vunpack.c.l.b16 %v98
  %v334 = vunpack.c.h.b16 %v98
  %v335 = vunpack.c.l.b16 %v99
  %v336 = vunpack.c.h.b16 %v99
  %v337 = vunpack.c.l.b16 %v100
  %v338 = vunpack.c.h.b16 %v100
  %v339 = vunpack.c.l.b16 %v101
  %v340 = vunpack.c.h.b16 %v101
  %v341 = vunpack.c.l.b16 %v102
  %v342 = vunpack.c.h.b16 %v102
  %v343 = vunpack.c.l.b16 %v103
  %v344 = vunpack.c.h.b16 %v103
  %v345 = vunpack.c.l.b16 %v104
  %v346 = vunpack.c.h.b16 %v104
  %v347 = vunpack.c.l.b16 %v105
  %v348 = vunpack.c.h.b16 %v105
  %v349 = vunpack.c.l.b16 %v106
  %v350 = vunpack.c.h.b16 %v106
  %v351 = vunpack.c.l.b16 %v107
  %v352 = vunpack.c.h.b16 %v107
  %v353 = vunpack.c.l.b16 %v108
  %v354 = vunpack.c.h.b16 %v108
  %v355 = vunpack.c.l.b16 %v109
  %v356 = vunpack.c.h.b16 %v109
  %v357 = vunpack.c.l.b16 %v110
  %v358 = vunpack.c.h.b16 %v110
  %v359 = vunpack.c.l.b16 %v111
  %v360 = vunpack.c.h.b16 %v111
  %v361 = vunpack.c.l.b16 %v112
  %v362 = vunpack.c.h.b16 %v112
  %v363 = vunpack.c.l.b16 %v113
  %v364 = vunpack.c.h.b16 %v113
  %v365 = vunpack.c.l.b16 %v114
  %v366 = vunpack.c.h.b16 %v114
  %v367 = vunpack.c.l.b16 %v115
  %v368 = vunpack.c.h.b16 %v115
  %v369 = vunpack.c.l.b16 %v116
  %v370 = vunpack.c.h.b16 %v116
  %v371 = vunpack.c.l.b16 %v117
  %v372 = vunpack.c.h.b16 %v117
  %v373 = vunpack.c.l.b16 %v118
  %v374 = vunpack.c.h.b16 %v118
  %v375 = vunpack.c.l.b16 %v119
  %v376 = vunpack.c.h.b16 %v119
  %v377 = vunpack.c.l.b16 %v120
  %v378 = vunpack.c.h.b16 %v120
  %v379 = vunpack.c.l.b16 %v121
  %v380 = vunpack.c.h.b16 %v121
  %v381 = vunpack.c.l.b16 %v122
  %v382 = vunpack.c.h.b16 %v122
  %v383 = vunpack.c.l.b16 %v123
  %v384 = vunpack.c.h.b16 %v123
  %v385 = vunpack.c.l.b16 %v124
  %v386 = vunpack.c.h.b16 %v124
  %v387 = vunpack.c.l.b16 %v125
  %v388 = vunpack.c.h.b16 %v125
  %v389 = vunpack.c.l.b16 %v126
  %v390 = vunpack.c.h.b16 %v126
  %v391 = vunpack.c.l.b16 %v127
  %v392 = vunpack.c.h.b16 %v127
  %v393 = vunpack.c.l.b16 %v128
  %v394 = vunpack.c.h.b16 %v128
  %v395 = vunpack.c.l.b16 %v129
  %v396 = vunpack.c.h.b16 %v129
  %v397 = vunpack.c.l.b16 %v130
  %v398 = vunpack.c.h.b16 %v130
  %v399 = vunpack.c.l.b16 %v131
  %v400 = vunpack.c.h.b16 %v131
  %v401 = vunpack.c.l.b16 %v132
  %v402 = vunpack.c.h.b16 %v132
  %v403 = vunpack.c.l.b16 %v133
  %v404 = vunpack.c.h.b16 %v133
  %v405 = vunpack.c.l.b16 %v134
  %v406 = vunpack.c.h.b16 %v134
  %v407 = vunpack.c.l.b16 %v135
  %v408 = vunpack.c.h.b16 %v135
  %v409 = vunpack.c.l.b16 %v136
  %v410 = vunpack.c.h.b16 %v136
  %v411 = vunpack.c.l.b16 %v137
  %v412 = vunpack.c.h.b16 %v137
  %v413 = vunpack.c.l.b16 %v138
  %v414 = vunpack.c.h.b16 %v138
  %v415 = vunpack.c.l.b16 %v139
  %v416 = vunpack.c.h.b16 %v139
  %v417 = vunpack.c.l.b16 %v140
  %v418 = vunpack.c.h.b16 %v140
  %v419 = vunpack.c.l.b16 %v141
  %v420 = vunpack.c.h.b16 %v141
  %v421 = vunpack.c.l.b16 %v142
  %v422 = vunpack.c.h.b16 %v142
  %v423 = vunpack.c.l.b16 %v143
  %v424 = vunpack.c.h.b16 %v143
  %v425 = vunpack.c.l.b16 %v144
  %v426 = vunpack.c.h.b16 %v144
  %v427 = vunpack.c.l.b16 %v145
  %v428 = vunpack.c.h.b16 %v145
  %v429 = vunpack.c.l.b16 %v146
  %v430 = vunpack.c.h.b16 %v146
  %v431 = vunpack.c.l.b16 %v147
  %v432 = vunpack.c.h.b16 %v147
  %v433 = vunpack.c.l.b16 %v148
  %v434 = vunpack.c.h.b16 %v148
  %v435 = vunpack.c.l.b16 %v149
  %v436 = vunpack.c.h.b16 %v149
  %v437 = vunpack.c.l.b16 %v150
  %v438 = vunpack.c.h.b16 %v150
  %v439 = vunpack.c.l.b16 %v151
  %v440 = vunpack.c.h.b16 %v151
  %v441 = vunpack.c.l.b16 %v152
  %v442 = vunpack.c.h.b16 %v152
  %v443 = vunpack.c.l.b16 %v153
  %v444 = vunpack.c.h.b16 %v153
  %v445 = vunpack.c.l.b16 %v154
  %v446 = vunpack.c.h.b16 %v154
  %v447 = vpack.c.b16 %v289, %v287
  %v448 = vpack.c.b16 %v290, %v288
  %v449 = vpack.c.b16 %v293, %v291
  %v450 = vpack.c.b16 %v294, %v292
  %v451 = vpack.c.b16 %v297, %v295
  %v452 = vpack.c.b16 %v298, %v296
  %v453 = vpack.c.b16 %v301, %v299
  %v454 = vpack.c.b16 %v302, %v300
  %v455 = vpack.c.b16 %v305, %v303
  %v456 = vpack.c.b16 %v306, %v304
  %v457 = vpack.c.b16 %v309, %v307
  %v458 = vpack.c.b16 %v310, %v308
  %v459 = vpack.c.b16 %v313, %v311
  %v460 = vpack.c.b16 %v314, %v312
  %v461 = vpack.c.b16 %v317, %v315
  %v462 = vpack.c.b16 %v318, %v316
  %v463 = vpack.c.b16 %v321, %v319
  %v464 = vpack.c.b16 %v322, %v320
  %v465 = vpack.c.b16 %v325, %v323
  %v466 = vpack.c.b16 %v326, %v324
  %v467 = vpack.c.b16 %v329, %v327
  %v468 = vpack.c.b16 %v330, %v328
  %v469 = vpack.c.b16 %v333, %v331
  %v470 = vpack.c.b16 %v334, %v332
  %v471 = vpack.c.b16 %v337, %v335
  %v472 = vpack.c.b16 %v338, %v336
  %v473 = vpack.c.b16 %v341, %v339
  %v474 = vpack.c.b16 %v342, %v340
  %v475 = vpack.c.b16 %v345, %v343
  %v476 = vpack.c.b16 %v346, %v344
  %v477 = vpack.c.b16 %v349, %v347
  %v478 = vpack.c.b16 %v350, %v348
  %v479 = vpack.c.b16 %v353, %v351
  %v480 = vpack.c.b16 %v354, %v352
  %v481 = vpack.c.b16 %v357, %v355
  %v482 = vpack.c.b16 %v358, %v356
  %v483 = vpack.c.b16 %v361, %v359
  %v484 = vpack.c.b16 %v362, %v360
  %v485 = vpack.c.b16 %v365, %v363
  %v486 = vpack.c.b16 %v366, %v364
  %v487 = vpack.c.b16 %v369, %v367
  %v488 = vpack.c.b16 %v370, %v368
  %v489 = vpack.c.b16 %v373, %v371
  %v490 = vpack.c.b16 %v374, %v372
  %v491 = vpack.c.b16 %v377, %v375
  %v492 = vpack.c.b16 %v378, %v376
  %v493 = vpack.c.b16 %v381, %v379
  %v494 = vpack.c.b16 %v382, %v380
  %v495 = vpack.c.b16 %v385, %v383
  %v496 = vpack.c.b16 %v386, %v384
  %v497 = vpack.c.b16 %v389, %v387
  %v498 = vpack.c.b16 %v390, %v388
  %v499 = vpack.c.b16 %v393, %v391
  %v500 = vpack.c.b16 %v394, %v392
  %v501 = vpack.c.b16 %v397, %v395
  %v502 = vpack.c.b16 %v398, %v396
  %v503 = vpack.c.b16 %v401, %v399
  %v504 = vpack.c.b16 %v402, %v400
  %v505 = vpack.c.b16 %v405, %v403
  %v506 = vpack.c.b16 %v406, %v404
  %v507 = vpack.c.b16 %v409, %v407
  %v508 = vpack.c.b16 %v410, %v408
  %v509 = vpack.c.b16 %v413, %v411
  %v510 = vpack.c.b16 %v414, %v412
  %v511 = vpack.c.b16 %v417, %v415
  %v512 = vpack.c.b16 %v418, %v416
  %v513 = vpack.c.b16 %v421, %v419
  %v514 = vpack.c.b16 %v422, %v420
  %v515 = vpack.c.b16 %v425, %v423
  %v516 = vpack.c.b16 %v426, %v424
  %v517 = vpack.c.b16 %v429, %v427
  %v518 = vpack.c.b16 %v430, %v428
  %v519 = vpack.c.b16 %v433, %v431
  %v520 = vpack.c.b16 %v434, %v432
  %v521 = vpack.c.b16 %v437, %v435
  %v522 = vpack.c.b16 %v438, %v436
  %v523 = vpack.c.b16 %v441, %v439
  %v524 = vpack.c.b16 %v442, %v440
  %v525 = vpack.c.b16 %v445, %v443
  %v526 = vpack.c.b16 %v446, %v444
  %607 = vmatprep.subr.bf16.mxu0 %v448
  %608 = vmatpush1.bf16.msra.mxu0 %v447
  %609 = vmatprep.subr.bf16.mxu0 %v450
  %610 = vmatpush1.bf16.msra.mxu0 %v449
  %611 = vmatprep.subr.bf16.mxu0 %v452
  %612 = vmatpush1.bf16.msra.mxu0 %v451
  %613 = vmatprep.subr.bf16.mxu0 %v454
  %614 = vmatpush1.bf16.msra.mxu0 %v453
  %615 = vmatprep.subr.bf16.mxu0 %v456
  %616 = vmatpush1.bf16.msra.mxu0 %v455
  %617 = vmatprep.subr.bf16.mxu0 %v458
  %618 = vmatpush1.bf16.msra.mxu0 %v457
  %619 = vmatprep.subr.bf16.mxu0 %v460
  %620 = vmatpush1.bf16.msra.mxu0 %v459
  %621 = vmatprep.subr.bf16.mxu0 %v462
  %622 = vmatpush1.bf16.msra.mxu0 %v461
  %623 = vmatprep.subr.bf16.mxu0 %v464
  %624 = vmatpush1.bf16.msra.mxu0 %v463
  %625 = vmatprep.subr.bf16.mxu0 %v466
  %626 = vmatpush1.bf16.msra.mxu0 %v465
  %627 = vmatprep.subr.bf16.mxu0 %v468
  %628 = vmatpush1.bf16.msra.mxu0 %v467
  %629 = vmatprep.subr.bf16.mxu0 %v470
  %630 = vmatpush1.bf16.msra.mxu0 %v469
  %631 = vmatprep.subr.bf16.mxu0 %v472
  %632 = vmatpush1.bf16.msra.mxu0 %v471
  %633 = vmatprep.subr.bf16.mxu0 %v474
  %634 = vmatpush1.bf16.msra.mxu0 %v473
  %635 = vmatprep.subr.bf16.mxu0 %v476
  %636 = vmatpush1.bf16.msra.mxu0 %v475
  %637 = vmatprep.subr.bf16.mxu0 %v478
  %638 = vmatpush1.bf16.msra.mxu0 %v477
  %639 = vmatprep.mubr.bf16.mxu0 %v188
  %640 = vmatmul.mubr.bf16.gmra.mrb[0].mxu0 %v187
  %v641 = vpop.f32.mrb[0].mxu0
  %v642 = vadd.f32 0.0, %v641
  %v643 = vpop.f32.mrb[0].mxu0
  %v644 = vadd.f32 0.0, %v643
  %v645 = vpop.f32.mrb[0].mxu0
  %v646 = vadd.f32 0.0, %v645
  %v647 = vpop.f32.mrb[0].mxu0
  %v648 = vadd.f32 0.0, %v647
  %649 = vmatprep.mubr.bf16.mxu0 %v193
  %650 = vmatmul.mubr.bf16.gmra.mrb[0].mxu0 %v192
  %v651 = vpop.f32.mrb[0].mxu0
  %v652 = vadd.f32 0.0, %v651
  %v653 = vpop.f32.mrb[0].mxu0
  %v654 = vadd.f32 0.0, %v653
  %v655 = vpop.f32.mrb[0].mxu0
  %v656 = vadd.f32 0.0, %v655
  %v657 = vpop.f32.mrb[0].mxu0
  %v658 = vadd.f32 0.0, %v657
  %659 = vdwg.mxu0
  %660 = vmatprep.subr.bf16.mxu0 %v480
  %661 = vmatpush1.bf16.msra.mxu0 %v479
  %662 = vmatprep.subr.bf16.mxu0 %v482
  %663 = vmatpush1.bf16.msra.mxu0 %v481
  %664 = vmatprep.subr.bf16.mxu0 %v484
  %665 = vmatpush1.bf16.msra.mxu0 %v483
  %666 = vmatprep.subr.bf16.mxu0 %v486
  %667 = vmatpush1.bf16.msra.mxu0 %v485
  %668 = vmatprep.subr.bf16.mxu0 %v488
  %669 = vmatpush1.bf16.msra.mxu0 %v487
  %670 = vmatprep.subr.bf16.mxu0 %v490
  %671 = vmatpush1.bf16.msra.mxu0 %v489
  %672 = vmatprep.subr.bf16.mxu0 %v492
  %673 = vmatpush1.bf16.msra.mxu0 %v491
  %674 = vmatprep.subr.bf16.mxu0 %v494
  %675 = vmatpush1.bf16.msra.mxu0 %v493
  %676 = vmatprep.subr.bf16.mxu0 %v496
  %677 = vmatpush1.bf16.msra.mxu0 %v495
  %678 = vmatprep.subr.bf16.mxu0 %v498
  %679 = vmatpush1.bf16.msra.mxu0 %v497
  %680 = vmatprep.subr.bf16.mxu0 %v500
  %681 = vmatpush1.bf16.msra.mxu0 %v499
  %682 = vmatprep.subr.bf16.mxu0 %v502
  %683 = vmatpush1.bf16.msra.mxu0 %v501
  %684 = vmatprep.subr.bf16.mxu0 %v504
  %685 = vmatpush1.bf16.msra.mxu0 %v503
  %686 = vmatprep.subr.bf16.mxu0 %v506
  %687 = vmatpush1.bf16.msra.mxu0 %v505
  %688 = vmatprep.subr.bf16.mxu0 %v508
  %689 = vmatpush1.bf16.msra.mxu0 %v507
  %690 = vmatprep.subr.bf16.mxu0 %v510
  %691 = vmatpush1.bf16.msra.mxu0 %v509
  %692 = vmatprep.mubr.bf16.mxu0 %v190
  %693 = vmatmul.mubr.bf16.gmra.mrb[0].mxu0 %v189
  %v694 = vpop.f32.mrb[0].mxu0
  %v695 = vadd.f32 %v642, %v694
  %v696 = vpop.f32.mrb[0].mxu0
  %v697 = vadd.f32 %v644, %v696
  %v698 = vpop.f32.mrb[0].mxu0
  %v699 = vadd.f32 %v646, %v698
  %v700 = vpop.f32.mrb[0].mxu0
  %v701 = vadd.f32 %v648, %v700
  %702 = vmatprep.mubr.bf16.mxu0 %v195
  %703 = vmatmul.mubr.bf16.gmra.mrb[0].mxu0 %v194
  %v704 = vpop.f32.mrb[0].mxu0
  %v705 = vadd.f32 %v652, %v704
  %v706 = vpop.f32.mrb[0].mxu0
  %v707 = vadd.f32 %v654, %v706
  %v708 = vpop.f32.mrb[0].mxu0
  %v709 = vadd.f32 %v656, %v708
  %v710 = vpop.f32.mrb[0].mxu0
  %v711 = vadd.f32 %v658, %v710
  %712 = vdwg.mxu0
  %713 = vmatprep.subr.bf16.mxu0 %v512
  %714 = vmatpush1.bf16.msra.mxu0 %v511
  %715 = vmatprep.subr.bf16.mxu0 %v514
  %716 = vmatpush1.bf16.msra.mxu0 %v513
  %717 = vmatprep.subr.bf16.mxu0 %v516
  %718 = vmatpush1.bf16.msra.mxu0 %v515
  %719 = vmatprep.subr.bf16.mxu0 %v518
  %720 = vmatpush1.bf16.msra.mxu0 %v517
  %721 = vmatprep.subr.bf16.mxu0 %v520
  %722 = vmatpush1.bf16.msra.mxu0 %v519
  %723 = vmatprep.subr.bf16.mxu0 %v522
  %724 = vmatpush1.bf16.msra.mxu0 %v521
  %725 = vmatprep.subr.bf16.mxu0 %v524
  %726 = vmatpush1.bf16.msra.mxu0 %v523
  %727 = vmatprep.subr.bf16.mxu0 %v526
  %728 = vmatpush1.bf16.msra.mxu0 %v525
  %729 = vmatprep.subr.bf16.mxu0 0
  %730 = vmatpush1.bf16.msra.mxu0 0
  %731 = vmatprep.subr.bf16.mxu0 0
  %732 = vmatpush1.bf16.msra.mxu0 0
  %733 = vmatprep.subr.bf16.mxu0 0
  %734 = vmatpush1.bf16.msra.mxu0 0
  %735 = vmatprep.subr.bf16.mxu0 0
  %736 = vmatpush1.bf16.msra.mxu0 0
  %737 = vmatprep.subr.bf16.mxu0 0
  %738 = vmatpush1.bf16.msra.mxu0 0
  %739 = vmatprep.subr.bf16.mxu0 0
  %740 = vmatpush1.bf16.msra.mxu0 0
  %741 = vmatprep.subr.bf16.mxu0 0
  %742 = vmatpush1.bf16.msra.mxu0 0
  %743 = vmatprep.subr.bf16.mxu0 0
  %744 = vmatpush1.bf16.msra.mxu0 0
  %745 = vmatprep.mubr.bf16.mxu0 0
  %746 = vmatmul.mubr.bf16.gmra.mrb[0].mxu0 %v191
  %v747 = vpop.f32.mrb[0].mxu0
  %v748 = vadd.f32 %v695, %v747
  %v749 = vpop.f32.mrb[0].mxu0
  %v750 = vadd.f32 %v697, %v749
  %v751 = vpop.f32.mrb[0].mxu0
  %v752 = vadd.f32 %v699, %v751
  %v753 = vpop.f32.mrb[0].mxu0
  %v754 = vadd.f32 %v701, %v753
  %755 = vmatprep.mubr.bf16.mxu0 0
  %756 = vmatmul.mubr.bf16.gmra.mrb[0].mxu0 %v196
  %v757 = vpop.f32.mrb[0].mxu0
  %v758 = vadd.f32 %v705, %v757
  %v759 = vpop.f32.mrb[0].mxu0
  %v760 = vadd.f32 %v707, %v759
  %v761 = vpop.f32.mrb[0].mxu0
  %v762 = vadd.f32 %v709, %v761
  %v763 = vpop.f32.mrb[0].mxu0
  %v764 = vadd.f32 %v711, %v763
  %765 = vdwg.mxu0
  %v766 = vadd.f32 %v748, %v752
  %v767 = vadd.f32 %v766, %v758
  %v768 = vadd.f32 %v767, %v762
  %v769 = vrot.slane %v768, 4
  %v770 = vadd.f32 %v768, %v769
  %v771 = vrot.slane %v770, 2
  %v772 = vadd.f32 %v770, %v771
  %v773 = vrot.slane %v772, 1
  %v774 = vadd.f32 %v772, %v773
  %v775 = vadd.f32 %v750, %v754
  %v776 = vadd.f32 %v775, %v760
  %v777 = vadd.f32 %v776, %v764
  %v778 = vrot.slane %v777, 4
  %v779 = vadd.f32 %v777, %v778
  %v780 = vrot.slane %v779, 2
  %v781 = vadd.f32 %v779, %v780
  %v782 = vrot.slane %v781, 1
  %v783 = vadd.f32 %v781, %v782
  %v784 = vmul.f32 %v748, %v748
  %v785 = vmul.f32 %v750, %v750
  %v786 = vmul.f32 %v752, %v752
  %v787 = vmul.f32 %v754, %v754
  %v788 = vmul.f32 %v758, %v758
  %v789 = vmul.f32 %v760, %v760
  %v790 = vmul.f32 %v762, %v762
  %v791 = vmul.f32 %v764, %v764
  %v792 = vadd.f32 %v784, %v786
  %v793 = vadd.f32 %v792, %v788
  %v794 = vadd.f32 %v793, %v790
  %v795 = vrot.slane %v794, 4
  %v796 = vadd.f32 %v794, %v795
  %v797 = vrot.slane %v796, 2
  %v798 = vadd.f32 %v796, %v797
  %v799 = vrot.slane %v798, 1
  %v800 = vadd.f32 %v798, %v799
  %v801 = vadd.f32 %v785, %v787
  %v802 = vadd.f32 %v801, %v789
  %v803 = vadd.f32 %v802, %v791
  %v804 = vrot.slane %v803, 4
  %v805 = vadd.f32 %v803, %v804
  %v806 = vrot.slane %v805, 2
  %v807 = vadd.f32 %v805, %v806
  %v808 = vrot.slane %v807, 1
  %v809 = vadd.f32 %v807, %v808
  %vm810 = vcmask 1040384
  %v811 = vsel %vm810, %v774, %v800
  %v812 = vsel %vm810, %v783, %v809
  %v813 = vld [vmem:[%s2] sm:$0xff]
  %v814 = vld [vmem:[%s2 + $0x8] sm:$0xff]
  %v815 = vld [vmem:[%s2 + $0x10] sm:$0xff]
  %v816 = vld [vmem:[%s2 + $0x18] sm:$0xff]
  %v817 = vld [vmem:[%s2 + $0x20] sm:$0xff]
  %v818 = vld [vmem:[%s2 + $0x28] sm:$0xff]
  %v819 = vld [vmem:[%s2 + $0x30] sm:$0xff]
  %v820 = vld [vmem:[%s2 + $0x38] sm:$0xff]
  %v821 = vld [vmem:[%s2 + $0x40] sm:$0xff]
  %v822 = vld [vmem:[%s2 + $0x48] sm:$0xff]
  %v823 = vld [vmem:[%s2 + $0x50] sm:$0xff]
  %v824 = vld [vmem:[%s2 + $0x58] sm:$0xff]
  %v825 = vld [vmem:[%s2 + $0x60] sm:$0xff]
  %v826 = vld [vmem:[%s2 + $0x68] sm:$0xff]
  %v827 = vld [vmem:[%s2 + $0x70] sm:$0xff]
  %v828 = vld [vmem:[%s2 + $0x78] sm:$0xff]
  %v829 = vld [vmem:[%s2 + $0x80] sm:$0xff]
  %v830 = vld [vmem:[%s2 + $0x88] sm:$0xff]
  %v831 = vld [vmem:[%s2 + $0x90] sm:$0xff]
  %v832 = vld [vmem:[%s2 + $0x98] sm:$0xff]
  %v833 = vld [vmem:[%s2 + $0xa0] sm:$0xff]
  %v834 = vld [vmem:[%s2 + $0xa8] sm:$0xff]
  %v835 = vld [vmem:[%s2 + $0xb0] sm:$0xff]
  %v836 = vld [vmem:[%s2 + $0xb8] sm:$0xff]
  %v837 = vld [vmem:[%s2 + $0xc0] sm:$0xff]
  %v838 = vld [vmem:[%s2 + $0xc8] sm:$0xff]
  %v839 = vld [vmem:[%s2 + $0xd0] sm:$0xff]
  %v840 = vld [vmem:[%s2 + $0xd8] sm:$0xff]
  %v841 = vld [vmem:[%s2 + $0xe0] sm:$0xff]
  %v842 = vld [vmem:[%s2 + $0xe8] sm:$0xff]
  %v843 = vld [vmem:[%s2 + $0xf0] sm:$0xff]
  %v844 = vld [vmem:[%s2 + $0xf8] sm:$0xff]
  %845 = vmatprep.subr.mxu0 0.0
  %846 = vmatpush1.msra.mxu0 %v813
  %847 = vmatprep.subr.mxu0 0.0
  %848 = vmatpush1.msra.mxu0 %v814
  %849 = vmatprep.subr.mxu0 0.0
  %850 = vmatpush1.msra.mxu0 %v815
  %851 = vmatprep.subr.mxu0 0.0
  %852 = vmatpush1.msra.mxu0 %v816
  %853 = vmatprep.subr.mxu0 0.0
  %854 = vmatpush1.msra.mxu0 %v817
  %855 = vmatprep.subr.mxu0 0.0
  %856 = vmatpush1.msra.mxu0 %v818
  %857 = vmatprep.subr.mxu0 0.0
  %858 = vmatpush1.msra.mxu0 %v819
  %859 = vmatprep.subr.mxu0 0.0
  %860 = vmatpush1.msra.mxu0 %v820
  %861 = vmatprep.subr.mxu0 0.0
  %862 = vmatpush1.msra.mxu0 %v821
  %863 = vmatprep.subr.mxu0 0.0
  %864 = vmatpush1.msra.mxu0 %v822
  %865 = vmatprep.subr.mxu0 0.0
  %866 = vmatpush1.msra.mxu0 %v823
  %867 = vmatprep.subr.mxu0 0.0
  %868 = vmatpush1.msra.mxu0 %v824
  %869 = vmatprep.subr.mxu0 0.0
  %870 = vmatpush1.msra.mxu0 %v825
  %871 = vmatprep.subr.mxu0 0.0
  %872 = vmatpush1.msra.mxu0 %v826
  %873 = vmatprep.subr.mxu0 0.0
  %874 = vmatpush1.msra.mxu0 %v827
  %875 = vmatprep.subr.mxu0 0.0
  %876 = vmatpush1.msra.mxu0 %v828
  %877 = vmatprep.subr.mxu0 0.0
  %878 = vmatpush1.msra.mxu0 %v829
  %879 = vmatprep.subr.mxu0 0.0
  %880 = vmatpush1.msra.mxu0 %v830
  %881 = vmatprep.subr.mxu0 0.0
  %882 = vmatpush1.msra.mxu0 %v831
  %883 = vmatprep.subr.mxu0 0.0
  %884 = vmatpush1.msra.mxu0 %v832
  %885 = vmatprep.subr.mxu0 0.0
  %886 = vmatpush1.msra.mxu0 %v833
  %887 = vmatprep.subr.mxu0 0.0
  %888 = vmatpush1.msra.mxu0 %v834
  %889 = vmatprep.subr.mxu0 0.0
  %890 = vmatpush1.msra.mxu0 %v835
  %891 = vmatprep.subr.mxu0 0.0
  %892 = vmatpush1.msra.mxu0 %v836
  %893 = vmatprep.subr.mxu0 0.0
  %894 = vmatpush1.msra.mxu0 %v837
  %895 = vmatprep.subr.mxu0 0.0
  %896 = vmatpush1.msra.mxu0 %v838
  %897 = vmatprep.subr.mxu0 0.0
  %898 = vmatpush1.msra.mxu0 %v839
  %899 = vmatprep.subr.mxu0 0.0
  %900 = vmatpush1.msra.mxu0 %v840
  %901 = vmatprep.subr.mxu0 0.0
  %902 = vmatpush1.msra.mxu0 %v841
  %903 = vmatprep.subr.mxu0 0.0
  %904 = vmatpush1.msra.mxu0 %v842
  %905 = vmatprep.subr.mxu0 0.0
  %906 = vmatpush1.msra.mxu0 %v843
  %907 = vmatprep.subr.mxu0 0.0
  %908 = vmatpush1.msra.mxu0 %v844
  %909 = vmatprep.mubr.f32.mxu0 %v812
  %910 = vmatmul.mubr.f32.gmra.mrb[0].mxu0 %v811
  %v911 = vpop.f32.mrb[0].mxu0
  %v912 = vadd.f32 0.0, %v911
  %v913 = vpop.f32.mrb[0].mxu0
  %914 = vdwg.mxu0
  %v915 = vmul.f32 %v912, 0.001953125
  %v916 = vmul.f32 %v915, %v915
  %v918 = vrot.slane %v916, 7
  %v920 = vsub.f32 %v915, %v918
  %v921 = vld [vmem:[%s4] sm:$0x1]
  %v922 = vadd.f32 %v920, 1e-05
  %v923 = vrsqrt.pop %v922
  %v926 = vunpack.c.l.s4 1966171168
  %v927 = vunpack.c.0.s8 %v926
  %v928 = vlaneseq
  %v929 = vshrl.u32 %v928, 7
  %v930 = vsub.s32 %v927, %v929
  %v931 = vrot.slane %v923, %v930
  %v932 = vcombine.high %v931, %v931
  %v934 = vunpack.c.l.s4 1966171168
  %v935 = vunpack.c.0.s8 %v934
  %v936 = vlaneseq
  %v937 = vshrl.u32 %v936, 7
  %v938 = vsub.s32 %v935, %v937
  %v939 = vrot.slane %v932, %v938
  %v941 = vmul.f32 %v921, %v939
  %v942 = vld [vmem:[%s5] sm:$0x1]
  %v943 = vmul.f32 %v915, %v941
  %v944 = vsub.f32 %v942, %v943
  %v946 = vlaneseq
  %v947 = vshrl.u32 %v946, 7
  %v948 = vsub.s32 0, %v947
  %v949 = vrot.slane %v944, %v948
  %v951 = vsel %vm810, %v941, %v949
  %v952 = vld [vmem:[%s3] sm:$0xff]
  %v953 = vld [vmem:[%s3 + $0x8] sm:$0xff]
  %v954 = vld [vmem:[%s3 + $0x10] sm:$0xff]
  %v955 = vld [vmem:[%s3 + $0x18] sm:$0xff]
  %vm956 = vcmask 130048
  %v958 = vsel %vm956, %v951, 0
  %960 = vmatprep.subr.mxu0 %v953
  %961 = vmatpush1.msra.mxu0 %v952
  %962 = vmatprep.subr.mxu0 %v955
  %963 = vmatpush1.msra.mxu0 %v954
  %964 = vmatprep.subr.mxu0 0.0
  %965 = vmatpush1.msra.mxu0 0.0
  %966 = vmatprep.subr.mxu0 0.0
  %967 = vmatpush1.msra.mxu0 0.0
  %968 = vmatprep.subr.mxu0 0.0
  %969 = vmatpush1.msra.mxu0 0.0
  %970 = vmatprep.subr.mxu0 0.0
  %971 = vmatpush1.msra.mxu0 0.0
  %972 = vmatprep.subr.mxu0 0.0
  %973 = vmatpush1.msra.mxu0 0.0
  %974 = vmatprep.subr.mxu0 0.0
  %975 = vmatpush1.msra.mxu0 0.0
  %976 = vmatprep.subr.mxu0 0.0
  %977 = vmatpush1.msra.mxu0 0.0
  %978 = vmatprep.subr.mxu0 0.0
  %979 = vmatpush1.msra.mxu0 0.0
  %980 = vmatprep.subr.mxu0 0.0
  %981 = vmatpush1.msra.mxu0 0.0
  %982 = vmatprep.subr.mxu0 0.0
  %983 = vmatpush1.msra.mxu0 0.0
  %984 = vmatprep.subr.mxu0 0.0
  %985 = vmatpush1.msra.mxu0 0.0
  %986 = vmatprep.subr.mxu0 0.0
  %987 = vmatpush1.msra.mxu0 0.0
  %988 = vmatprep.subr.mxu0 0.0
  %989 = vmatpush1.msra.mxu0 0.0
  %990 = vmatprep.subr.mxu0 0.0
  %991 = vmatpush1.msra.mxu0 0.0
  %992 = vmatprep.subr.mxu0 0.0
  %993 = vmatpush1.msra.mxu0 0.0
  %994 = vmatprep.subr.mxu0 0.0
  %995 = vmatpush1.msra.mxu0 0.0
  %996 = vmatprep.subr.mxu0 0.0
  %997 = vmatpush1.msra.mxu0 0.0
  %998 = vmatprep.subr.mxu0 0.0
  %999 = vmatpush1.msra.mxu0 0.0
  %1000 = vmatprep.subr.mxu0 0.0
  %1001 = vmatpush1.msra.mxu0 0.0
  %1002 = vmatprep.subr.mxu0 0.0
  %1003 = vmatpush1.msra.mxu0 0.0
  %1004 = vmatprep.subr.mxu0 0.0
  %1005 = vmatpush1.msra.mxu0 0.0
  %1006 = vmatprep.subr.mxu0 0.0
  %1007 = vmatpush1.msra.mxu0 0.0
  %1008 = vmatprep.subr.mxu0 0.0
  %1009 = vmatpush1.msra.mxu0 0.0
  %1010 = vmatprep.subr.mxu0 0.0
  %1011 = vmatpush1.msra.mxu0 0.0
  %1012 = vmatprep.subr.mxu0 0.0
  %1013 = vmatpush1.msra.mxu0 0.0
  %1014 = vmatprep.subr.mxu0 0.0
  %1015 = vmatpush1.msra.mxu0 0.0
  %1016 = vmatprep.subr.mxu0 0.0
  %1017 = vmatpush1.msra.mxu0 0.0
  %1018 = vmatprep.subr.mxu0 0.0
  %1019 = vmatpush1.msra.mxu0 0.0
  %1020 = vmatprep.subr.mxu0 0.0
  %1021 = vmatpush1.msra.mxu0 0.0
  %1022 = vmatprep.subr.mxu0 0.0
  %1023 = vmatpush1.msra.mxu0 0.0
  %1024 = vmatprep.mubr.f32.mxu0 0.0
  %1025 = vmatmul.mubr.f32.gmra.mrb[0].mxu0 %v958
  %v1026 = vpop.f32.mrb[0].mxu0
  %v1027 = vadd.f32 0.0, %v1026
  %v1028 = vpop.f32.mrb[0].mxu0
  %v1029 = vadd.f32 0.0, %v1028
  %1030 = vdwg.mxu0
  %v1031 = vlaneseq
  %v1032 = vshrl.u32 %v1031, 7
  %v1033 = vsub.s32 0, %v1032
  %v1034 = vrot.slane %v1027, %v1033
  %v1035 = vlaneseq
  %v1036 = vshrl.u32 %v1035, 7
  %v1037 = vsub.s32 0, %v1036
  %v1038 = vrot.slane %v1029, %v1037
  %v1039 = vmul.f32 %v748, %v1034
  %v1040 = vmul.f32 %v750, %v1038
  %v1041 = vmul.f32 %v752, %v1034
  %v1042 = vmul.f32 %v754, %v1038
  %v1043 = vmul.f32 %v758, %v1034
  %v1044 = vmul.f32 %v760, %v1038
  %v1045 = vmul.f32 %v762, %v1034
  %v1046 = vmul.f32 %v764, %v1038
  %v1047 = vlaneseq
  %v1048 = vshrl.u32 %v1047, 7
  %v1049 = vsub.s32 1, %v1048
  %v1050 = vrot.slane %v1027, %v1049
  %v1051 = vlaneseq
  %v1052 = vshrl.u32 %v1051, 7
  %v1053 = vsub.s32 1, %v1052
  %v1054 = vrot.slane %v1029, %v1053
  %v1055 = vadd.f32 %v1039, %v1050
  %v1056 = vadd.f32 %v1040, %v1054
  %v1057 = vadd.f32 %v1041, %v1050
  %v1058 = vadd.f32 %v1042, %v1054
  %v1059 = vadd.f32 %v1043, %v1050
  %v1060 = vadd.f32 %v1044, %v1054
  %v1061 = vadd.f32 %v1045, %v1050
  %v1062 = vadd.f32 %v1046, %v1054
  %v1063 = vmax.f32 %v1055, 0.0
  %v1064 = vmax.f32 %v1056, 0.0
  %v1065 = vmax.f32 %v1057, 0.0
  %v1066 = vmax.f32 %v1058, 0.0
  %v1067 = vmax.f32 %v1059, 0.0
  %v1068 = vmax.f32 %v1060, 0.0
  %v1069 = vmax.f32 %v1061, 0.0
  %v1070 = vmax.f32 %v1062, 0.0
  %v1071 = vld [vmem:[%s6] sm:$0xf]
  %v1072 = vld [vmem:[%s6 + $0x4] sm:$0xf]
  %v1073 = vld [vmem:[%s6 + $0x8] sm:$0xf]
  %v1074 = vld [vmem:[%s6 + $0xc] sm:$0xf]
  %v1075 = vld [vmem:[%s6 + $0x10] sm:$0xf]
  %v1076 = vld [vmem:[%s6 + $0x14] sm:$0xf]
  %v1077 = vld [vmem:[%s6 + $0x18] sm:$0xf]
  %v1078 = vld [vmem:[%s6 + $0x1c] sm:$0xf]
  %v1079 = vld [vmem:[%s6 + $0x20] sm:$0xf]
  %v1080 = vld [vmem:[%s6 + $0x24] sm:$0xf]
  %v1081 = vpack.c.bf16 %v1065, %v1063
  %v1082 = vpack.c.bf16 %v1066, %v1064
  %v1083 = vpack.c.bf16 %v1069, %v1067
  %v1084 = vpack.c.bf16 %v1070, %v1068
  %v1095 = vunpack.c.l.b16 %v1071
  %v1096 = vunpack.c.l.b16 %v1072
  %v1097 = vunpack.c.l.b16 %v1073
  %v1098 = vunpack.c.l.b16 %v1074
  %v1099 = vunpack.c.l.b16 %v1075
  %v1100 = vunpack.c.l.b16 %v1076
  %v1101 = vunpack.c.l.b16 %v1077
  %v1102 = vunpack.c.l.b16 %v1078
  %v1103 = vunpack.c.l.b16 %v1079
  %v1104 = vunpack.c.l.b16 %v1080
  %v1105 = vpack.c.b16 %v1096, %v1095
  %v1106 = vpack.c.b16 %v1098, %v1097
  %v1107 = vpack.c.b16 %v1100, %v1099
  %v1108 = vpack.c.b16 %v1102, %v1101
  %v1109 = vpack.c.b16 %v1104, %v1103
  %vm1110 = vcmask 261120
  %v1112 = vsel %vm1110, %v1105, 0
  %v1115 = vsel %vm1110, %v1106, 0
  %v1118 = vsel %vm1110, %v1107, 0
  %v1121 = vsel %vm1110, %v1108, 0
  %v1124 = vsel %vm1110, %v1109, 0
  %1126 = vmatprep.subr.bf16.mxu0 %v1082
  %1127 = vmatpush1.bf16.msra.mxu0 %v1081
  %1128 = vmatprep.subr.bf16.mxu0 %v1084
  %1129 = vmatpush1.bf16.msra.mxu0 %v1083
  %1130 = vmatprep.subr.bf16.mxu0 0
  %1131 = vmatpush1.bf16.msra.mxu0 0
  %1132 = vmatprep.subr.bf16.mxu0 0
  %1133 = vmatpush1.bf16.msra.mxu0 0
  %1134 = vmatprep.subr.bf16.mxu0 0
  %1135 = vmatpush1.bf16.msra.mxu0 0
  %1136 = vmatprep.subr.bf16.mxu0 0
  %1137 = vmatpush1.bf16.msra.mxu0 0
  %1138 = vmatprep.subr.bf16.mxu0 0
  %1139 = vmatpush1.bf16.msra.mxu0 0
  %1140 = vmatprep.subr.bf16.mxu0 0
  %1141 = vmatpush1.bf16.msra.mxu0 0
  %1142 = vmatprep.subr.bf16.mxu0 0
  %1143 = vmatpush1.bf16.msra.mxu0 0
  %1144 = vmatprep.subr.bf16.mxu0 0
  %1145 = vmatpush1.bf16.msra.mxu0 0
  %1146 = vmatprep.subr.bf16.mxu0 0
  %1147 = vmatpush1.bf16.msra.mxu0 0
  %1148 = vmatprep.subr.bf16.mxu0 0
  %1149 = vmatpush1.bf16.msra.mxu0 0
  %1150 = vmatprep.subr.bf16.mxu0 0
  %1151 = vmatpush1.bf16.msra.mxu0 0
  %1152 = vmatprep.subr.bf16.mxu0 0
  %1153 = vmatpush1.bf16.msra.mxu0 0
  %1154 = vmatprep.subr.bf16.mxu0 0
  %1155 = vmatpush1.bf16.msra.mxu0 0
  %1156 = vmatprep.subr.bf16.mxu0 0
  %1157 = vmatpush1.bf16.msra.mxu0 0
  %1158 = vmatprep.mubr.bf16.mxu0 0
  %1159 = vmatmul.mubr.bf16.gmra.mrb[0].mxu0 %v1112
  %v1160 = vpop.f32.mrb[0].mxu0
  %v1161 = vadd.f32 0.0, %v1160
  %v1162 = vpop.f32.mrb[0].mxu0
  %v1163 = vadd.f32 0.0, %v1162
  %v1164 = vpop.f32.mrb[0].mxu0
  %v1165 = vadd.f32 0.0, %v1164
  %v1166 = vpop.f32.mrb[0].mxu0
  %v1167 = vadd.f32 0.0, %v1166
  %1168 = vmatprep.mubr.bf16.mxu0 0
  %1169 = vmatmul.mubr.bf16.gmra.mrb[0].mxu0 %v1115
  %v1170 = vpop.f32.mrb[0].mxu0
  %v1171 = vadd.f32 0.0, %v1170
  %v1172 = vpop.f32.mrb[0].mxu0
  %v1173 = vadd.f32 0.0, %v1172
  %v1174 = vpop.f32.mrb[0].mxu0
  %v1175 = vadd.f32 0.0, %v1174
  %v1176 = vpop.f32.mrb[0].mxu0
  %v1177 = vadd.f32 0.0, %v1176
  %1178 = vmatprep.mubr.bf16.mxu0 0
  %1179 = vmatmul.mubr.bf16.gmra.mrb[0].mxu0 %v1118
  %v1180 = vpop.f32.mrb[0].mxu0
  %v1181 = vadd.f32 0.0, %v1180
  %v1182 = vpop.f32.mrb[0].mxu0
  %v1183 = vadd.f32 0.0, %v1182
  %v1184 = vpop.f32.mrb[0].mxu0
  %v1185 = vadd.f32 0.0, %v1184
  %v1186 = vpop.f32.mrb[0].mxu0
  %v1187 = vadd.f32 0.0, %v1186
  %1188 = vmatprep.mubr.bf16.mxu0 0
  %1189 = vmatmul.mubr.bf16.gmra.mrb[0].mxu0 %v1121
  %v1190 = vpop.f32.mrb[0].mxu0
  %v1191 = vadd.f32 0.0, %v1190
  %v1192 = vpop.f32.mrb[0].mxu0
  %v1193 = vadd.f32 0.0, %v1192
  %v1194 = vpop.f32.mrb[0].mxu0
  %v1195 = vadd.f32 0.0, %v1194
  %v1196 = vpop.f32.mrb[0].mxu0
  %v1197 = vadd.f32 0.0, %v1196
  %1198 = vmatprep.mubr.bf16.mxu0 0
  %1199 = vmatmul.mubr.bf16.gmra.mrb[0].mxu0 %v1124
  %v1200 = vpop.f32.mrb[0].mxu0
  %v1201 = vadd.f32 0.0, %v1200
  %v1202 = vpop.f32.mrb[0].mxu0
  %v1203 = vadd.f32 0.0, %v1202
  %v1204 = vpop.f32.mrb[0].mxu0
  %v1205 = vadd.f32 0.0, %v1204
  %v1206 = vpop.f32.mrb[0].mxu0
  %v1207 = vadd.f32 0.0, %v1206
  %1208 = vdwg.mxu0
  %v1209 = vpack.c.bf16 %v1165, %v1161
  %v1210 = vpack.c.bf16 %v1167, %v1163
  %v1211 = vpack.c.bf16 %v1175, %v1171
  %v1212 = vpack.c.bf16 %v1177, %v1173
  %v1213 = vpack.c.bf16 %v1185, %v1181
  %v1214 = vpack.c.bf16 %v1187, %v1183
  %v1215 = vpack.c.bf16 %v1195, %v1191
  %v1216 = vpack.c.bf16 %v1197, %v1193
  %v1217 = vpack.c.bf16 %v1205, %v1201
  %v1218 = vpack.c.bf16 %v1207, %v1203
  %v1219 = vld [vmem:[%s7] sm:$0xff]
  %v1220 = vld [vmem:[%s7 + $0x8] sm:$0xff]
  %v1221 = vld [vmem:[%s7 + $0x10] sm:$0xff]
  %v1222 = vld [vmem:[%s7 + $0x18] sm:$0xff]
  %v1223 = vld [vmem:[%s7 + $0x20] sm:$0xff]
  %v1224 = vld [vmem:[%s7 + $0x28] sm:$0xff]
  %v1225 = vld [vmem:[%s7 + $0x30] sm:$0xff]
  %v1226 = vld [vmem:[%s7 + $0x38] sm:$0xff]
  %v1227 = vld [vmem:[%s7 + $0x40] sm:$0xff]
  %v1228 = vld [vmem:[%s7 + $0x48] sm:$0xff]
  %v1229 = vld [vmem:[%s7 + $0x50] sm:$0xff]
  %v1230 = vld [vmem:[%s7 + $0x58] sm:$0xff]
  %v1231 = vld [vmem:[%s7 + $0x60] sm:$0xff]
  %v1232 = vld [vmem:[%s7 + $0x68] sm:$0xff]
  %v1233 = vld [vmem:[%s7 + $0x70] sm:$0xff]
  %v1234 = vld [vmem:[%s7 + $0x78] sm:$0xff]
  %v1235 = vld [vmem:[%s7 + $0x80] sm:$0xff]
  %v1236 = vld [vmem:[%s7 + $0x88] sm:$0xff]
  %v1237 = vld [vmem:[%s7 + $0x90] sm:$0xff]
  %v1238 = vld [vmem:[%s7 + $0x98] sm:$0xff]
  %v1239 = vld [vmem:[%s7 + $0xa0] sm:$0xff]
  %v1240 = vld [vmem:[%s7 + $0xa8] sm:$0xff]
  %v1241 = vld [vmem:[%s7 + $0xb0] sm:$0xff]
  %v1242 = vld [vmem:[%s7 + $0xb8] sm:$0xff]
  %v1243 = vld [vmem:[%s7 + $0xc0] sm:$0xff]
  %v1244 = vld [vmem:[%s7 + $0xc8] sm:$0xff]
  %v1245 = vld [vmem:[%s7 + $0xd0] sm:$0xff]
  %v1246 = vld [vmem:[%s7 + $0xd8] sm:$0xff]
  %v1247 = vld [vmem:[%s7 + $0xe0] sm:$0xff]
  %v1248 = vld [vmem:[%s7 + $0xe8] sm:$0xff]
  %v1249 = vld [vmem:[%s7 + $0xf0] sm:$0xff]
  %v1250 = vld [vmem:[%s7 + $0xf8] sm:$0xff]
  %v1251 = vld [vmem:[%s7 + $0x100] sm:$0xff]
  %v1252 = vld [vmem:[%s7 + $0x108] sm:$0xff]
  %v1253 = vld [vmem:[%s7 + $0x110] sm:$0xff]
  %v1254 = vld [vmem:[%s7 + $0x118] sm:$0xff]
  %v1255 = vld [vmem:[%s7 + $0x120] sm:$0xff]
  %v1256 = vld [vmem:[%s7 + $0x128] sm:$0xff]
  %v1257 = vld [vmem:[%s7 + $0x130] sm:$0xff]
  %v1258 = vld [vmem:[%s7 + $0x138] sm:$0xff]
  %v1259 = vld [vmem:[%s7 + $0x140] sm:$0xff]
  %v1260 = vld [vmem:[%s7 + $0x148] sm:$0xff]
  %v1261 = vld [vmem:[%s7 + $0x150] sm:$0xff]
  %v1262 = vld [vmem:[%s7 + $0x158] sm:$0xff]
  %v1263 = vld [vmem:[%s7 + $0x160] sm:$0xff]
  %v1264 = vld [vmem:[%s7 + $0x168] sm:$0xff]
  %v1265 = vld [vmem:[%s7 + $0x170] sm:$0xff]
  %v1266 = vld [vmem:[%s7 + $0x178] sm:$0xff]
  %v1267 = vld [vmem:[%s7 + $0x180] sm:$0xff]
  %v1268 = vld [vmem:[%s7 + $0x188] sm:$0xff]
  %v1269 = vld [vmem:[%s7 + $0x190] sm:$0xff]
  %v1270 = vld [vmem:[%s7 + $0x198] sm:$0xff]
  %v1271 = vld [vmem:[%s7 + $0x1a0] sm:$0xff]
  %v1272 = vld [vmem:[%s7 + $0x1a8] sm:$0xff]
  %v1273 = vld [vmem:[%s7 + $0x1b0] sm:$0xff]
  %v1274 = vld [vmem:[%s7 + $0x1b8] sm:$0xff]
  %v1275 = vld [vmem:[%s7 + $0x1c0] sm:$0xff]
  %v1276 = vld [vmem:[%s7 + $0x1c8] sm:$0xff]
  %v1277 = vld [vmem:[%s7 + $0x1d0] sm:$0xff]
  %v1278 = vld [vmem:[%s7 + $0x1d8] sm:$0xff]
  %v1279 = vld [vmem:[%s7 + $0x1e0] sm:$0xff]
  %v1280 = vld [vmem:[%s7 + $0x1e8] sm:$0xff]
  %v1281 = vld [vmem:[%s7 + $0x1f0] sm:$0xff]
  %v1282 = vld [vmem:[%s7 + $0x1f8] sm:$0xff]
  %v1283 = vld [vmem:[%s7 + $0x200] sm:$0xff]
  %v1284 = vld [vmem:[%s7 + $0x208] sm:$0xff]
  %v1285 = vld [vmem:[%s7 + $0x210] sm:$0xff]
  %v1286 = vld [vmem:[%s7 + $0x218] sm:$0xff]
  %v1287 = vld [vmem:[%s7 + $0x220] sm:$0xff]
  %v1288 = vld [vmem:[%s7 + $0x228] sm:$0xff]
  %v1289 = vld [vmem:[%s7 + $0x230] sm:$0xff]
  %v1290 = vld [vmem:[%s7 + $0x238] sm:$0xff]
  %v1291 = vld [vmem:[%s7 + $0x240] sm:$0xff]
  %v1292 = vld [vmem:[%s7 + $0x248] sm:$0xff]
  %v1293 = vld [vmem:[%s7 + $0x250] sm:$0xff]
  %v1294 = vld [vmem:[%s7 + $0x258] sm:$0xff]
  %v1295 = vld [vmem:[%s7 + $0x260] sm:$0xff]
  %v1296 = vld [vmem:[%s7 + $0x268] sm:$0xff]
  %v1297 = vld [vmem:[%s7 + $0x270] sm:$0xff]
  %v1298 = vld [vmem:[%s7 + $0x278] sm:$0xff]
  %v1299 = vld [vmem:[%s7 + $0x280] sm:$0xff]
  %v1300 = vld [vmem:[%s7 + $0x288] sm:$0xff]
  %v1301 = vld [vmem:[%s7 + $0x290] sm:$0xff]
  %v1302 = vld [vmem:[%s7 + $0x298] sm:$0xff]
  %v1303 = vld [vmem:[%s7 + $0x2a0] sm:$0xff]
  %v1304 = vld [vmem:[%s7 + $0x2a8] sm:$0xff]
  %v1305 = vld [vmem:[%s7 + $0x2b0] sm:$0xff]
  %v1306 = vld [vmem:[%s7 + $0x2b8] sm:$0xff]
  %v1307 = vld [vmem:[%s7 + $0x2c0] sm:$0xff]
  %v1308 = vld [vmem:[%s7 + $0x2c8] sm:$0xff]
  %v1309 = vld [vmem:[%s7 + $0x2d0] sm:$0xff]
  %v1310 = vld [vmem:[%s7 + $0x2d8] sm:$0xff]
  %v1311 = vld [vmem:[%s7 + $0x2e0] sm:$0xff]
  %v1312 = vld [vmem:[%s7 + $0x2e8] sm:$0xff]
  %v1313 = vld [vmem:[%s7 + $0x2f0] sm:$0xff]
  %v1314 = vld [vmem:[%s7 + $0x2f8] sm:$0xff]
  %v1315 = vld [vmem:[%s7 + $0x300] sm:$0xff]
  %v1316 = vld [vmem:[%s7 + $0x308] sm:$0xff]
  %v1317 = vld [vmem:[%s7 + $0x310] sm:$0xff]
  %v1318 = vld [vmem:[%s7 + $0x318] sm:$0xff]
  %v1319 = vld [vmem:[%s7 + $0x320] sm:$0xff]
  %v1320 = vld [vmem:[%s7 + $0x328] sm:$0xff]
  %v1321 = vld [vmem:[%s7 + $0x330] sm:$0xff]
  %v1322 = vld [vmem:[%s7 + $0x338] sm:$0xff]
  %v1323 = vld [vmem:[%s7 + $0x340] sm:$0xff]
  %v1324 = vld [vmem:[%s7 + $0x348] sm:$0xff]
  %v1325 = vld [vmem:[%s7 + $0x350] sm:$0xff]
  %v1326 = vld [vmem:[%s7 + $0x358] sm:$0xff]
  %v1327 = vld [vmem:[%s7 + $0x360] sm:$0xff]
  %v1328 = vld [vmem:[%s7 + $0x368] sm:$0xff]
  %v1329 = vld [vmem:[%s7 + $0x370] sm:$0xff]
  %v1330 = vld [vmem:[%s7 + $0x378] sm:$0xff]
  %v1331 = vld [vmem:[%s7 + $0x380] sm:$0xff]
  %v1332 = vld [vmem:[%s7 + $0x388] sm:$0xff]
  %v1333 = vld [vmem:[%s7 + $0x390] sm:$0xff]
  %v1334 = vld [vmem:[%s7 + $0x398] sm:$0xff]
  %v1335 = vld [vmem:[%s7 + $0x3a0] sm:$0xff]
  %v1336 = vld [vmem:[%s7 + $0x3a8] sm:$0xff]
  %v1337 = vld [vmem:[%s7 + $0x3b0] sm:$0xff]
  %v1338 = vld [vmem:[%s7 + $0x3b8] sm:$0xff]
  %v1339 = vld [vmem:[%s7 + $0x3c0] sm:$0xff]
  %v1340 = vld [vmem:[%s7 + $0x3c8] sm:$0xff]
  %v1341 = vld [vmem:[%s7 + $0x3d0] sm:$0xff]
  %v1342 = vld [vmem:[%s7 + $0x3d8] sm:$0xff]
  %v1343 = vld [vmem:[%s7 + $0x3e0] sm:$0xff]
  %v1344 = vld [vmem:[%s7 + $0x3e8] sm:$0xff]
  %v1345 = vld [vmem:[%s7 + $0x3f0] sm:$0xff]
  %v1346 = vld [vmem:[%s7 + $0x3f8] sm:$0xff]
  %v1347 = vld [vmem:[%s7 + $0x400] sm:$0xff]
  %v1348 = vld [vmem:[%s7 + $0x408] sm:$0xff]
  %v1349 = vld [vmem:[%s7 + $0x410] sm:$0xff]
  %v1350 = vld [vmem:[%s7 + $0x418] sm:$0xff]
  %v1351 = vld [vmem:[%s7 + $0x420] sm:$0xff]
  %v1352 = vld [vmem:[%s7 + $0x428] sm:$0xff]
  %v1353 = vld [vmem:[%s7 + $0x430] sm:$0xff]
  %v1354 = vld [vmem:[%s7 + $0x438] sm:$0xff]
  %v1355 = vld [vmem:[%s7 + $0x440] sm:$0xff]
  %v1356 = vld [vmem:[%s7 + $0x448] sm:$0xff]
  %v1357 = vld [vmem:[%s7 + $0x450] sm:$0xff]
  %v1358 = vld [vmem:[%s7 + $0x458] sm:$0xff]
  %v1359 = vld [vmem:[%s7 + $0x460] sm:$0xff]
  %v1360 = vld [vmem:[%s7 + $0x468] sm:$0xff]
  %v1361 = vld [vmem:[%s7 + $0x470] sm:$0xff]
  %v1362 = vld [vmem:[%s7 + $0x478] sm:$0xff]
  %v1363 = vld [vmem:[%s7 + $0x480] sm:$0xff]
  %v1364 = vld [vmem:[%s7 + $0x488] sm:$0xff]
  %v1365 = vld [vmem:[%s7 + $0x490] sm:$0xff]
  %v1366 = vld [vmem:[%s7 + $0x498] sm:$0xff]
  %v1367 = vld [vmem:[%s7 + $0x4a0] sm:$0xff]
  %v1368 = vld [vmem:[%s7 + $0x4a8] sm:$0xff]
  %v1369 = vld [vmem:[%s7 + $0x4b0] sm:$0xff]
  %v1370 = vld [vmem:[%s7 + $0x4b8] sm:$0xff]
  %v1371 = vld [vmem:[%s7 + $0x4c0] sm:$0xff]
  %v1372 = vld [vmem:[%s7 + $0x4c8] sm:$0xff]
  %v1373 = vld [vmem:[%s7 + $0x4d0] sm:$0xff]
  %v1374 = vld [vmem:[%s7 + $0x4d8] sm:$0xff]
  %v1375 = vld [vmem:[%s7 + $0x4e0] sm:$0xff]
  %v1376 = vld [vmem:[%s7 + $0x4e8] sm:$0xff]
  %v1377 = vld [vmem:[%s7 + $0x4f0] sm:$0xff]
  %v1378 = vld [vmem:[%s7 + $0x4f8] sm:$0xff]
  %v1539 = vunpack.c.l.b16 %v1219
  %v1540 = vunpack.c.h.b16 %v1219
  %v1541 = vunpack.c.l.b16 %v1220
  %v1542 = vunpack.c.h.b16 %v1220
  %v1543 = vunpack.c.l.b16 %v1221
  %v1544 = vunpack.c.h.b16 %v1221
  %v1545 = vunpack.c.l.b16 %v1222
  %v1546 = vunpack.c.h.b16 %v1222
  %v1547 = vunpack.c.l.b16 %v1223
  %v1548 = vunpack.c.h.b16 %v1223
  %v1549 = vunpack.c.l.b16 %v1224
  %v1550 = vunpack.c.h.b16 %v1224
  %v1551 = vunpack.c.l.b16 %v1225
  %v1552 = vunpack.c.h.b16 %v1225
  %v1553 = vunpack.c.l.b16 %v1226
  %v1554 = vunpack.c.h.b16 %v1226
  %v1555 = vunpack.c.l.b16 %v1227
  %v1556 = vunpack.c.h.b16 %v1227
  %v1557 = vunpack.c.l.b16 %v1228
  %v1558 = vunpack.c.h.b16 %v1228
  %v1559 = vunpack.c.l.b16 %v1229
  %v1560 = vunpack.c.h.b16 %v1229
  %v1561 = vunpack.c.l.b16 %v1230
  %v1562 = vunpack.c.h.b16 %v1230
  %v1563 = vunpack.c.l.b16 %v1231
  %v1564 = vunpack.c.h.b16 %v1231
  %v1565 = vunpack.c.l.b16 %v1232
  %v1566 = vunpack.c.h.b16 %v1232
  %v1567 = vunpack.c.l.b16 %v1233
  %v1568 = vunpack.c.h.b16 %v1233
  %v1569 = vunpack.c.l.b16 %v1234
  %v1570 = vunpack.c.h.b16 %v1234
  %v1571 = vunpack.c.l.b16 %v1235
  %v1572 = vunpack.c.h.b16 %v1235
  %v1573 = vunpack.c.l.b16 %v1236
  %v1574 = vunpack.c.h.b16 %v1236
  %v1575 = vunpack.c.l.b16 %v1237
  %v1576 = vunpack.c.h.b16 %v1237
  %v1577 = vunpack.c.l.b16 %v1238
  %v1578 = vunpack.c.h.b16 %v1238
  %v1579 = vunpack.c.l.b16 %v1239
  %v1580 = vunpack.c.h.b16 %v1239
  %v1581 = vunpack.c.l.b16 %v1240
  %v1582 = vunpack.c.h.b16 %v1240
  %v1583 = vunpack.c.l.b16 %v1241
  %v1584 = vunpack.c.h.b16 %v1241
  %v1585 = vunpack.c.l.b16 %v1242
  %v1586 = vunpack.c.h.b16 %v1242
  %v1587 = vunpack.c.l.b16 %v1243
  %v1588 = vunpack.c.h.b16 %v1243
  %v1589 = vunpack.c.l.b16 %v1244
  %v1590 = vunpack.c.h.b16 %v1244
  %v1591 = vunpack.c.l.b16 %v1245
  %v1592 = vunpack.c.h.b16 %v1245
  %v1593 = vunpack.c.l.b16 %v1246
  %v1594 = vunpack.c.h.b16 %v1246
  %v1595 = vunpack.c.l.b16 %v1247
  %v1596 = vunpack.c.h.b16 %v1247
  %v1597 = vunpack.c.l.b16 %v1248
  %v1598 = vunpack.c.h.b16 %v1248
  %v1599 = vunpack.c.l.b16 %v1249
  %v1600 = vunpack.c.h.b16 %v1249
  %v1601 = vunpack.c.l.b16 %v1250
  %v1602 = vunpack.c.h.b16 %v1250
  %v1603 = vunpack.c.l.b16 %v1251
  %v1604 = vunpack.c.h.b16 %v1251
  %v1605 = vunpack.c.l.b16 %v1252
  %v1606 = vunpack.c.h.b16 %v1252
  %v1607 = vunpack.c.l.b16 %v1253
  %v1608 = vunpack.c.h.b16 %v1253
  %v1609 = vunpack.c.l.b16 %v1254
  %v1610 = vunpack.c.h.b16 %v1254
  %v1611 = vunpack.c.l.b16 %v1255
  %v1612 = vunpack.c.h.b16 %v1255
  %v1613 = vunpack.c.l.b16 %v1256
  %v1614 = vunpack.c.h.b16 %v1256
  %v1615 = vunpack.c.l.b16 %v1257
  %v1616 = vunpack.c.h.b16 %v1257
  %v1617 = vunpack.c.l.b16 %v1258
  %v1618 = vunpack.c.h.b16 %v1258
  %v1619 = vunpack.c.l.b16 %v1259
  %v1620 = vunpack.c.h.b16 %v1259
  %v1621 = vunpack.c.l.b16 %v1260
  %v1622 = vunpack.c.h.b16 %v1260
  %v1623 = vunpack.c.l.b16 %v1261
  %v1624 = vunpack.c.h.b16 %v1261
  %v1625 = vunpack.c.l.b16 %v1262
  %v1626 = vunpack.c.h.b16 %v1262
  %v1627 = vunpack.c.l.b16 %v1263
  %v1628 = vunpack.c.h.b16 %v1263
  %v1629 = vunpack.c.l.b16 %v1264
  %v1630 = vunpack.c.h.b16 %v1264
  %v1631 = vunpack.c.l.b16 %v1265
  %v1632 = vunpack.c.h.b16 %v1265
  %v1633 = vunpack.c.l.b16 %v1266
  %v1634 = vunpack.c.h.b16 %v1266
  %v1635 = vunpack.c.l.b16 %v1267
  %v1636 = vunpack.c.h.b16 %v1267
  %v1637 = vunpack.c.l.b16 %v1268
  %v1638 = vunpack.c.h.b16 %v1268
  %v1639 = vunpack.c.l.b16 %v1269
  %v1640 = vunpack.c.h.b16 %v1269
  %v1641 = vunpack.c.l.b16 %v1270
  %v1642 = vunpack.c.h.b16 %v1270
  %v1643 = vunpack.c.l.b16 %v1271
  %v1644 = vunpack.c.h.b16 %v1271
  %v1645 = vunpack.c.l.b16 %v1272
  %v1646 = vunpack.c.h.b16 %v1272
  %v1647 = vunpack.c.l.b16 %v1273
  %v1648 = vunpack.c.h.b16 %v1273
  %v1649 = vunpack.c.l.b16 %v1274
  %v1650 = vunpack.c.h.b16 %v1274
  %v1651 = vunpack.c.l.b16 %v1275
  %v1652 = vunpack.c.h.b16 %v1275
  %v1653 = vunpack.c.l.b16 %v1276
  %v1654 = vunpack.c.h.b16 %v1276
  %v1655 = vunpack.c.l.b16 %v1277
  %v1656 = vunpack.c.h.b16 %v1277
  %v1657 = vunpack.c.l.b16 %v1278
  %v1658 = vunpack.c.h.b16 %v1278
  %v1659 = vunpack.c.l.b16 %v1279
  %v1660 = vunpack.c.h.b16 %v1279
  %v1661 = vunpack.c.l.b16 %v1280
  %v1662 = vunpack.c.h.b16 %v1280
  %v1663 = vunpack.c.l.b16 %v1281
  %v1664 = vunpack.c.h.b16 %v1281
  %v1665 = vunpack.c.l.b16 %v1282
  %v1666 = vunpack.c.h.b16 %v1282
  %v1667 = vunpack.c.l.b16 %v1283
  %v1668 = vunpack.c.h.b16 %v1283
  %v1669 = vunpack.c.l.b16 %v1284
  %v1670 = vunpack.c.h.b16 %v1284
  %v1671 = vunpack.c.l.b16 %v1285
  %v1672 = vunpack.c.h.b16 %v1285
  %v1673 = vunpack.c.l.b16 %v1286
  %v1674 = vunpack.c.h.b16 %v1286
  %v1675 = vunpack.c.l.b16 %v1287
  %v1676 = vunpack.c.h.b16 %v1287
  %v1677 = vunpack.c.l.b16 %v1288
  %v1678 = vunpack.c.h.b16 %v1288
  %v1679 = vunpack.c.l.b16 %v1289
  %v1680 = vunpack.c.h.b16 %v1289
  %v1681 = vunpack.c.l.b16 %v1290
  %v1682 = vunpack.c.h.b16 %v1290
  %v1683 = vunpack.c.l.b16 %v1291
  %v1684 = vunpack.c.h.b16 %v1291
  %v1685 = vunpack.c.l.b16 %v1292
  %v1686 = vunpack.c.h.b16 %v1292
  %v1687 = vunpack.c.l.b16 %v1293
  %v1688 = vunpack.c.h.b16 %v1293
  %v1689 = vunpack.c.l.b16 %v1294
  %v1690 = vunpack.c.h.b16 %v1294
  %v1691 = vunpack.c.l.b16 %v1295
  %v1692 = vunpack.c.h.b16 %v1295
  %v1693 = vunpack.c.l.b16 %v1296
  %v1694 = vunpack.c.h.b16 %v1296
  %v1695 = vunpack.c.l.b16 %v1297
  %v1696 = vunpack.c.h.b16 %v1297
  %v1697 = vunpack.c.l.b16 %v1298
  %v1698 = vunpack.c.h.b16 %v1298
  %v1699 = vunpack.c.l.b16 %v1299
  %v1700 = vunpack.c.h.b16 %v1299
  %v1701 = vunpack.c.l.b16 %v1300
  %v1702 = vunpack.c.h.b16 %v1300
  %v1703 = vunpack.c.l.b16 %v1301
  %v1704 = vunpack.c.h.b16 %v1301
  %v1705 = vunpack.c.l.b16 %v1302
  %v1706 = vunpack.c.h.b16 %v1302
  %v1707 = vunpack.c.l.b16 %v1303
  %v1708 = vunpack.c.h.b16 %v1303
  %v1709 = vunpack.c.l.b16 %v1304
  %v1710 = vunpack.c.h.b16 %v1304
  %v1711 = vunpack.c.l.b16 %v1305
  %v1712 = vunpack.c.h.b16 %v1305
  %v1713 = vunpack.c.l.b16 %v1306
  %v1714 = vunpack.c.h.b16 %v1306
  %v1715 = vunpack.c.l.b16 %v1307
  %v1716 = vunpack.c.h.b16 %v1307
  %v1717 = vunpack.c.l.b16 %v1308
  %v1718 = vunpack.c.h.b16 %v1308
  %v1719 = vunpack.c.l.b16 %v1309
  %v1720 = vunpack.c.h.b16 %v1309
  %v1721 = vunpack.c.l.b16 %v1310
  %v1722 = vunpack.c.h.b16 %v1310
  %v1723 = vunpack.c.l.b16 %v1311
  %v1724 = vunpack.c.h.b16 %v1311
  %v1725 = vunpack.c.l.b16 %v1312
  %v1726 = vunpack.c.h.b16 %v1312
  %v1727 = vunpack.c.l.b16 %v1313
  %v1728 = vunpack.c.h.b16 %v1313
  %v1729 = vunpack.c.l.b16 %v1314
  %v1730 = vunpack.c.h.b16 %v1314
  %v1731 = vunpack.c.l.b16 %v1315
  %v1732 = vunpack.c.h.b16 %v1315
  %v1733 = vunpack.c.l.b16 %v1316
  %v1734 = vunpack.c.h.b16 %v1316
  %v1735 = vunpack.c.l.b16 %v1317
  %v1736 = vunpack.c.h.b16 %v1317
  %v1737 = vunpack.c.l.b16 %v1318
  %v1738 = vunpack.c.h.b16 %v1318
  %v1739 = vunpack.c.l.b16 %v1319
  %v1740 = vunpack.c.h.b16 %v1319
  %v1741 = vunpack.c.l.b16 %v1320
  %v1742 = vunpack.c.h.b16 %v1320
  %v1743 = vunpack.c.l.b16 %v1321
  %v1744 = vunpack.c.h.b16 %v1321
  %v1745 = vunpack.c.l.b16 %v1322
  %v1746 = vunpack.c.h.b16 %v1322
  %v1747 = vunpack.c.l.b16 %v1323
  %v1748 = vunpack.c.h.b16 %v1323
  %v1749 = vunpack.c.l.b16 %v1324
  %v1750 = vunpack.c.h.b16 %v1324
  %v1751 = vunpack.c.l.b16 %v1325
  %v1752 = vunpack.c.h.b16 %v1325
  %v1753 = vunpack.c.l.b16 %v1326
  %v1754 = vunpack.c.h.b16 %v1326
  %v1755 = vunpack.c.l.b16 %v1327
  %v1756 = vunpack.c.h.b16 %v1327
  %v1757 = vunpack.c.l.b16 %v1328
  %v1758 = vunpack.c.h.b16 %v1328
  %v1759 = vunpack.c.l.b16 %v1329
  %v1760 = vunpack.c.h.b16 %v1329
  %v1761 = vunpack.c.l.b16 %v1330
  %v1762 = vunpack.c.h.b16 %v1330
  %v1763 = vunpack.c.l.b16 %v1331
  %v1764 = vunpack.c.h.b16 %v1331
  %v1765 = vunpack.c.l.b16 %v1332
  %v1766 = vunpack.c.h.b16 %v1332
  %v1767 = vunpack.c.l.b16 %v1333
  %v1768 = vunpack.c.h.b16 %v1333
  %v1769 = vunpack.c.l.b16 %v1334
  %v1770 = vunpack.c.h.b16 %v1334
  %v1771 = vunpack.c.l.b16 %v1335
  %v1772 = vunpack.c.h.b16 %v1335
  %v1773 = vunpack.c.l.b16 %v1336
  %v1774 = vunpack.c.h.b16 %v1336
  %v1775 = vunpack.c.l.b16 %v1337
  %v1776 = vunpack.c.h.b16 %v1337
  %v1777 = vunpack.c.l.b16 %v1338
  %v1778 = vunpack.c.h.b16 %v1338
  %v1779 = vunpack.c.l.b16 %v1339
  %v1780 = vunpack.c.h.b16 %v1339
  %v1781 = vunpack.c.l.b16 %v1340
  %v1782 = vunpack.c.h.b16 %v1340
  %v1783 = vunpack.c.l.b16 %v1341
  %v1784 = vunpack.c.h.b16 %v1341
  %v1785 = vunpack.c.l.b16 %v1342
  %v1786 = vunpack.c.h.b16 %v1342
  %v1787 = vunpack.c.l.b16 %v1343
  %v1788 = vunpack.c.h.b16 %v1343
  %v1789 = vunpack.c.l.b16 %v1344
  %v1790 = vunpack.c.h.b16 %v1344
  %v1791 = vunpack.c.l.b16 %v1345
  %v1792 = vunpack.c.h.b16 %v1345
  %v1793 = vunpack.c.l.b16 %v1346
  %v1794 = vunpack.c.h.b16 %v1346
  %v1795 = vunpack.c.l.b16 %v1347
  %v1796 = vunpack.c.h.b16 %v1347
  %v1797 = vunpack.c.l.b16 %v1348
  %v1798 = vunpack.c.h.b16 %v1348
  %v1799 = vunpack.c.l.b16 %v1349
  %v1800 = vunpack.c.h.b16 %v1349
  %v1801 = vunpack.c.l.b16 %v1350
  %v1802 = vunpack.c.h.b16 %v1350
  %v1803 = vunpack.c.l.b16 %v1351
  %v1804 = vunpack.c.h.b16 %v1351
  %v1805 = vunpack.c.l.b16 %v1352
  %v1806 = vunpack.c.h.b16 %v1352
  %v1807 = vunpack.c.l.b16 %v1353
  %v1808 = vunpack.c.h.b16 %v1353
  %v1809 = vunpack.c.l.b16 %v1354
  %v1810 = vunpack.c.h.b16 %v1354
  %v1811 = vunpack.c.l.b16 %v1355
  %v1812 = vunpack.c.h.b16 %v1355
  %v1813 = vunpack.c.l.b16 %v1356
  %v1814 = vunpack.c.h.b16 %v1356
  %v1815 = vunpack.c.l.b16 %v1357
  %v1816 = vunpack.c.h.b16 %v1357
  %v1817 = vunpack.c.l.b16 %v1358
  %v1818 = vunpack.c.h.b16 %v1358
  %v1819 = vunpack.c.l.b16 %v1359
  %v1820 = vunpack.c.h.b16 %v1359
  %v1821 = vunpack.c.l.b16 %v1360
  %v1822 = vunpack.c.h.b16 %v1360
  %v1823 = vunpack.c.l.b16 %v1361
  %v1824 = vunpack.c.h.b16 %v1361
  %v1825 = vunpack.c.l.b16 %v1362
  %v1826 = vunpack.c.h.b16 %v1362
  %v1827 = vunpack.c.l.b16 %v1363
  %v1828 = vunpack.c.h.b16 %v1363
  %v1829 = vunpack.c.l.b16 %v1364
  %v1830 = vunpack.c.h.b16 %v1364
  %v1831 = vunpack.c.l.b16 %v1365
  %v1832 = vunpack.c.h.b16 %v1365
  %v1833 = vunpack.c.l.b16 %v1366
  %v1834 = vunpack.c.h.b16 %v1366
  %v1835 = vunpack.c.l.b16 %v1367
  %v1836 = vunpack.c.h.b16 %v1367
  %v1837 = vunpack.c.l.b16 %v1368
  %v1838 = vunpack.c.h.b16 %v1368
  %v1839 = vunpack.c.l.b16 %v1369
  %v1840 = vunpack.c.h.b16 %v1369
  %v1841 = vunpack.c.l.b16 %v1370
  %v1842 = vunpack.c.h.b16 %v1370
  %v1843 = vunpack.c.l.b16 %v1371
  %v1844 = vunpack.c.h.b16 %v1371
  %v1845 = vunpack.c.l.b16 %v1372
  %v1846 = vunpack.c.h.b16 %v1372
  %v1847 = vunpack.c.l.b16 %v1373
  %v1848 = vunpack.c.h.b16 %v1373
  %v1849 = vunpack.c.l.b16 %v1374
  %v1850 = vunpack.c.h.b16 %v1374
  %v1851 = vunpack.c.l.b16 %v1375
  %v1852 = vunpack.c.h.b16 %v1375
  %v1853 = vunpack.c.l.b16 %v1376
  %v1854 = vunpack.c.h.b16 %v1376
  %v1855 = vunpack.c.l.b16 %v1377
  %v1856 = vunpack.c.h.b16 %v1377
  %v1857 = vunpack.c.l.b16 %v1378
  %v1858 = vunpack.c.h.b16 %v1378
  %v1859 = vpack.c.b16 %v1541, %v1539
  %v1860 = vpack.c.b16 %v1542, %v1540
  %v1861 = vpack.c.b16 %v1545, %v1543
  %v1862 = vpack.c.b16 %v1546, %v1544
  %v1863 = vpack.c.b16 %v1549, %v1547
  %v1864 = vpack.c.b16 %v1550, %v1548
  %v1865 = vpack.c.b16 %v1553, %v1551
  %v1866 = vpack.c.b16 %v1554, %v1552
  %v1867 = vpack.c.b16 %v1557, %v1555
  %v1868 = vpack.c.b16 %v1558, %v1556
  %v1869 = vpack.c.b16 %v1561, %v1559
  %v1870 = vpack.c.b16 %v1562, %v1560
  %v1871 = vpack.c.b16 %v1565, %v1563
  %v1872 = vpack.c.b16 %v1566, %v1564
  %v1873 = vpack.c.b16 %v1569, %v1567
  %v1874 = vpack.c.b16 %v1570, %v1568
  %v1875 = vpack.c.b16 %v1573, %v1571
  %v1876 = vpack.c.b16 %v1574, %v1572
  %v1877 = vpack.c.b16 %v1577, %v1575
  %v1878 = vpack.c.b16 %v1578, %v1576
  %v1879 = vpack.c.b16 %v1581, %v1579
  %v1880 = vpack.c.b16 %v1582, %v1580
  %v1881 = vpack.c.b16 %v1585, %v1583
  %v1882 = vpack.c.b16 %v1586, %v1584
  %v1883 = vpack.c.b16 %v1589, %v1587
  %v1884 = vpack.c.b16 %v1590, %v1588
  %v1885 = vpack.c.b16 %v1593, %v1591
  %v1886 = vpack.c.b16 %v1594, %v1592
  %v1887 = vpack.c.b16 %v1597, %v1595
  %v1888 = vpack.c.b16 %v1598, %v1596
  %v1889 = vpack.c.b16 %v1601, %v1599
  %v1890 = vpack.c.b16 %v1602, %v1600
  %v1891 = vpack.c.b16 %v1605, %v1603
  %v1892 = vpack.c.b16 %v1606, %v1604
  %v1893 = vpack.c.b16 %v1609, %v1607
  %v1894 = vpack.c.b16 %v1610, %v1608
  %v1895 = vpack.c.b16 %v1613, %v1611
  %v1896 = vpack.c.b16 %v1614, %v1612
  %v1897 = vpack.c.b16 %v1617, %v1615
  %v1898 = vpack.c.b16 %v1618, %v1616
  %v1899 = vpack.c.b16 %v1621, %v1619
  %v1900 = vpack.c.b16 %v1622, %v1620
  %v1901 = vpack.c.b16 %v1625, %v1623
  %v1902 = vpack.c.b16 %v1626, %v1624
  %v1903 = vpack.c.b16 %v1629, %v1627
  %v1904 = vpack.c.b16 %v1630, %v1628
  %v1905 = vpack.c.b16 %v1633, %v1631
  %v1906 = vpack.c.b16 %v1634, %v1632
  %v1907 = vpack.c.b16 %v1637, %v1635
  %v1908 = vpack.c.b16 %v1638, %v1636
  %v1909 = vpack.c.b16 %v1641, %v1639
  %v1910 = vpack.c.b16 %v1642, %v1640
  %v1911 = vpack.c.b16 %v1645, %v1643
  %v1912 = vpack.c.b16 %v1646, %v1644
  %v1913 = vpack.c.b16 %v1649, %v1647
  %v1914 = vpack.c.b16 %v1650, %v1648
  %v1915 = vpack.c.b16 %v1653, %v1651
  %v1916 = vpack.c.b16 %v1654, %v1652
  %v1917 = vpack.c.b16 %v1657, %v1655
  %v1918 = vpack.c.b16 %v1658, %v1656
  %v1919 = vpack.c.b16 %v1661, %v1659
  %v1920 = vpack.c.b16 %v1662, %v1660
  %v1921 = vpack.c.b16 %v1665, %v1663
  %v1922 = vpack.c.b16 %v1666, %v1664
  %v1923 = vpack.c.b16 %v1669, %v1667
  %v1924 = vpack.c.b16 %v1670, %v1668
  %v1925 = vpack.c.b16 %v1673, %v1671
  %v1926 = vpack.c.b16 %v1674, %v1672
  %v1927 = vpack.c.b16 %v1677, %v1675
  %v1928 = vpack.c.b16 %v1678, %v1676
  %v1929 = vpack.c.b16 %v1681, %v1679
  %v1930 = vpack.c.b16 %v1682, %v1680
  %v1931 = vpack.c.b16 %v1685, %v1683
  %v1932 = vpack.c.b16 %v1686, %v1684
  %v1933 = vpack.c.b16 %v1689, %v1687
  %v1934 = vpack.c.b16 %v1690, %v1688
  %v1935 = vpack.c.b16 %v1693, %v1691
  %v1936 = vpack.c.b16 %v1694, %v1692
  %v1937 = vpack.c.b16 %v1697, %v1695
  %v1938 = vpack.c.b16 %v1698, %v1696
  %v1939 = vpack.c.b16 %v1701, %v1699
  %v1940 = vpack.c.b16 %v1702, %v1700
  %v1941 = vpack.c.b16 %v1705, %v1703
  %v1942 = vpack.c.b16 %v1706, %v1704
  %v1943 = vpack.c.b16 %v1709, %v1707
  %v1944 = vpack.c.b16 %v1710, %v1708
  %v1945 = vpack.c.b16 %v1713, %v1711
  %v1946 = vpack.c.b16 %v1714, %v1712
  %v1947 = vpack.c.b16 %v1717, %v1715
  %v1948 = vpack.c.b16 %v1718, %v1716
  %v1949 = vpack.c.b16 %v1721, %v1719
  %v1950 = vpack.c.b16 %v1722, %v1720
  %v1951 = vpack.c.b16 %v1725, %v1723
  %v1952 = vpack.c.b16 %v1726, %v1724
  %v1953 = vpack.c.b16 %v1729, %v1727
  %v1954 = vpack.c.b16 %v1730, %v1728
  %v1955 = vpack.c.b16 %v1733, %v1731
  %v1956 = vpack.c.b16 %v1734, %v1732
  %v1957 = vpack.c.b16 %v1737, %v1735
  %v1958 = vpack.c.b16 %v1738, %v1736
  %v1959 = vpack.c.b16 %v1741, %v1739
  %v1960 = vpack.c.b16 %v1742, %v1740
  %v1961 = vpack.c.b16 %v1745, %v1743
  %v1962 = vpack.c.b16 %v1746, %v1744
  %v1963 = vpack.c.b16 %v1749, %v1747
  %v1964 = vpack.c.b16 %v1750, %v1748
  %v1965 = vpack.c.b16 %v1753, %v1751
  %v1966 = vpack.c.b16 %v1754, %v1752
  %v1967 = vpack.c.b16 %v1757, %v1755
  %v1968 = vpack.c.b16 %v1758, %v1756
  %v1969 = vpack.c.b16 %v1761, %v1759
  %v1970 = vpack.c.b16 %v1762, %v1760
  %v1971 = vpack.c.b16 %v1765, %v1763
  %v1972 = vpack.c.b16 %v1766, %v1764
  %v1973 = vpack.c.b16 %v1769, %v1767
  %v1974 = vpack.c.b16 %v1770, %v1768
  %v1975 = vpack.c.b16 %v1773, %v1771
  %v1976 = vpack.c.b16 %v1774, %v1772
  %v1977 = vpack.c.b16 %v1777, %v1775
  %v1978 = vpack.c.b16 %v1778, %v1776
  %v1979 = vpack.c.b16 %v1781, %v1779
  %v1980 = vpack.c.b16 %v1782, %v1780
  %v1981 = vpack.c.b16 %v1785, %v1783
  %v1982 = vpack.c.b16 %v1786, %v1784
  %v1983 = vpack.c.b16 %v1789, %v1787
  %v1984 = vpack.c.b16 %v1790, %v1788
  %v1985 = vpack.c.b16 %v1793, %v1791
  %v1986 = vpack.c.b16 %v1794, %v1792
  %v1987 = vpack.c.b16 %v1797, %v1795
  %v1988 = vpack.c.b16 %v1798, %v1796
  %v1989 = vpack.c.b16 %v1801, %v1799
  %v1990 = vpack.c.b16 %v1802, %v1800
  %v1991 = vpack.c.b16 %v1805, %v1803
  %v1992 = vpack.c.b16 %v1806, %v1804
  %v1993 = vpack.c.b16 %v1809, %v1807
  %v1994 = vpack.c.b16 %v1810, %v1808
  %v1995 = vpack.c.b16 %v1813, %v1811
  %v1996 = vpack.c.b16 %v1814, %v1812
  %v1997 = vpack.c.b16 %v1817, %v1815
  %v1998 = vpack.c.b16 %v1818, %v1816
  %v1999 = vpack.c.b16 %v1821, %v1819
  %v2000 = vpack.c.b16 %v1822, %v1820
  %v2001 = vpack.c.b16 %v1825, %v1823
  %v2002 = vpack.c.b16 %v1826, %v1824
  %v2003 = vpack.c.b16 %v1829, %v1827
  %v2004 = vpack.c.b16 %v1830, %v1828
  %v2005 = vpack.c.b16 %v1833, %v1831
  %v2006 = vpack.c.b16 %v1834, %v1832
  %v2007 = vpack.c.b16 %v1837, %v1835
  %v2008 = vpack.c.b16 %v1838, %v1836
  %v2009 = vpack.c.b16 %v1841, %v1839
  %v2010 = vpack.c.b16 %v1842, %v1840
  %v2011 = vpack.c.b16 %v1845, %v1843
  %v2012 = vpack.c.b16 %v1846, %v1844
  %v2013 = vpack.c.b16 %v1849, %v1847
  %v2014 = vpack.c.b16 %v1850, %v1848
  %v2015 = vpack.c.b16 %v1853, %v1851
  %v2016 = vpack.c.b16 %v1854, %v1852
  %v2017 = vpack.c.b16 %v1857, %v1855
  %v2018 = vpack.c.b16 %v1858, %v1856
  %2179 = vmatprep.subr.bf16.mxu0 %v1860
  %2180 = vmatpush1.bf16.msra.mxu0 %v1859
  %2181 = vmatprep.subr.bf16.mxu0 %v1862
  %2182 = vmatpush1.bf16.msra.mxu0 %v1861
  %2183 = vmatprep.subr.bf16.mxu0 %v1864
  %2184 = vmatpush1.bf16.msra.mxu0 %v1863
  %2185 = vmatprep.subr.bf16.mxu0 %v1866
  %2186 = vmatpush1.bf16.msra.mxu0 %v1865
  %2187 = vmatprep.subr.bf16.mxu0 %v1868
  %2188 = vmatpush1.bf16.msra.mxu0 %v1867
  %2189 = vmatprep.subr.bf16.mxu0 %v1870
  %2190 = vmatpush1.bf16.msra.mxu0 %v1869
  %2191 = vmatprep.subr.bf16.mxu0 %v1872
  %2192 = vmatpush1.bf16.msra.mxu0 %v1871
  %2193 = vmatprep.subr.bf16.mxu0 %v1874
  %2194 = vmatpush1.bf16.msra.mxu0 %v1873
  %2195 = vmatprep.subr.bf16.mxu0 %v1876
  %2196 = vmatpush1.bf16.msra.mxu0 %v1875
  %2197 = vmatprep.subr.bf16.mxu0 %v1878
  %2198 = vmatpush1.bf16.msra.mxu0 %v1877
  %2199 = vmatprep.subr.bf16.mxu0 %v1880
  %2200 = vmatpush1.bf16.msra.mxu0 %v1879
  %2201 = vmatprep.subr.bf16.mxu0 %v1882
  %2202 = vmatpush1.bf16.msra.mxu0 %v1881
  %2203 = vmatprep.subr.bf16.mxu0 %v1884
  %2204 = vmatpush1.bf16.msra.mxu0 %v1883
  %2205 = vmatprep.subr.bf16.mxu0 %v1886
  %2206 = vmatpush1.bf16.msra.mxu0 %v1885
  %2207 = vmatprep.subr.bf16.mxu0 %v1888
  %2208 = vmatpush1.bf16.msra.mxu0 %v1887
  %2209 = vmatprep.subr.bf16.mxu0 %v1890
  %2210 = vmatpush1.bf16.msra.mxu0 %v1889
  %2211 = vmatprep.mubr.bf16.mxu0 %v1210
  %2212 = vmatmul.mubr.bf16.gmra.mrb[0].mxu0 %v1209
  %v2213 = vpop.f32.mrb[0].mxu0
  %v2214 = vadd.f32 0.0, %v2213
  %v2215 = vpop.f32.mrb[0].mxu0
  %v2216 = vadd.f32 0.0, %v2215
  %v2217 = vpop.f32.mrb[0].mxu0
  %v2218 = vadd.f32 0.0, %v2217
  %v2219 = vpop.f32.mrb[0].mxu0
  %v2220 = vadd.f32 0.0, %v2219
  %2221 = vdwg.mxu0
  %2222 = vmatprep.subr.bf16.mxu0 %v1892
  %2223 = vmatpush1.bf16.msra.mxu0 %v1891
  %2224 = vmatprep.subr.bf16.mxu0 %v1894
  %2225 = vmatpush1.bf16.msra.mxu0 %v1893
  %2226 = vmatprep.subr.bf16.mxu0 %v1896
  %2227 = vmatpush1.bf16.msra.mxu0 %v1895
  %2228 = vmatprep.subr.bf16.mxu0 %v1898
  %2229 = vmatpush1.bf16.msra.mxu0 %v1897
  %2230 = vmatprep.subr.bf16.mxu0 %v1900
  %2231 = vmatpush1.bf16.msra.mxu0 %v1899
  %2232 = vmatprep.subr.bf16.mxu0 %v1902
  %2233 = vmatpush1.bf16.msra.mxu0 %v1901
  %2234 = vmatprep.subr.bf16.mxu0 %v1904
  %2235 = vmatpush1.bf16.msra.mxu0 %v1903
  %2236 = vmatprep.subr.bf16.mxu0 %v1906
  %2237 = vmatpush1.bf16.msra.mxu0 %v1905
  %2238 = vmatprep.subr.bf16.mxu0 %v1908
  %2239 = vmatpush1.bf16.msra.mxu0 %v1907
  %2240 = vmatprep.subr.bf16.mxu0 %v1910
  %2241 = vmatpush1.bf16.msra.mxu0 %v1909
  %2242 = vmatprep.subr.bf16.mxu0 %v1912
  %2243 = vmatpush1.bf16.msra.mxu0 %v1911
  %2244 = vmatprep.subr.bf16.mxu0 %v1914
  %2245 = vmatpush1.bf16.msra.mxu0 %v1913
  %2246 = vmatprep.subr.bf16.mxu0 %v1916
  %2247 = vmatpush1.bf16.msra.mxu0 %v1915
  %2248 = vmatprep.subr.bf16.mxu0 %v1918
  %2249 = vmatpush1.bf16.msra.mxu0 %v1917
  %2250 = vmatprep.subr.bf16.mxu0 %v1920
  %2251 = vmatpush1.bf16.msra.mxu0 %v1919
  %2252 = vmatprep.subr.bf16.mxu0 %v1922
  %2253 = vmatpush1.bf16.msra.mxu0 %v1921
  %2254 = vmatprep.mubr.bf16.mxu0 %v1212
  %2255 = vmatmul.mubr.bf16.gmra.mrb[0].mxu0 %v1211
  %v2256 = vpop.f32.mrb[0].mxu0
  %v2257 = vadd.f32 %v2214, %v2256
  %v2258 = vpop.f32.mrb[0].mxu0
  %v2259 = vadd.f32 %v2216, %v2258
  %v2260 = vpop.f32.mrb[0].mxu0
  %v2261 = vadd.f32 %v2218, %v2260
  %v2262 = vpop.f32.mrb[0].mxu0
  %v2263 = vadd.f32 %v2220, %v2262
  %2264 = vdwg.mxu0
  %2265 = vmatprep.subr.bf16.mxu0 %v1924
  %2266 = vmatpush1.bf16.msra.mxu0 %v1923
  %2267 = vmatprep.subr.bf16.mxu0 %v1926
  %2268 = vmatpush1.bf16.msra.mxu0 %v1925
  %2269 = vmatprep.subr.bf16.mxu0 %v1928
  %2270 = vmatpush1.bf16.msra.mxu0 %v1927
  %2271 = vmatprep.subr.bf16.mxu0 %v1930
  %2272 = vmatpush1.bf16.msra.mxu0 %v1929
  %2273 = vmatprep.subr.bf16.mxu0 %v1932
  %2274 = vmatpush1.bf16.msra.mxu0 %v1931
  %2275 = vmatprep.subr.bf16.mxu0 %v1934
  %2276 = vmatpush1.bf16.msra.mxu0 %v1933
  %2277 = vmatprep.subr.bf16.mxu0 %v1936
  %2278 = vmatpush1.bf16.msra.mxu0 %v1935
  %2279 = vmatprep.subr.bf16.mxu0 %v1938
  %2280 = vmatpush1.bf16.msra.mxu0 %v1937
  %2281 = vmatprep.subr.bf16.mxu0 %v1940
  %2282 = vmatpush1.bf16.msra.mxu0 %v1939
  %2283 = vmatprep.subr.bf16.mxu0 %v1942
  %2284 = vmatpush1.bf16.msra.mxu0 %v1941
  %2285 = vmatprep.subr.bf16.mxu0 %v1944
  %2286 = vmatpush1.bf16.msra.mxu0 %v1943
  %2287 = vmatprep.subr.bf16.mxu0 %v1946
  %2288 = vmatpush1.bf16.msra.mxu0 %v1945
  %2289 = vmatprep.subr.bf16.mxu0 %v1948
  %2290 = vmatpush1.bf16.msra.mxu0 %v1947
  %2291 = vmatprep.subr.bf16.mxu0 %v1950
  %2292 = vmatpush1.bf16.msra.mxu0 %v1949
  %2293 = vmatprep.subr.bf16.mxu0 %v1952
  %2294 = vmatpush1.bf16.msra.mxu0 %v1951
  %2295 = vmatprep.subr.bf16.mxu0 %v1954
  %2296 = vmatpush1.bf16.msra.mxu0 %v1953
  %2297 = vmatprep.mubr.bf16.mxu0 %v1214
  %2298 = vmatmul.mubr.bf16.gmra.mrb[0].mxu0 %v1213
  %v2299 = vpop.f32.mrb[0].mxu0
  %v2300 = vadd.f32 %v2257, %v2299
  %v2301 = vpop.f32.mrb[0].mxu0
  %v2302 = vadd.f32 %v2259, %v2301
  %v2303 = vpop.f32.mrb[0].mxu0
  %v2304 = vadd.f32 %v2261, %v2303
  %v2305 = vpop.f32.mrb[0].mxu0
  %v2306 = vadd.f32 %v2263, %v2305
  %2307 = vdwg.mxu0
  %2308 = vmatprep.subr.bf16.mxu0 %v1956
  %2309 = vmatpush1.bf16.msra.mxu0 %v1955
  %2310 = vmatprep.subr.bf16.mxu0 %v1958
  %2311 = vmatpush1.bf16.msra.mxu0 %v1957
  %2312 = vmatprep.subr.bf16.mxu0 %v1960
  %2313 = vmatpush1.bf16.msra.mxu0 %v1959
  %2314 = vmatprep.subr.bf16.mxu0 %v1962
  %2315 = vmatpush1.bf16.msra.mxu0 %v1961
  %2316 = vmatprep.subr.bf16.mxu0 %v1964
  %2317 = vmatpush1.bf16.msra.mxu0 %v1963
  %2318 = vmatprep.subr.bf16.mxu0 %v1966
  %2319 = vmatpush1.bf16.msra.mxu0 %v1965
  %2320 = vmatprep.subr.bf16.mxu0 %v1968
  %2321 = vmatpush1.bf16.msra.mxu0 %v1967
  %2322 = vmatprep.subr.bf16.mxu0 %v1970
  %2323 = vmatpush1.bf16.msra.mxu0 %v1969
  %2324 = vmatprep.subr.bf16.mxu0 %v1972
  %2325 = vmatpush1.bf16.msra.mxu0 %v1971
  %2326 = vmatprep.subr.bf16.mxu0 %v1974
  %2327 = vmatpush1.bf16.msra.mxu0 %v1973
  %2328 = vmatprep.subr.bf16.mxu0 %v1976
  %2329 = vmatpush1.bf16.msra.mxu0 %v1975
  %2330 = vmatprep.subr.bf16.mxu0 %v1978
  %2331 = vmatpush1.bf16.msra.mxu0 %v1977
  %2332 = vmatprep.subr.bf16.mxu0 %v1980
  %2333 = vmatpush1.bf16.msra.mxu0 %v1979
  %2334 = vmatprep.subr.bf16.mxu0 %v1982
  %2335 = vmatpush1.bf16.msra.mxu0 %v1981
  %2336 = vmatprep.subr.bf16.mxu0 %v1984
  %2337 = vmatpush1.bf16.msra.mxu0 %v1983
  %2338 = vmatprep.subr.bf16.mxu0 %v1986
  %2339 = vmatpush1.bf16.msra.mxu0 %v1985
  %2340 = vmatprep.mubr.bf16.mxu0 %v1216
  %2341 = vmatmul.mubr.bf16.gmra.mrb[0].mxu0 %v1215
  %v2342 = vpop.f32.mrb[0].mxu0
  %v2343 = vadd.f32 %v2300, %v2342
  %v2344 = vpop.f32.mrb[0].mxu0
  %v2345 = vadd.f32 %v2302, %v2344
  %v2346 = vpop.f32.mrb[0].mxu0
  %v2347 = vadd.f32 %v2304, %v2346
  %v2348 = vpop.f32.mrb[0].mxu0
  %v2349 = vadd.f32 %v2306, %v2348
  %2350 = vdwg.mxu0
  %2351 = vmatprep.subr.bf16.mxu0 %v1988
  %2352 = vmatpush1.bf16.msra.mxu0 %v1987
  %2353 = vmatprep.subr.bf16.mxu0 %v1990
  %2354 = vmatpush1.bf16.msra.mxu0 %v1989
  %2355 = vmatprep.subr.bf16.mxu0 %v1992
  %2356 = vmatpush1.bf16.msra.mxu0 %v1991
  %2357 = vmatprep.subr.bf16.mxu0 %v1994
  %2358 = vmatpush1.bf16.msra.mxu0 %v1993
  %2359 = vmatprep.subr.bf16.mxu0 %v1996
  %2360 = vmatpush1.bf16.msra.mxu0 %v1995
  %2361 = vmatprep.subr.bf16.mxu0 %v1998
  %2362 = vmatpush1.bf16.msra.mxu0 %v1997
  %2363 = vmatprep.subr.bf16.mxu0 %v2000
  %2364 = vmatpush1.bf16.msra.mxu0 %v1999
  %2365 = vmatprep.subr.bf16.mxu0 %v2002
  %2366 = vmatpush1.bf16.msra.mxu0 %v2001
  %2367 = vmatprep.subr.bf16.mxu0 %v2004
  %2368 = vmatpush1.bf16.msra.mxu0 %v2003
  %2369 = vmatprep.subr.bf16.mxu0 %v2006
  %2370 = vmatpush1.bf16.msra.mxu0 %v2005
  %2371 = vmatprep.subr.bf16.mxu0 %v2008
  %2372 = vmatpush1.bf16.msra.mxu0 %v2007
  %2373 = vmatprep.subr.bf16.mxu0 %v2010
  %2374 = vmatpush1.bf16.msra.mxu0 %v2009
  %2375 = vmatprep.subr.bf16.mxu0 %v2012
  %2376 = vmatpush1.bf16.msra.mxu0 %v2011
  %2377 = vmatprep.subr.bf16.mxu0 %v2014
  %2378 = vmatpush1.bf16.msra.mxu0 %v2013
  %2379 = vmatprep.subr.bf16.mxu0 %v2016
  %2380 = vmatpush1.bf16.msra.mxu0 %v2015
  %2381 = vmatprep.subr.bf16.mxu0 %v2018
  %2382 = vmatpush1.bf16.msra.mxu0 %v2017
  %2383 = vmatprep.mubr.bf16.mxu0 %v1218
  %2384 = vmatmul.mubr.bf16.gmra.mrb[0].mxu0 %v1217
  %v2385 = vpop.f32.mrb[0].mxu0
  %v2386 = vadd.f32 %v2343, %v2385
  %v2387 = vpop.f32.mrb[0].mxu0
  %v2388 = vadd.f32 %v2345, %v2387
  %v2389 = vpop.f32.mrb[0].mxu0
  %v2390 = vadd.f32 %v2347, %v2389
  %v2391 = vpop.f32.mrb[0].mxu0
  %v2392 = vadd.f32 %v2349, %v2391
  %2393 = vdwg.mxu0
  %v2394 = vadd.f32 %v2386, %v2390
  %v2395 = vrot.slane %v2394, 4
  %v2396 = vadd.f32 %v2394, %v2395
  %v2397 = vrot.slane %v2396, 2
  %v2398 = vadd.f32 %v2396, %v2397
  %v2399 = vrot.slane %v2398, 1
  %v2400 = vadd.f32 %v2398, %v2399
  %v2401 = vadd.f32 %v2388, %v2392
  %v2402 = vrot.slane %v2401, 4
  %v2403 = vadd.f32 %v2401, %v2402
  %v2404 = vrot.slane %v2403, 2
  %v2405 = vadd.f32 %v2403, %v2404
  %v2406 = vrot.slane %v2405, 1
  %v2407 = vadd.f32 %v2405, %v2406
  %v2408 = vmul.f32 %v2386, %v2386
  %v2409 = vmul.f32 %v2388, %v2388
  %v2410 = vmul.f32 %v2390, %v2390
  %v2411 = vmul.f32 %v2392, %v2392
  %v2412 = vadd.f32 %v2408, %v2410
  %v2413 = vrot.slane %v2412, 4
  %v2414 = vadd.f32 %v2412, %v2413
  %v2415 = vrot.slane %v2414, 2
  %v2416 = vadd.f32 %v2414, %v2415
  %v2417 = vrot.slane %v2416, 1
  %v2418 = vadd.f32 %v2416, %v2417
  %v2419 = vadd.f32 %v2409, %v2411
  %v2420 = vrot.slane %v2419, 4
  %v2421 = vadd.f32 %v2419, %v2420
  %v2422 = vrot.slane %v2421, 2
  %v2423 = vadd.f32 %v2421, %v2422
  %v2424 = vrot.slane %v2423, 1
  %v2425 = vadd.f32 %v2423, %v2424
  %v2426 = vsel %vm810, %v2400, %v2418
  %v2427 = vsel %vm810, %v2407, %v2425
  %v2428 = vld [vmem:[%s8] sm:$0xff]
  %v2429 = vld [vmem:[%s8 + $0x8] sm:$0xff]
  %v2430 = vld [vmem:[%s8 + $0x10] sm:$0xff]
  %v2431 = vld [vmem:[%s8 + $0x18] sm:$0xff]
  %v2432 = vld [vmem:[%s8 + $0x20] sm:$0xff]
  %v2433 = vld [vmem:[%s8 + $0x28] sm:$0xff]
  %v2434 = vld [vmem:[%s8 + $0x30] sm:$0xff]
  %v2435 = vld [vmem:[%s8 + $0x38] sm:$0xff]
  %v2436 = vld [vmem:[%s8 + $0x40] sm:$0xff]
  %v2437 = vld [vmem:[%s8 + $0x48] sm:$0xff]
  %v2438 = vld [vmem:[%s8 + $0x50] sm:$0xff]
  %v2439 = vld [vmem:[%s8 + $0x58] sm:$0xff]
  %v2440 = vld [vmem:[%s8 + $0x60] sm:$0xff]
  %v2441 = vld [vmem:[%s8 + $0x68] sm:$0xff]
  %v2442 = vld [vmem:[%s8 + $0x70] sm:$0xff]
  %v2443 = vld [vmem:[%s8 + $0x78] sm:$0xff]
  %v2444 = vld [vmem:[%s8 + $0x80] sm:$0xff]
  %v2445 = vld [vmem:[%s8 + $0x88] sm:$0xff]
  %v2446 = vld [vmem:[%s8 + $0x90] sm:$0xff]
  %v2447 = vld [vmem:[%s8 + $0x98] sm:$0xff]
  %v2448 = vld [vmem:[%s8 + $0xa0] sm:$0xff]
  %v2449 = vld [vmem:[%s8 + $0xa8] sm:$0xff]
  %v2450 = vld [vmem:[%s8 + $0xb0] sm:$0xff]
  %v2451 = vld [vmem:[%s8 + $0xb8] sm:$0xff]
  %v2452 = vld [vmem:[%s8 + $0xc0] sm:$0xff]
  %v2453 = vld [vmem:[%s8 + $0xc8] sm:$0xff]
  %v2454 = vld [vmem:[%s8 + $0xd0] sm:$0xff]
  %v2455 = vld [vmem:[%s8 + $0xd8] sm:$0xff]
  %v2456 = vld [vmem:[%s8 + $0xe0] sm:$0xff]
  %v2457 = vld [vmem:[%s8 + $0xe8] sm:$0xff]
  %v2458 = vld [vmem:[%s8 + $0xf0] sm:$0xff]
  %v2459 = vld [vmem:[%s8 + $0xf8] sm:$0xff]
  %2460 = vmatprep.subr.mxu0 0.0
  %2461 = vmatpush1.msra.mxu0 %v2428
  %2462 = vmatprep.subr.mxu0 0.0
  %2463 = vmatpush1.msra.mxu0 %v2429
  %2464 = vmatprep.subr.mxu0 0.0
  %2465 = vmatpush1.msra.mxu0 %v2430
  %2466 = vmatprep.subr.mxu0 0.0
  %2467 = vmatpush1.msra.mxu0 %v2431
  %2468 = vmatprep.subr.mxu0 0.0
  %2469 = vmatpush1.msra.mxu0 %v2432
  %2470 = vmatprep.subr.mxu0 0.0
  %2471 = vmatpush1.msra.mxu0 %v2433
  %2472 = vmatprep.subr.mxu0 0.0
  %2473 = vmatpush1.msra.mxu0 %v2434
  %2474 = vmatprep.subr.mxu0 0.0
  %2475 = vmatpush1.msra.mxu0 %v2435
  %2476 = vmatprep.subr.mxu0 0.0
  %2477 = vmatpush1.msra.mxu0 %v2436
  %2478 = vmatprep.subr.mxu0 0.0
  %2479 = vmatpush1.msra.mxu0 %v2437
  %2480 = vmatprep.subr.mxu0 0.0
  %2481 = vmatpush1.msra.mxu0 %v2438
  %2482 = vmatprep.subr.mxu0 0.0
  %2483 = vmatpush1.msra.mxu0 %v2439
  %2484 = vmatprep.subr.mxu0 0.0
  %2485 = vmatpush1.msra.mxu0 %v2440
  %2486 = vmatprep.subr.mxu0 0.0
  %2487 = vmatpush1.msra.mxu0 %v2441
  %2488 = vmatprep.subr.mxu0 0.0
  %2489 = vmatpush1.msra.mxu0 %v2442
  %2490 = vmatprep.subr.mxu0 0.0
  %2491 = vmatpush1.msra.mxu0 %v2443
  %2492 = vmatprep.subr.mxu0 0.0
  %2493 = vmatpush1.msra.mxu0 %v2444
  %2494 = vmatprep.subr.mxu0 0.0
  %2495 = vmatpush1.msra.mxu0 %v2445
  %2496 = vmatprep.subr.mxu0 0.0
  %2497 = vmatpush1.msra.mxu0 %v2446
  %2498 = vmatprep.subr.mxu0 0.0
  %2499 = vmatpush1.msra.mxu0 %v2447
  %2500 = vmatprep.subr.mxu0 0.0
  %2501 = vmatpush1.msra.mxu0 %v2448
  %2502 = vmatprep.subr.mxu0 0.0
  %2503 = vmatpush1.msra.mxu0 %v2449
  %2504 = vmatprep.subr.mxu0 0.0
  %2505 = vmatpush1.msra.mxu0 %v2450
  %2506 = vmatprep.subr.mxu0 0.0
  %2507 = vmatpush1.msra.mxu0 %v2451
  %2508 = vmatprep.subr.mxu0 0.0
  %2509 = vmatpush1.msra.mxu0 %v2452
  %2510 = vmatprep.subr.mxu0 0.0
  %2511 = vmatpush1.msra.mxu0 %v2453
  %2512 = vmatprep.subr.mxu0 0.0
  %2513 = vmatpush1.msra.mxu0 %v2454
  %2514 = vmatprep.subr.mxu0 0.0
  %2515 = vmatpush1.msra.mxu0 %v2455
  %2516 = vmatprep.subr.mxu0 0.0
  %2517 = vmatpush1.msra.mxu0 %v2456
  %2518 = vmatprep.subr.mxu0 0.0
  %2519 = vmatpush1.msra.mxu0 %v2457
  %2520 = vmatprep.subr.mxu0 0.0
  %2521 = vmatpush1.msra.mxu0 %v2458
  %2522 = vmatprep.subr.mxu0 0.0
  %2523 = vmatpush1.msra.mxu0 %v2459
  %2524 = vmatprep.mubr.f32.mxu0 %v2427
  %2525 = vmatmul.mubr.f32.gmra.mrb[0].mxu0 %v2426
  %v2526 = vpop.f32.mrb[0].mxu0
  %v2527 = vadd.f32 0.0, %v2526
  %v2528 = vpop.f32.mrb[0].mxu0
  %2529 = vdwg.mxu0
  %v2530 = vmul.f32 %v2527, 0.0078125
  %v2531 = vmul.f32 %v2530, %v2530
  %v2533 = vrot.slane %v2531, 7
  %v2535 = vsub.f32 %v2530, %v2533
  %v2536 = vld [vmem:[%s10] sm:$0x1]
  %v2537 = vadd.f32 %v2535, 1e-05
  %v2538 = vrsqrt.pop %v2537
  %v2541 = vunpack.c.l.s4 1966171168
  %v2542 = vunpack.c.0.s8 %v2541
  %v2543 = vlaneseq
  %v2544 = vshrl.u32 %v2543, 7
  %v2545 = vsub.s32 %v2542, %v2544
  %v2546 = vrot.slane %v2538, %v2545
  %v2547 = vcombine.high %v2546, %v2546
  %v2549 = vunpack.c.l.s4 1966171168
  %v2550 = vunpack.c.0.s8 %v2549
  %v2551 = vlaneseq
  %v2552 = vshrl.u32 %v2551, 7
  %v2553 = vsub.s32 %v2550, %v2552
  %v2554 = vrot.slane %v2547, %v2553
  %v2556 = vmul.f32 %v2536, %v2554
  %v2557 = vld [vmem:[%s11] sm:$0x1]
  %v2558 = vmul.f32 %v2530, %v2556
  %v2559 = vsub.f32 %v2557, %v2558
  %v2561 = vlaneseq
  %v2562 = vshrl.u32 %v2561, 7
  %v2563 = vsub.s32 0, %v2562
  %v2564 = vrot.slane %v2559, %v2563
  %v2566 = vsel %vm810, %v2556, %v2564
  %v2567 = vld [vmem:[%s9] sm:$0xff]
  %v2568 = vld [vmem:[%s9 + $0x8] sm:$0xff]
  %v2569 = vld [vmem:[%s9 + $0x10] sm:$0xff]
  %v2570 = vld [vmem:[%s9 + $0x18] sm:$0xff]
  %v2571 = vld [vmem:[%s9 + $0x20] sm:$0xff]
  %v2572 = vld [vmem:[%s9 + $0x28] sm:$0xff]
  %v2573 = vld [vmem:[%s9 + $0x30] sm:$0xff]
  %v2574 = vld [vmem:[%s9 + $0x38] sm:$0xff]
  %v2576 = vsel %vm1110, %v2566, 0
  %2578 = vmatprep.subr.mxu0 %v2568
  %2579 = vmatpush1.msra.mxu0 %v2567
  %2580 = vmatprep.subr.mxu0 %v2570
  %2581 = vmatpush1.msra.mxu0 %v2569
  %2582 = vmatprep.subr.mxu0 %v2572
  %2583 = vmatpush1.msra.mxu0 %v2571
  %2584 = vmatprep.subr.mxu0 %v2574
  %2585 = vmatpush1.msra.mxu0 %v2573
  %2586 = vmatprep.subr.mxu0 0.0
  %2587 = vmatpush1.msra.mxu0 0.0
  %2588 = vmatprep.subr.mxu0 0.0
  %2589 = vmatpush1.msra.mxu0 0.0
  %2590 = vmatprep.subr.mxu0 0.0
  %2591 = vmatpush1.msra.mxu0 0.0
  %2592 = vmatprep.subr.mxu0 0.0
  %2593 = vmatpush1.msra.mxu0 0.0
  %2594 = vmatprep.subr.mxu0 0.0
  %2595 = vmatpush1.msra.mxu0 0.0
  %2596 = vmatprep.subr.mxu0 0.0
  %2597 = vmatpush1.msra.mxu0 0.0
  %2598 = vmatprep.subr.mxu0 0.0
  %2599 = vmatpush1.msra.mxu0 0.0
  %2600 = vmatprep.subr.mxu0 0.0
  %2601 = vmatpush1.msra.mxu0 0.0
  %2602 = vmatprep.subr.mxu0 0.0
  %2603 = vmatpush1.msra.mxu0 0.0
  %2604 = vmatprep.subr.mxu0 0.0
  %2605 = vmatpush1.msra.mxu0 0.0
  %2606 = vmatprep.subr.mxu0 0.0
  %2607 = vmatpush1.msra.mxu0 0.0
  %2608 = vmatprep.subr.mxu0 0.0
  %2609 = vmatpush1.msra.mxu0 0.0
  %2610 = vmatprep.subr.mxu0 0.0
  %2611 = vmatpush1.msra.mxu0 0.0
  %2612 = vmatprep.subr.mxu0 0.0
  %2613 = vmatpush1.msra.mxu0 0.0
  %2614 = vmatprep.subr.mxu0 0.0
  %2615 = vmatpush1.msra.mxu0 0.0
  %2616 = vmatprep.subr.mxu0 0.0
  %2617 = vmatpush1.msra.mxu0 0.0
  %2618 = vmatprep.subr.mxu0 0.0
  %2619 = vmatpush1.msra.mxu0 0.0
  %2620 = vmatprep.subr.mxu0 0.0
  %2621 = vmatpush1.msra.mxu0 0.0
  %2622 = vmatprep.subr.mxu0 0.0
  %2623 = vmatpush1.msra.mxu0 0.0
  %2624 = vmatprep.subr.mxu0 0.0
  %2625 = vmatpush1.msra.mxu0 0.0
  %2626 = vmatprep.subr.mxu0 0.0
  %2627 = vmatpush1.msra.mxu0 0.0
  %2628 = vmatprep.subr.mxu0 0.0
  %2629 = vmatpush1.msra.mxu0 0.0
  %2630 = vmatprep.subr.mxu0 0.0
  %2631 = vmatpush1.msra.mxu0 0.0
  %2632 = vmatprep.subr.mxu0 0.0
  %2633 = vmatpush1.msra.mxu0 0.0
  %2634 = vmatprep.subr.mxu0 0.0
  %2635 = vmatpush1.msra.mxu0 0.0
  %2636 = vmatprep.subr.mxu0 0.0
  %2637 = vmatpush1.msra.mxu0 0.0
  %2638 = vmatprep.subr.mxu0 0.0
  %2639 = vmatpush1.msra.mxu0 0.0
  %2640 = vmatprep.subr.mxu0 0.0
  %2641 = vmatpush1.msra.mxu0 0.0
  %2642 = vmatprep.mubr.f32.mxu0 0.0
  %2643 = vmatmul.mubr.f32.gmra.mrb[0].mxu0 %v2576
  %v2644 = vpop.f32.mrb[0].mxu0
  %v2645 = vadd.f32 0.0, %v2644
  %v2646 = vpop.f32.mrb[0].mxu0
  %v2647 = vadd.f32 0.0, %v2646
  %2648 = vdwg.mxu0
  %v2649 = vlaneseq
  %v2650 = vshrl.u32 %v2649, 7
  %v2651 = vsub.s32 0, %v2650
  %v2652 = vrot.slane %v2645, %v2651
  %v2653 = vlaneseq
  %v2654 = vshrl.u32 %v2653, 7
  %v2655 = vsub.s32 0, %v2654
  %v2656 = vrot.slane %v2647, %v2655
  %v2657 = vmul.f32 %v2386, %v2652
  %v2658 = vmul.f32 %v2388, %v2656
  %v2659 = vmul.f32 %v2390, %v2652
  %v2660 = vmul.f32 %v2392, %v2656
  %v2661 = vlaneseq
  %v2662 = vshrl.u32 %v2661, 7
  %v2663 = vsub.s32 1, %v2662
  %v2664 = vrot.slane %v2645, %v2663
  %v2665 = vlaneseq
  %v2666 = vshrl.u32 %v2665, 7
  %v2667 = vsub.s32 1, %v2666
  %v2668 = vrot.slane %v2647, %v2667
  %v2669 = vadd.f32 %v2657, %v2664
  %v2670 = vadd.f32 %v2658, %v2668
  %v2671 = vadd.f32 %v2659, %v2664
  %v2672 = vadd.f32 %v2660, %v2668
  %v2673 = vmax.f32 %v2669, 0.0
  %v2674 = vmax.f32 %v2670, 0.0
  %v2675 = vmax.f32 %v2671, 0.0
  %v2676 = vmax.f32 %v2672, 0.0
  %v2677 = vld [vmem:[%s12] sm:$0xf]
  %v2678 = vld [vmem:[%s12 + $0x4] sm:$0xf]
  %v2679 = vld [vmem:[%s12 + $0x8] sm:$0xf]
  %v2680 = vld [vmem:[%s12 + $0xc] sm:$0xf]
  %v2681 = vld [vmem:[%s12 + $0x10] sm:$0xf]
  %v2682 = vpack.c.bf16 %v2675, %v2673
  %v2683 = vpack.c.bf16 %v2676, %v2674
  %v2689 = vunpack.c.l.b16 %v2677
  %v2690 = vunpack.c.l.b16 %v2678
  %v2691 = vunpack.c.l.b16 %v2679
  %v2692 = vunpack.c.l.b16 %v2680
  %v2693 = vunpack.c.l.b16 %v2681
  %v2694 = vpack.c.b16 %v2690, %v2689
  %v2695 = vpack.c.b16 %v2692, %v2691
  %v2696 = vpack.c.b16 %v2693, %v2693
  %v2698 = vsel %vm956, %v2694, 0
  %v2701 = vsel %vm956, %v2695, 0
  %v2704 = vsel %vm956, %v2696, 0
  %2706 = vmatprep.subr.bf16.mxu0 %v2683
  %2707 = vmatpush1.bf16.msra.mxu0 %v2682
  %2708 = vmatprep.subr.bf16.mxu0 0
  %2709 = vmatpush1.bf16.msra.mxu0 0
  %2710 = vmatprep.subr.bf16.mxu0 0
  %2711 = vmatpush1.bf16.msra.mxu0 0
  %2712 = vmatprep.subr.bf16.mxu0 0
  %2713 = vmatpush1.bf16.msra.mxu0 0
  %2714 = vmatprep.subr.bf16.mxu0 0
  %2715 = vmatpush1.bf16.msra.mxu0 0
  %2716 = vmatprep.subr.bf16.mxu0 0
  %2717 = vmatpush1.bf16.msra.mxu0 0
  %2718 = vmatprep.subr.bf16.mxu0 0
  %2719 = vmatpush1.bf16.msra.mxu0 0
  %2720 = vmatprep.subr.bf16.mxu0 0
  %2721 = vmatpush1.bf16.msra.mxu0 0
  %2722 = vmatprep.subr.bf16.mxu0 0
  %2723 = vmatpush1.bf16.msra.mxu0 0
  %2724 = vmatprep.subr.bf16.mxu0 0
  %2725 = vmatpush1.bf16.msra.mxu0 0
  %2726 = vmatprep.subr.bf16.mxu0 0
  %2727 = vmatpush1.bf16.msra.mxu0 0
  %2728 = vmatprep.subr.bf16.mxu0 0
  %2729 = vmatpush1.bf16.msra.mxu0 0
  %2730 = vmatprep.subr.bf16.mxu0 0
  %2731 = vmatpush1.bf16.msra.mxu0 0
  %2732 = vmatprep.subr.bf16.mxu0 0
  %2733 = vmatpush1.bf16.msra.mxu0 0
  %2734 = vmatprep.subr.bf16.mxu0 0
  %2735 = vmatpush1.bf16.msra.mxu0 0
  %2736 = vmatprep.subr.bf16.mxu0 0
  %2737 = vmatpush1.bf16.msra.mxu0 0
  %2738 = vmatprep.mubr.bf16.mxu0 0
  %2739 = vmatmul.mubr.bf16.gmra.mrb[0].mxu0 %v2698
  %v2740 = vpop.f32.mrb[0].mxu0
  %v2741 = vadd.f32 0.0, %v2740
  %v2742 = vpop.f32.mrb[0].mxu0
  %v2743 = vadd.f32 0.0, %v2742
  %v2744 = vpop.f32.mrb[0].mxu0
  %v2745 = vadd.f32 0.0, %v2744
  %v2746 = vpop.f32.mrb[0].mxu0
  %v2747 = vadd.f32 0.0, %v2746
  %2748 = vmatprep.mubr.bf16.mxu0 0
  %2749 = vmatmul.mubr.bf16.gmra.mrb[0].mxu0 %v2701
  %v2750 = vpop.f32.mrb[0].mxu0
  %v2751 = vadd.f32 0.0, %v2750
  %v2752 = vpop.f32.mrb[0].mxu0
  %v2753 = vadd.f32 0.0, %v2752
  %v2754 = vpop.f32.mrb[0].mxu0
  %v2755 = vadd.f32 0.0, %v2754
  %v2756 = vpop.f32.mrb[0].mxu0
  %v2757 = vadd.f32 0.0, %v2756
  %2758 = vmatprep.mubr.bf16.mxu0 0
  %2759 = vmatmul.mubr.bf16.gmra.mrb[0].mxu0 %v2704
  %v2760 = vpop.f32.mrb[0].mxu0
  %v2761 = vadd.f32 0.0, %v2760
  %v2762 = vpop.f32.mrb[0].mxu0
  %v2763 = vadd.f32 0.0, %v2762
  %v2764 = vpop.f32.mrb[0].mxu0
  %v2765 = vpop.f32.mrb[0].mxu0
  %2766 = vdwg.mxu0
  %v2767 = vpack.c.bf16 %v2741, %v2741
  %v2768 = vpack.c.bf16 %v2743, %v2743
  %v2769 = vpack.c.bf16 %v2745, %v2745
  %v2770 = vpack.c.bf16 %v2747, %v2747
  %v2771 = vpack.c.bf16 %v2751, %v2751
  %v2772 = vpack.c.bf16 %v2753, %v2753
  %v2773 = vpack.c.bf16 %v2755, %v2755
  %v2774 = vpack.c.bf16 %v2757, %v2757
  %v2775 = vpack.c.bf16 %v2761, %v2761
  %v2776 = vpack.c.bf16 %v2763, %v2763
  %v2777 = vld [vmem:[%s13] sm:$0xff]
  %v2778 = vld [vmem:[%s13 + $0x8] sm:$0xff]
  %v2779 = vld [vmem:[%s13 + $0x10] sm:$0xff]
  %v2780 = vld [vmem:[%s13 + $0x18] sm:$0xff]
  %v2781 = vld [vmem:[%s13 + $0x20] sm:$0xff]
  %v2782 = vld [vmem:[%s13 + $0x28] sm:$0xff]
  %v2783 = vld [vmem:[%s13 + $0x30] sm:$0xff]
  %v2784 = vld [vmem:[%s13 + $0x38] sm:$0xff]
  %v2785 = vld [vmem:[%s13 + $0x40] sm:$0xff]
  %v2786 = vld [vmem:[%s13 + $0x48] sm:$0xff]
  %v2787 = vld [vmem:[%s13 + $0x50] sm:$0xff]
  %v2788 = vld [vmem:[%s13 + $0x58] sm:$0xff]
  %v2789 = vld [vmem:[%s13 + $0x60] sm:$0xff]
  %v2790 = vld [vmem:[%s13 + $0x68] sm:$0xff]
  %v2791 = vld [vmem:[%s13 + $0x70] sm:$0xff]
  %v2792 = vld [vmem:[%s13 + $0x78] sm:$0xff]
  %v2793 = vld [vmem:[%s13 + $0x80] sm:$0xff]
  %v2794 = vld [vmem:[%s13 + $0x88] sm:$0xff]
  %v2795 = vld [vmem:[%s13 + $0x90] sm:$0xff]
  %v2796 = vld [vmem:[%s13 + $0x98] sm:$0xff]
  %v2797 = vld [vmem:[%s13 + $0xa0] sm:$0xff]
  %v2798 = vld [vmem:[%s13 + $0xa8] sm:$0xff]
  %v2799 = vld [vmem:[%s13 + $0xb0] sm:$0xff]
  %v2800 = vld [vmem:[%s13 + $0xb8] sm:$0xff]
  %v2801 = vld [vmem:[%s13 + $0xc0] sm:$0xff]
  %v2802 = vld [vmem:[%s13 + $0xc8] sm:$0xff]
  %v2803 = vld [vmem:[%s13 + $0xd0] sm:$0xff]
  %v2804 = vld [vmem:[%s13 + $0xd8] sm:$0xff]
  %v2805 = vld [vmem:[%s13 + $0xe0] sm:$0xff]
  %v2806 = vld [vmem:[%s13 + $0xe8] sm:$0xff]
  %v2807 = vld [vmem:[%s13 + $0xf0] sm:$0xff]
  %v2808 = vld [vmem:[%s13 + $0xf8] sm:$0xff]
  %v2809 = vld [vmem:[%s13 + $0x100] sm:$0xff]
  %v2810 = vld [vmem:[%s13 + $0x108] sm:$0xff]
  %v2811 = vld [vmem:[%s13 + $0x110] sm:$0xff]
  %v2812 = vld [vmem:[%s13 + $0x118] sm:$0xff]
  %v2813 = vld [vmem:[%s13 + $0x120] sm:$0xff]
  %v2814 = vld [vmem:[%s13 + $0x128] sm:$0xff]
  %v2815 = vld [vmem:[%s13 + $0x130] sm:$0xff]
  %v2816 = vld [vmem:[%s13 + $0x138] sm:$0xff]
  %v2817 = vld [vmem:[%s13 + $0x140] sm:$0xff]
  %v2818 = vld [vmem:[%s13 + $0x148] sm:$0xff]
  %v2819 = vld [vmem:[%s13 + $0x150] sm:$0xff]
  %v2820 = vld [vmem:[%s13 + $0x158] sm:$0xff]
  %v2821 = vld [vmem:[%s13 + $0x160] sm:$0xff]
  %v2822 = vld [vmem:[%s13 + $0x168] sm:$0xff]
  %v2823 = vld [vmem:[%s13 + $0x170] sm:$0xff]
  %v2824 = vld [vmem:[%s13 + $0x178] sm:$0xff]
  %v2825 = vld [vmem:[%s13 + $0x180] sm:$0xff]
  %v2826 = vld [vmem:[%s13 + $0x188] sm:$0xff]
  %v2827 = vld [vmem:[%s13 + $0x190] sm:$0xff]
  %v2828 = vld [vmem:[%s13 + $0x198] sm:$0xff]
  %v2829 = vld [vmem:[%s13 + $0x1a0] sm:$0xff]
  %v2830 = vld [vmem:[%s13 + $0x1a8] sm:$0xff]
  %v2831 = vld [vmem:[%s13 + $0x1b0] sm:$0xff]
  %v2832 = vld [vmem:[%s13 + $0x1b8] sm:$0xff]
  %v2833 = vld [vmem:[%s13 + $0x1c0] sm:$0xff]
  %v2834 = vld [vmem:[%s13 + $0x1c8] sm:$0xff]
  %v2835 = vld [vmem:[%s13 + $0x1d0] sm:$0xff]
  %v2836 = vld [vmem:[%s13 + $0x1d8] sm:$0xff]
  %v2837 = vld [vmem:[%s13 + $0x1e0] sm:$0xff]
  %v2838 = vld [vmem:[%s13 + $0x1e8] sm:$0xff]
  %v2839 = vld [vmem:[%s13 + $0x1f0] sm:$0xff]
  %v2840 = vld [vmem:[%s13 + $0x1f8] sm:$0xff]
  %v2841 = vld [vmem:[%s13 + $0x200] sm:$0xff]
  %v2842 = vld [vmem:[%s13 + $0x208] sm:$0xff]
  %v2843 = vld [vmem:[%s13 + $0x210] sm:$0xff]
  %v2844 = vld [vmem:[%s13 + $0x218] sm:$0xff]
  %v2845 = vld [vmem:[%s13 + $0x220] sm:$0xff]
  %v2846 = vld [vmem:[%s13 + $0x228] sm:$0xff]
  %v2847 = vld [vmem:[%s13 + $0x230] sm:$0xff]
  %v2848 = vld [vmem:[%s13 + $0x238] sm:$0xff]
  %v2849 = vld [vmem:[%s13 + $0x240] sm:$0xff]
  %v2850 = vld [vmem:[%s13 + $0x248] sm:$0xff]
  %v2851 = vld [vmem:[%s13 + $0x250] sm:$0xff]
  %v2852 = vld [vmem:[%s13 + $0x258] sm:$0xff]
  %v2853 = vld [vmem:[%s13 + $0x260] sm:$0xff]
  %v2854 = vld [vmem:[%s13 + $0x268] sm:$0xff]
  %v2855 = vld [vmem:[%s13 + $0x270] sm:$0xff]
  %v2856 = vld [vmem:[%s13 + $0x278] sm:$0xff]
  %v2857 = vld [vmem:[%s13 + $0x280] sm:$0xff]
  %v2858 = vld [vmem:[%s13 + $0x288] sm:$0xff]
  %v2859 = vld [vmem:[%s13 + $0x290] sm:$0xff]
  %v2860 = vld [vmem:[%s13 + $0x298] sm:$0xff]
  %v2861 = vld [vmem:[%s13 + $0x2a0] sm:$0xff]
  %v2862 = vld [vmem:[%s13 + $0x2a8] sm:$0xff]
  %v2863 = vld [vmem:[%s13 + $0x2b0] sm:$0xff]
  %v2864 = vld [vmem:[%s13 + $0x2b8] sm:$0xff]
  %v2865 = vld [vmem:[%s13 + $0x2c0] sm:$0xff]
  %v2866 = vld [vmem:[%s13 + $0x2c8] sm:$0xff]
  %v2867 = vld [vmem:[%s13 + $0x2d0] sm:$0xff]
  %v2868 = vld [vmem:[%s13 + $0x2d8] sm:$0xff]
  %v2869 = vld [vmem:[%s13 + $0x2e0] sm:$0xff]
  %v2870 = vld [vmem:[%s13 + $0x2e8] sm:$0xff]
  %v2871 = vld [vmem:[%s13 + $0x2f0] sm:$0xff]
  %v2872 = vld [vmem:[%s13 + $0x2f8] sm:$0xff]
  %v2873 = vld [vmem:[%s13 + $0x300] sm:$0xff]
  %v2874 = vld [vmem:[%s13 + $0x308] sm:$0xff]
  %v2875 = vld [vmem:[%s13 + $0x310] sm:$0xff]
  %v2876 = vld [vmem:[%s13 + $0x318] sm:$0xff]
  %v2877 = vld [vmem:[%s13 + $0x320] sm:$0xff]
  %v2878 = vld [vmem:[%s13 + $0x328] sm:$0xff]
  %v2879 = vld [vmem:[%s13 + $0x330] sm:$0xff]
  %v2880 = vld [vmem:[%s13 + $0x338] sm:$0xff]
  %v2881 = vld [vmem:[%s13 + $0x340] sm:$0xff]
  %v2882 = vld [vmem:[%s13 + $0x348] sm:$0xff]
  %v2883 = vld [vmem:[%s13 + $0x350] sm:$0xff]
  %v2884 = vld [vmem:[%s13 + $0x358] sm:$0xff]
  %v2885 = vld [vmem:[%s13 + $0x360] sm:$0xff]
  %v2886 = vld [vmem:[%s13 + $0x368] sm:$0xff]
  %v2887 = vld [vmem:[%s13 + $0x370] sm:$0xff]
  %v2888 = vld [vmem:[%s13 + $0x378] sm:$0xff]
  %v2889 = vld [vmem:[%s13 + $0x380] sm:$0xff]
  %v2890 = vld [vmem:[%s13 + $0x388] sm:$0xff]
  %v2891 = vld [vmem:[%s13 + $0x390] sm:$0xff]
  %v2892 = vld [vmem:[%s13 + $0x398] sm:$0xff]
  %v2893 = vld [vmem:[%s13 + $0x3a0] sm:$0xff]
  %v2894 = vld [vmem:[%s13 + $0x3a8] sm:$0xff]
  %v2895 = vld [vmem:[%s13 + $0x3b0] sm:$0xff]
  %v2896 = vld [vmem:[%s13 + $0x3b8] sm:$0xff]
  %v2897 = vld [vmem:[%s13 + $0x3c0] sm:$0xff]
  %v2898 = vld [vmem:[%s13 + $0x3c8] sm:$0xff]
  %v2899 = vld [vmem:[%s13 + $0x3d0] sm:$0xff]
  %v2900 = vld [vmem:[%s13 + $0x3d8] sm:$0xff]
  %v2901 = vld [vmem:[%s13 + $0x3e0] sm:$0xff]
  %v2902 = vld [vmem:[%s13 + $0x3e8] sm:$0xff]
  %v2903 = vld [vmem:[%s13 + $0x3f0] sm:$0xff]
  %v2904 = vld [vmem:[%s13 + $0x3f8] sm:$0xff]
  %v2905 = vld [vmem:[%s13 + $0x400] sm:$0xff]
  %v2906 = vld [vmem:[%s13 + $0x408] sm:$0xff]
  %v2907 = vld [vmem:[%s13 + $0x410] sm:$0xff]
  %v2908 = vld [vmem:[%s13 + $0x418] sm:$0xff]
  %v2909 = vld [vmem:[%s13 + $0x420] sm:$0xff]
  %v2910 = vld [vmem:[%s13 + $0x428] sm:$0xff]
  %v2911 = vld [vmem:[%s13 + $0x430] sm:$0xff]
  %v2912 = vld [vmem:[%s13 + $0x438] sm:$0xff]
  %v2913 = vld [vmem:[%s13 + $0x440] sm:$0xff]
  %v2914 = vld [vmem:[%s13 + $0x448] sm:$0xff]
  %v2915 = vld [vmem:[%s13 + $0x450] sm:$0xff]
  %v2916 = vld [vmem:[%s13 + $0x458] sm:$0xff]
  %v2917 = vld [vmem:[%s13 + $0x460] sm:$0xff]
  %v2918 = vld [vmem:[%s13 + $0x468] sm:$0xff]
  %v2919 = vld [vmem:[%s13 + $0x470] sm:$0xff]
  %v2920 = vld [vmem:[%s13 + $0x478] sm:$0xff]
  %v2921 = vld [vmem:[%s13 + $0x480] sm:$0xff]
  %v2922 = vld [vmem:[%s13 + $0x488] sm:$0xff]
  %v2923 = vld [vmem:[%s13 + $0x490] sm:$0xff]
  %v2924 = vld [vmem:[%s13 + $0x498] sm:$0xff]
  %v2925 = vld [vmem:[%s13 + $0x4a0] sm:$0xff]
  %v2926 = vld [vmem:[%s13 + $0x4a8] sm:$0xff]
  %v2927 = vld [vmem:[%s13 + $0x4b0] sm:$0xff]
  %v2928 = vld [vmem:[%s13 + $0x4b8] sm:$0xff]
  %v2929 = vld [vmem:[%s13 + $0x4c0] sm:$0xff]
  %v2930 = vld [vmem:[%s13 + $0x4c8] sm:$0xff]
  %v2931 = vld [vmem:[%s13 + $0x4d0] sm:$0xff]
  %v2932 = vld [vmem:[%s13 + $0x4d8] sm:$0xff]
  %v2933 = vld [vmem:[%s13 + $0x4e0] sm:$0xff]
  %v2934 = vld [vmem:[%s13 + $0x4e8] sm:$0xff]
  %v2935 = vld [vmem:[%s13 + $0x4f0] sm:$0xff]
  %v2936 = vld [vmem:[%s13 + $0x4f8] sm:$0xff]
  %v3097 = vunpack.c.l.b16 %v2777
  %v3098 = vunpack.c.h.b16 %v2777
  %v3099 = vunpack.c.l.b16 %v2778
  %v3100 = vunpack.c.h.b16 %v2778
  %v3101 = vunpack.c.l.b16 %v2779
  %v3102 = vunpack.c.h.b16 %v2779
  %v3103 = vunpack.c.l.b16 %v2780
  %v3104 = vunpack.c.h.b16 %v2780
  %v3105 = vunpack.c.l.b16 %v2781
  %v3106 = vunpack.c.h.b16 %v2781
  %v3107 = vunpack.c.l.b16 %v2782
  %v3108 = vunpack.c.h.b16 %v2782
  %v3109 = vunpack.c.l.b16 %v2783
  %v3110 = vunpack.c.h.b16 %v2783
  %v3111 = vunpack.c.l.b16 %v2784
  %v3112 = vunpack.c.h.b16 %v2784
  %v3113 = vunpack.c.l.b16 %v2785
  %v3114 = vunpack.c.h.b16 %v2785
  %v3115 = vunpack.c.l.b16 %v2786
  %v3116 = vunpack.c.h.b16 %v2786
  %v3117 = vunpack.c.l.b16 %v2787
  %v3118 = vunpack.c.h.b16 %v2787
  %v3119 = vunpack.c.l.b16 %v2788
  %v3120 = vunpack.c.h.b16 %v2788
  %v3121 = vunpack.c.l.b16 %v2789
  %v3122 = vunpack.c.h.b16 %v2789
  %v3123 = vunpack.c.l.b16 %v2790
  %v3124 = vunpack.c.h.b16 %v2790
  %v3125 = vunpack.c.l.b16 %v2791
  %v3126 = vunpack.c.h.b16 %v2791
  %v3127 = vunpack.c.l.b16 %v2792
  %v3128 = vunpack.c.h.b16 %v2792
  %v3129 = vunpack.c.l.b16 %v2793
  %v3130 = vunpack.c.h.b16 %v2793
  %v3131 = vunpack.c.l.b16 %v2794
  %v3132 = vunpack.c.h.b16 %v2794
  %v3133 = vunpack.c.l.b16 %v2795
  %v3134 = vunpack.c.h.b16 %v2795
  %v3135 = vunpack.c.l.b16 %v2796
  %v3136 = vunpack.c.h.b16 %v2796
  %v3137 = vunpack.c.l.b16 %v2797
  %v3138 = vunpack.c.h.b16 %v2797
  %v3139 = vunpack.c.l.b16 %v2798
  %v3140 = vunpack.c.h.b16 %v2798
  %v3141 = vunpack.c.l.b16 %v2799
  %v3142 = vunpack.c.h.b16 %v2799
  %v3143 = vunpack.c.l.b16 %v2800
  %v3144 = vunpack.c.h.b16 %v2800
  %v3145 = vunpack.c.l.b16 %v2801
  %v3146 = vunpack.c.h.b16 %v2801
  %v3147 = vunpack.c.l.b16 %v2802
  %v3148 = vunpack.c.h.b16 %v2802
  %v3149 = vunpack.c.l.b16 %v2803
  %v3150 = vunpack.c.h.b16 %v2803
  %v3151 = vunpack.c.l.b16 %v2804
  %v3152 = vunpack.c.h.b16 %v2804
  %v3153 = vunpack.c.l.b16 %v2805
  %v3154 = vunpack.c.h.b16 %v2805
  %v3155 = vunpack.c.l.b16 %v2806
  %v3156 = vunpack.c.h.b16 %v2806
  %v3157 = vunpack.c.l.b16 %v2807
  %v3158 = vunpack.c.h.b16 %v2807
  %v3159 = vunpack.c.l.b16 %v2808
  %v3160 = vunpack.c.h.b16 %v2808
  %v3161 = vunpack.c.l.b16 %v2809
  %v3162 = vunpack.c.h.b16 %v2809
  %v3163 = vunpack.c.l.b16 %v2810
  %v3164 = vunpack.c.h.b16 %v2810
  %v3165 = vunpack.c.l.b16 %v2811
  %v3166 = vunpack.c.h.b16 %v2811
  %v3167 = vunpack.c.l.b16 %v2812
  %v3168 = vunpack.c.h.b16 %v2812
  %v3169 = vunpack.c.l.b16 %v2813
  %v3170 = vunpack.c.h.b16 %v2813
  %v3171 = vunpack.c.l.b16 %v2814
  %v3172 = vunpack.c.h.b16 %v2814
  %v3173 = vunpack.c.l.b16 %v2815
  %v3174 = vunpack.c.h.b16 %v2815
  %v3175 = vunpack.c.l.b16 %v2816
  %v3176 = vunpack.c.h.b16 %v2816
  %v3177 = vunpack.c.l.b16 %v2817
  %v3178 = vunpack.c.h.b16 %v2817
  %v3179 = vunpack.c.l.b16 %v2818
  %v3180 = vunpack.c.h.b16 %v2818
  %v3181 = vunpack.c.l.b16 %v2819
  %v3182 = vunpack.c.h.b16 %v2819
  %v3183 = vunpack.c.l.b16 %v2820
  %v3184 = vunpack.c.h.b16 %v2820
  %v3185 = vunpack.c.l.b16 %v2821
  %v3186 = vunpack.c.h.b16 %v2821
  %v3187 = vunpack.c.l.b16 %v2822
  %v3188 = vunpack.c.h.b16 %v2822
  %v3189 = vunpack.c.l.b16 %v2823
  %v3190 = vunpack.c.h.b16 %v2823
  %v3191 = vunpack.c.l.b16 %v2824
  %v3192 = vunpack.c.h.b16 %v2824
  %v3193 = vunpack.c.l.b16 %v2825
  %v3194 = vunpack.c.h.b16 %v2825
  %v3195 = vunpack.c.l.b16 %v2826
  %v3196 = vunpack.c.h.b16 %v2826
  %v3197 = vunpack.c.l.b16 %v2827
  %v3198 = vunpack.c.h.b16 %v2827
  %v3199 = vunpack.c.l.b16 %v2828
  %v3200 = vunpack.c.h.b16 %v2828
  %v3201 = vunpack.c.l.b16 %v2829
  %v3202 = vunpack.c.h.b16 %v2829
  %v3203 = vunpack.c.l.b16 %v2830
  %v3204 = vunpack.c.h.b16 %v2830
  %v3205 = vunpack.c.l.b16 %v2831
  %v3206 = vunpack.c.h.b16 %v2831
  %v3207 = vunpack.c.l.b16 %v2832
  %v3208 = vunpack.c.h.b16 %v2832
  %v3209 = vunpack.c.l.b16 %v2833
  %v3210 = vunpack.c.h.b16 %v2833
  %v3211 = vunpack.c.l.b16 %v2834
  %v3212 = vunpack.c.h.b16 %v2834
  %v3213 = vunpack.c.l.b16 %v2835
  %v3214 = vunpack.c.h.b16 %v2835
  %v3215 = vunpack.c.l.b16 %v2836
  %v3216 = vunpack.c.h.b16 %v2836
  %v3217 = vunpack.c.l.b16 %v2837
  %v3218 = vunpack.c.h.b16 %v2837
  %v3219 = vunpack.c.l.b16 %v2838
  %v3220 = vunpack.c.h.b16 %v2838
  %v3221 = vunpack.c.l.b16 %v2839
  %v3222 = vunpack.c.h.b16 %v2839
  %v3223 = vunpack.c.l.b16 %v2840
  %v3224 = vunpack.c.h.b16 %v2840
  %v3225 = vunpack.c.l.b16 %v2841
  %v3226 = vunpack.c.h.b16 %v2841
  %v3227 = vunpack.c.l.b16 %v2842
  %v3228 = vunpack.c.h.b16 %v2842
  %v3229 = vunpack.c.l.b16 %v2843
  %v3230 = vunpack.c.h.b16 %v2843
  %v3231 = vunpack.c.l.b16 %v2844
  %v3232 = vunpack.c.h.b16 %v2844
  %v3233 = vunpack.c.l.b16 %v2845
  %v3234 = vunpack.c.h.b16 %v2845
  %v3235 = vunpack.c.l.b16 %v2846
  %v3236 = vunpack.c.h.b16 %v2846
  %v3237 = vunpack.c.l.b16 %v2847
  %v3238 = vunpack.c.h.b16 %v2847
  %v3239 = vunpack.c.l.b16 %v2848
  %v3240 = vunpack.c.h.b16 %v2848
  %v3241 = vunpack.c.l.b16 %v2849
  %v3242 = vunpack.c.h.b16 %v2849
  %v3243 = vunpack.c.l.b16 %v2850
  %v3244 = vunpack.c.h.b16 %v2850
  %v3245 = vunpack.c.l.b16 %v2851
  %v3246 = vunpack.c.h.b16 %v2851
  %v3247 = vunpack.c.l.b16 %v2852
  %v3248 = vunpack.c.h.b16 %v2852
  %v3249 = vunpack.c.l.b16 %v2853
  %v3250 = vunpack.c.h.b16 %v2853
  %v3251 = vunpack.c.l.b16 %v2854
  %v3252 = vunpack.c.h.b16 %v2854
  %v3253 = vunpack.c.l.b16 %v2855
  %v3254 = vunpack.c.h.b16 %v2855
  %v3255 = vunpack.c.l.b16 %v2856
  %v3256 = vunpack.c.h.b16 %v2856
  %v3257 = vunpack.c.l.b16 %v2857
  %v3258 = vunpack.c.h.b16 %v2857
  %v3259 = vunpack.c.l.b16 %v2858
  %v3260 = vunpack.c.h.b16 %v2858
  %v3261 = vunpack.c.l.b16 %v2859
  %v3262 = vunpack.c.h.b16 %v2859
  %v3263 = vunpack.c.l.b16 %v2860
  %v3264 = vunpack.c.h.b16 %v2860
  %v3265 = vunpack.c.l.b16 %v2861
  %v3266 = vunpack.c.h.b16 %v2861
  %v3267 = vunpack.c.l.b16 %v2862
  %v3268 = vunpack.c.h.b16 %v2862
  %v3269 = vunpack.c.l.b16 %v2863
  %v3270 = vunpack.c.h.b16 %v2863
  %v3271 = vunpack.c.l.b16 %v2864
  %v3272 = vunpack.c.h.b16 %v2864
  %v3273 = vunpack.c.l.b16 %v2865
  %v3274 = vunpack.c.h.b16 %v2865
  %v3275 = vunpack.c.l.b16 %v2866
  %v3276 = vunpack.c.h.b16 %v2866
  %v3277 = vunpack.c.l.b16 %v2867
  %v3278 = vunpack.c.h.b16 %v2867
  %v3279 = vunpack.c.l.b16 %v2868
  %v3280 = vunpack.c.h.b16 %v2868
  %v3281 = vunpack.c.l.b16 %v2869
  %v3282 = vunpack.c.h.b16 %v2869
  %v3283 = vunpack.c.l.b16 %v2870
  %v3284 = vunpack.c.h.b16 %v2870
  %v3285 = vunpack.c.l.b16 %v2871
  %v3286 = vunpack.c.h.b16 %v2871
  %v3287 = vunpack.c.l.b16 %v2872
  %v3288 = vunpack.c.h.b16 %v2872
  %v3289 = vunpack.c.l.b16 %v2873
  %v3290 = vunpack.c.h.b16 %v2873
  %v3291 = vunpack.c.l.b16 %v2874
  %v3292 = vunpack.c.h.b16 %v2874
  %v3293 = vunpack.c.l.b16 %v2875
  %v3294 = vunpack.c.h.b16 %v2875
  %v3295 = vunpack.c.l.b16 %v2876
  %v3296 = vunpack.c.h.b16 %v2876
  %v3297 = vunpack.c.l.b16 %v2877
  %v3298 = vunpack.c.h.b16 %v2877
  %v3299 = vunpack.c.l.b16 %v2878
  %v3300 = vunpack.c.h.b16 %v2878
  %v3301 = vunpack.c.l.b16 %v2879
  %v3302 = vunpack.c.h.b16 %v2879
  %v3303 = vunpack.c.l.b16 %v2880
  %v3304 = vunpack.c.h.b16 %v2880
  %v3305 = vunpack.c.l.b16 %v2881
  %v3306 = vunpack.c.h.b16 %v2881
  %v3307 = vunpack.c.l.b16 %v2882
  %v3308 = vunpack.c.h.b16 %v2882
  %v3309 = vunpack.c.l.b16 %v2883
  %v3310 = vunpack.c.h.b16 %v2883
  %v3311 = vunpack.c.l.b16 %v2884
  %v3312 = vunpack.c.h.b16 %v2884
  %v3313 = vunpack.c.l.b16 %v2885
  %v3314 = vunpack.c.h.b16 %v2885
  %v3315 = vunpack.c.l.b16 %v2886
  %v3316 = vunpack.c.h.b16 %v2886
  %v3317 = vunpack.c.l.b16 %v2887
  %v3318 = vunpack.c.h.b16 %v2887
  %v3319 = vunpack.c.l.b16 %v2888
  %v3320 = vunpack.c.h.b16 %v2888
  %v3321 = vunpack.c.l.b16 %v2889
  %v3322 = vunpack.c.h.b16 %v2889
  %v3323 = vunpack.c.l.b16 %v2890
  %v3324 = vunpack.c.h.b16 %v2890
  %v3325 = vunpack.c.l.b16 %v2891
  %v3326 = vunpack.c.h.b16 %v2891
  %v3327 = vunpack.c.l.b16 %v2892
  %v3328 = vunpack.c.h.b16 %v2892
  %v3329 = vunpack.c.l.b16 %v2893
  %v3330 = vunpack.c.h.b16 %v2893
  %v3331 = vunpack.c.l.b16 %v2894
  %v3332 = vunpack.c.h.b16 %v2894
  %v3333 = vunpack.c.l.b16 %v2895
  %v3334 = vunpack.c.h.b16 %v2895
  %v3335 = vunpack.c.l.b16 %v2896
  %v3336 = vunpack.c.h.b16 %v2896
  %v3337 = vunpack.c.l.b16 %v2897
  %v3338 = vunpack.c.h.b16 %v2897
  %v3339 = vunpack.c.l.b16 %v2898
  %v3340 = vunpack.c.h.b16 %v2898
  %v3341 = vunpack.c.l.b16 %v2899
  %v3342 = vunpack.c.h.b16 %v2899
  %v3343 = vunpack.c.l.b16 %v2900
  %v3344 = vunpack.c.h.b16 %v2900
  %v3345 = vunpack.c.l.b16 %v2901
  %v3346 = vunpack.c.h.b16 %v2901
  %v3347 = vunpack.c.l.b16 %v2902
  %v3348 = vunpack.c.h.b16 %v2902
  %v3349 = vunpack.c.l.b16 %v2903
  %v3350 = vunpack.c.h.b16 %v2903
  %v3351 = vunpack.c.l.b16 %v2904
  %v3352 = vunpack.c.h.b16 %v2904
  %v3353 = vunpack.c.l.b16 %v2905
  %v3354 = vunpack.c.h.b16 %v2905
  %v3355 = vunpack.c.l.b16 %v2906
  %v3356 = vunpack.c.h.b16 %v2906
  %v3357 = vunpack.c.l.b16 %v2907
  %v3358 = vunpack.c.h.b16 %v2907
  %v3359 = vunpack.c.l.b16 %v2908
  %v3360 = vunpack.c.h.b16 %v2908
  %v3361 = vunpack.c.l.b16 %v2909
  %v3362 = vunpack.c.h.b16 %v2909
  %v3363 = vunpack.c.l.b16 %v2910
  %v3364 = vunpack.c.h.b16 %v2910
  %v3365 = vunpack.c.l.b16 %v2911
  %v3366 = vunpack.c.h.b16 %v2911
  %v3367 = vunpack.c.l.b16 %v2912
  %v3368 = vunpack.c.h.b16 %v2912
  %v3369 = vunpack.c.l.b16 %v2913
  %v3370 = vunpack.c.h.b16 %v2913
  %v3371 = vunpack.c.l.b16 %v2914
  %v3372 = vunpack.c.h.b16 %v2914
  %v3373 = vunpack.c.l.b16 %v2915
  %v3374 = vunpack.c.h.b16 %v2915
  %v3375 = vunpack.c.l.b16 %v2916
  %v3376 = vunpack.c.h.b16 %v2916
  %v3377 = vunpack.c.l.b16 %v2917
  %v3378 = vunpack.c.h.b16 %v2917
  %v3379 = vunpack.c.l.b16 %v2918
  %v3380 = vunpack.c.h.b16 %v2918
  %v3381 = vunpack.c.l.b16 %v2919
  %v3382 = vunpack.c.h.b16 %v2919
  %v3383 = vunpack.c.l.b16 %v2920
  %v3384 = vunpack.c.h.b16 %v2920
  %v3385 = vunpack.c.l.b16 %v2921
  %v3386 = vunpack.c.h.b16 %v2921
  %v3387 = vunpack.c.l.b16 %v2922
  %v3388 = vunpack.c.h.b16 %v2922
  %v3389 = vunpack.c.l.b16 %v2923
  %v3390 = vunpack.c.h.b16 %v2923
  %v3391 = vunpack.c.l.b16 %v2924
  %v3392 = vunpack.c.h.b16 %v2924
  %v3393 = vunpack.c.l.b16 %v2925
  %v3394 = vunpack.c.h.b16 %v2925
  %v3395 = vunpack.c.l.b16 %v2926
  %v3396 = vunpack.c.h.b16 %v2926
  %v3397 = vunpack.c.l.b16 %v2927
  %v3398 = vunpack.c.h.b16 %v2927
  %v3399 = vunpack.c.l.b16 %v2928
  %v3400 = vunpack.c.h.b16 %v2928
  %v3401 = vunpack.c.l.b16 %v2929
  %v3402 = vunpack.c.h.b16 %v2929
  %v3403 = vunpack.c.l.b16 %v2930
  %v3404 = vunpack.c.h.b16 %v2930
  %v3405 = vunpack.c.l.b16 %v2931
  %v3406 = vunpack.c.h.b16 %v2931
  %v3407 = vunpack.c.l.b16 %v2932
  %v3408 = vunpack.c.h.b16 %v2932
  %v3409 = vunpack.c.l.b16 %v2933
  %v3410 = vunpack.c.h.b16 %v2933
  %v3411 = vunpack.c.l.b16 %v2934
  %v3412 = vunpack.c.h.b16 %v2934
  %v3413 = vunpack.c.l.b16 %v2935
  %v3414 = vunpack.c.h.b16 %v2935
  %v3415 = vunpack.c.l.b16 %v2936
  %v3416 = vunpack.c.h.b16 %v2936
  %v3417 = vpack.c.b16 %v3099, %v3097
  %v3418 = vpack.c.b16 %v3100, %v3098
  %v3419 = vpack.c.b16 %v3103, %v3101
  %v3420 = vpack.c.b16 %v3104, %v3102
  %v3421 = vpack.c.b16 %v3107, %v3105
  %v3422 = vpack.c.b16 %v3108, %v3106
  %v3423 = vpack.c.b16 %v3111, %v3109
  %v3424 = vpack.c.b16 %v3112, %v3110
  %v3425 = vpack.c.b16 %v3115, %v3113
  %v3426 = vpack.c.b16 %v3116, %v3114
  %v3427 = vpack.c.b16 %v3119, %v3117
  %v3428 = vpack.c.b16 %v3120, %v3118
  %v3429 = vpack.c.b16 %v3123, %v3121
  %v3430 = vpack.c.b16 %v3124, %v3122
  %v3431 = vpack.c.b16 %v3127, %v3125
  %v3432 = vpack.c.b16 %v3128, %v3126
  %v3433 = vpack.c.b16 %v3131, %v3129
  %v3434 = vpack.c.b16 %v3132, %v3130
  %v3435 = vpack.c.b16 %v3135, %v3133
  %v3436 = vpack.c.b16 %v3136, %v3134
  %v3437 = vpack.c.b16 %v3139, %v3137
  %v3438 = vpack.c.b16 %v3140, %v3138
  %v3439 = vpack.c.b16 %v3143, %v3141
  %v3440 = vpack.c.b16 %v3144, %v3142
  %v3441 = vpack.c.b16 %v3147, %v3145
  %v3442 = vpack.c.b16 %v3148, %v3146
  %v3443 = vpack.c.b16 %v3151, %v3149
  %v3444 = vpack.c.b16 %v3152, %v3150
  %v3445 = vpack.c.b16 %v3155, %v3153
  %v3446 = vpack.c.b16 %v3156, %v3154
  %v3447 = vpack.c.b16 %v3159, %v3157
  %v3448 = vpack.c.b16 %v3160, %v3158
  %v3449 = vpack.c.b16 %v3163, %v3161
  %v3450 = vpack.c.b16 %v3164, %v3162
  %v3451 = vpack.c.b16 %v3167, %v3165
  %v3452 = vpack.c.b16 %v3168, %v3166
  %v3453 = vpack.c.b16 %v3171, %v3169
  %v3454 = vpack.c.b16 %v3172, %v3170
  %v3455 = vpack.c.b16 %v3175, %v3173
  %v3456 = vpack.c.b16 %v3176, %v3174
  %v3457 = vpack.c.b16 %v3179, %v3177
  %v3458 = vpack.c.b16 %v3180, %v3178
  %v3459 = vpack.c.b16 %v3183, %v3181
  %v3460 = vpack.c.b16 %v3184, %v3182
  %v3461 = vpack.c.b16 %v3187, %v3185
  %v3462 = vpack.c.b16 %v3188, %v3186
  %v3463 = vpack.c.b16 %v3191, %v3189
  %v3464 = vpack.c.b16 %v3192, %v3190
  %v3465 = vpack.c.b16 %v3195, %v3193
  %v3466 = vpack.c.b16 %v3196, %v3194
  %v3467 = vpack.c.b16 %v3199, %v3197
  %v3468 = vpack.c.b16 %v3200, %v3198
  %v3469 = vpack.c.b16 %v3203, %v3201
  %v3470 = vpack.c.b16 %v3204, %v3202
  %v3471 = vpack.c.b16 %v3207, %v3205
  %v3472 = vpack.c.b16 %v3208, %v3206
  %v3473 = vpack.c.b16 %v3211, %v3209
  %v3474 = vpack.c.b16 %v3212, %v3210
  %v3475 = vpack.c.b16 %v3215, %v3213
  %v3476 = vpack.c.b16 %v3216, %v3214
  %v3477 = vpack.c.b16 %v3219, %v3217
  %v3478 = vpack.c.b16 %v3220, %v3218
  %v3479 = vpack.c.b16 %v3223, %v3221
  %v3480 = vpack.c.b16 %v3224, %v3222
  %v3481 = vpack.c.b16 %v3227, %v3225
  %v3482 = vpack.c.b16 %v3228, %v3226
  %v3483 = vpack.c.b16 %v3231, %v3229
  %v3484 = vpack.c.b16 %v3232, %v3230
  %v3485 = vpack.c.b16 %v3235, %v3233
  %v3486 = vpack.c.b16 %v3236, %v3234
  %v3487 = vpack.c.b16 %v3239, %v3237
  %v3488 = vpack.c.b16 %v3240, %v3238
  %v3489 = vpack.c.b16 %v3243, %v3241
  %v3490 = vpack.c.b16 %v3244, %v3242
  %v3491 = vpack.c.b16 %v3247, %v3245
  %v3492 = vpack.c.b16 %v3248, %v3246
  %v3493 = vpack.c.b16 %v3251, %v3249
  %v3494 = vpack.c.b16 %v3252, %v3250
  %v3495 = vpack.c.b16 %v3255, %v3253
  %v3496 = vpack.c.b16 %v3256, %v3254
  %v3497 = vpack.c.b16 %v3259, %v3257
  %v3498 = vpack.c.b16 %v3260, %v3258
  %v3499 = vpack.c.b16 %v3263, %v3261
  %v3500 = vpack.c.b16 %v3264, %v3262
  %v3501 = vpack.c.b16 %v3267, %v3265
  %v3502 = vpack.c.b16 %v3268, %v3266
  %v3503 = vpack.c.b16 %v3271, %v3269
  %v3504 = vpack.c.b16 %v3272, %v3270
  %v3505 = vpack.c.b16 %v3275, %v3273
  %v3506 = vpack.c.b16 %v3276, %v3274
  %v3507 = vpack.c.b16 %v3279, %v3277
  %v3508 = vpack.c.b16 %v3280, %v3278
  %v3509 = vpack.c.b16 %v3283, %v3281
  %v3510 = vpack.c.b16 %v3284, %v3282
  %v3511 = vpack.c.b16 %v3287, %v3285
  %v3512 = vpack.c.b16 %v3288, %v3286
  %v3513 = vpack.c.b16 %v3291, %v3289
  %v3514 = vpack.c.b16 %v3292, %v3290
  %v3515 = vpack.c.b16 %v3295, %v3293
  %v3516 = vpack.c.b16 %v3296, %v3294
  %v3517 = vpack.c.b16 %v3299, %v3297
  %v3518 = vpack.c.b16 %v3300, %v3298
  %v3519 = vpack.c.b16 %v3303, %v3301
  %v3520 = vpack.c.b16 %v3304, %v3302
  %v3521 = vpack.c.b16 %v3307, %v3305
  %v3522 = vpack.c.b16 %v3308, %v3306
  %v3523 = vpack.c.b16 %v3311, %v3309
  %v3524 = vpack.c.b16 %v3312, %v3310
  %v3525 = vpack.c.b16 %v3315, %v3313
  %v3526 = vpack.c.b16 %v3316, %v3314
  %v3527 = vpack.c.b16 %v3319, %v3317
  %v3528 = vpack.c.b16 %v3320, %v3318
  %v3529 = vpack.c.b16 %v3323, %v3321
  %v3530 = vpack.c.b16 %v3324, %v3322
  %v3531 = vpack.c.b16 %v3327, %v3325
  %v3532 = vpack.c.b16 %v3328, %v3326
  %v3533 = vpack.c.b16 %v3331, %v3329
  %v3534 = vpack.c.b16 %v3332, %v3330
  %v3535 = vpack.c.b16 %v3335, %v3333
  %v3536 = vpack.c.b16 %v3336, %v3334
  %v3537 = vpack.c.b16 %v3339, %v3337
  %v3538 = vpack.c.b16 %v3340, %v3338
  %v3539 = vpack.c.b16 %v3343, %v3341
  %v3540 = vpack.c.b16 %v3344, %v3342
  %v3541 = vpack.c.b16 %v3347, %v3345
  %v3542 = vpack.c.b16 %v3348, %v3346
  %v3543 = vpack.c.b16 %v3351, %v3349
  %v3544 = vpack.c.b16 %v3352, %v3350
  %v3545 = vpack.c.b16 %v3355, %v3353
  %v3546 = vpack.c.b16 %v3356, %v3354
  %v3547 = vpack.c.b16 %v3359, %v3357
  %v3548 = vpack.c.b16 %v3360, %v3358
  %v3549 = vpack.c.b16 %v3363, %v3361
  %v3550 = vpack.c.b16 %v3364, %v3362
  %v3551 = vpack.c.b16 %v3367, %v3365
  %v3552 = vpack.c.b16 %v3368, %v3366
  %v3553 = vpack.c.b16 %v3371, %v3369
  %v3554 = vpack.c.b16 %v3372, %v3370
  %v3555 = vpack.c.b16 %v3375, %v3373
  %v3556 = vpack.c.b16 %v3376, %v3374
  %v3557 = vpack.c.b16 %v3379, %v3377
  %v3558 = vpack.c.b16 %v3380, %v3378
  %v3559 = vpack.c.b16 %v3383, %v3381
  %v3560 = vpack.c.b16 %v3384, %v3382
  %v3561 = vpack.c.b16 %v3387, %v3385
  %v3562 = vpack.c.b16 %v3388, %v3386
  %v3563 = vpack.c.b16 %v3391, %v3389
  %v3564 = vpack.c.b16 %v3392, %v3390
  %v3565 = vpack.c.b16 %v3395, %v3393
  %v3566 = vpack.c.b16 %v3396, %v3394
  %v3567 = vpack.c.b16 %v3399, %v3397
  %v3568 = vpack.c.b16 %v3400, %v3398
  %v3569 = vpack.c.b16 %v3403, %v3401
  %v3570 = vpack.c.b16 %v3404, %v3402
  %v3571 = vpack.c.b16 %v3407, %v3405
  %v3572 = vpack.c.b16 %v3408, %v3406
  %v3573 = vpack.c.b16 %v3411, %v3409
  %v3574 = vpack.c.b16 %v3412, %v3410
  %v3575 = vpack.c.b16 %v3415, %v3413
  %v3576 = vpack.c.b16 %v3416, %v3414
  %3737 = vmatprep.subr.bf16.mxu0 %v3418
  %3738 = vmatpush1.bf16.msra.mxu0 %v3417
  %3739 = vmatprep.subr.bf16.mxu0 %v3420
  %3740 = vmatpush1.bf16.msra.mxu0 %v3419
  %3741 = vmatprep.subr.bf16.mxu0 %v3422
  %3742 = vmatpush1.bf16.msra.mxu0 %v3421
  %3743 = vmatprep.subr.bf16.mxu0 %v3424
  %3744 = vmatpush1.bf16.msra.mxu0 %v3423
  %3745 = vmatprep.subr.bf16.mxu0 %v3426
  %3746 = vmatpush1.bf16.msra.mxu0 %v3425
  %3747 = vmatprep.subr.bf16.mxu0 %v3428
  %3748 = vmatpush1.bf16.msra.mxu0 %v3427
  %3749 = vmatprep.subr.bf16.mxu0 %v3430
  %3750 = vmatpush1.bf16.msra.mxu0 %v3429
  %3751 = vmatprep.subr.bf16.mxu0 %v3432
  %3752 = vmatpush1.bf16.msra.mxu0 %v3431
  %3753 = vmatprep.subr.bf16.mxu0 %v3434
  %3754 = vmatpush1.bf16.msra.mxu0 %v3433
  %3755 = vmatprep.subr.bf16.mxu0 %v3436
  %3756 = vmatpush1.bf16.msra.mxu0 %v3435
  %3757 = vmatprep.subr.bf16.mxu0 %v3438
  %3758 = vmatpush1.bf16.msra.mxu0 %v3437
  %3759 = vmatprep.subr.bf16.mxu0 %v3440
  %3760 = vmatpush1.bf16.msra.mxu0 %v3439
  %3761 = vmatprep.subr.bf16.mxu0 %v3442
  %3762 = vmatpush1.bf16.msra.mxu0 %v3441
  %3763 = vmatprep.subr.bf16.mxu0 %v3444
  %3764 = vmatpush1.bf16.msra.mxu0 %v3443
  %3765 = vmatprep.subr.bf16.mxu0 %v3446
  %3766 = vmatpush1.bf16.msra.mxu0 %v3445
  %3767 = vmatprep.subr.bf16.mxu0 %v3448
  %3768 = vmatpush1.bf16.msra.mxu0 %v3447
  %3769 = vmatprep.mubr.bf16.mxu0 %v2768
  %3770 = vmatmul.mubr.bf16.gmra.mrb[0].mxu0 %v2767
  %v3771 = vpop.f32.mrb[0].mxu0
  %v3772 = vadd.f32 0.0, %v3771
  %v3773 = vpop.f32.mrb[0].mxu0
  %v3774 = vadd.f32 0.0, %v3773
  %v3775 = vpop.f32.mrb[0].mxu0
  %v3776 = vpop.f32.mrb[0].mxu0
  %3777 = vdwg.mxu0
  %3778 = vmatprep.subr.bf16.mxu0 %v3450
  %3779 = vmatpush1.bf16.msra.mxu0 %v3449
  %3780 = vmatprep.subr.bf16.mxu0 %v3452
  %3781 = vmatpush1.bf16.msra.mxu0 %v3451
  %3782 = vmatprep.subr.bf16.mxu0 %v3454
  %3783 = vmatpush1.bf16.msra.mxu0 %v3453
  %3784 = vmatprep.subr.bf16.mxu0 %v3456
  %3785 = vmatpush1.bf16.msra.mxu0 %v3455
  %3786 = vmatprep.subr.bf16.mxu0 %v3458
  %3787 = vmatpush1.bf16.msra.mxu0 %v3457
  %3788 = vmatprep.subr.bf16.mxu0 %v3460
  %3789 = vmatpush1.bf16.msra.mxu0 %v3459
  %3790 = vmatprep.subr.bf16.mxu0 %v3462
  %3791 = vmatpush1.bf16.msra.mxu0 %v3461
  %3792 = vmatprep.subr.bf16.mxu0 %v3464
  %3793 = vmatpush1.bf16.msra.mxu0 %v3463
  %3794 = vmatprep.subr.bf16.mxu0 %v3466
  %3795 = vmatpush1.bf16.msra.mxu0 %v3465
  %3796 = vmatprep.subr.bf16.mxu0 %v3468
  %3797 = vmatpush1.bf16.msra.mxu0 %v3467
  %3798 = vmatprep.subr.bf16.mxu0 %v3470
  %3799 = vmatpush1.bf16.msra.mxu0 %v3469
  %3800 = vmatprep.subr.bf16.mxu0 %v3472
  %3801 = vmatpush1.bf16.msra.mxu0 %v3471
  %3802 = vmatprep.subr.bf16.mxu0 %v3474
  %3803 = vmatpush1.bf16.msra.mxu0 %v3473
  %3804 = vmatprep.subr.bf16.mxu0 %v3476
  %3805 = vmatpush1.bf16.msra.mxu0 %v3475
  %3806 = vmatprep.subr.bf16.mxu0 %v3478
  %3807 = vmatpush1.bf16.msra.mxu0 %v3477
  %3808 = vmatprep.subr.bf16.mxu0 %v3480
  %3809 = vmatpush1.bf16.msra.mxu0 %v3479
  %3810 = vmatprep.mubr.bf16.mxu0 %v2770
  %3811 = vmatmul.mubr.bf16.gmra.mrb[0].mxu0 %v2769
  %v3812 = vpop.f32.mrb[0].mxu0
  %v3813 = vadd.f32 %v3772, %v3812
  %v3814 = vpop.f32.mrb[0].mxu0
  %v3815 = vadd.f32 %v3774, %v3814
  %v3816 = vpop.f32.mrb[0].mxu0
  %v3817 = vpop.f32.mrb[0].mxu0
  %3818 = vdwg.mxu0
  %3819 = vmatprep.subr.bf16.mxu0 %v3482
  %3820 = vmatpush1.bf16.msra.mxu0 %v3481
  %3821 = vmatprep.subr.bf16.mxu0 %v3484
  %3822 = vmatpush1.bf16.msra.mxu0 %v3483
  %3823 = vmatprep.subr.bf16.mxu0 %v3486
  %3824 = vmatpush1.bf16.msra.mxu0 %v3485
  %3825 = vmatprep.subr.bf16.mxu0 %v3488
  %3826 = vmatpush1.bf16.msra.mxu0 %v3487
  %3827 = vmatprep.subr.bf16.mxu0 %v3490
  %3828 = vmatpush1.bf16.msra.mxu0 %v3489
  %3829 = vmatprep.subr.bf16.mxu0 %v3492
  %3830 = vmatpush1.bf16.msra.mxu0 %v3491
  %3831 = vmatprep.subr.bf16.mxu0 %v3494
  %3832 = vmatpush1.bf16.msra.mxu0 %v3493
  %3833 = vmatprep.subr.bf16.mxu0 %v3496
  %3834 = vmatpush1.bf16.msra.mxu0 %v3495
  %3835 = vmatprep.subr.bf16.mxu0 %v3498
  %3836 = vmatpush1.bf16.msra.mxu0 %v3497
  %3837 = vmatprep.subr.bf16.mxu0 %v3500
  %3838 = vmatpush1.bf16.msra.mxu0 %v3499
  %3839 = vmatprep.subr.bf16.mxu0 %v3502
  %3840 = vmatpush1.bf16.msra.mxu0 %v3501
  %3841 = vmatprep.subr.bf16.mxu0 %v3504
  %3842 = vmatpush1.bf16.msra.mxu0 %v3503
  %3843 = vmatprep.subr.bf16.mxu0 %v3506
  %3844 = vmatpush1.bf16.msra.mxu0 %v3505
  %3845 = vmatprep.subr.bf16.mxu0 %v3508
  %3846 = vmatpush1.bf16.msra.mxu0 %v3507
  %3847 = vmatprep.subr.bf16.mxu0 %v3510
  %3848 = vmatpush1.bf16.msra.mxu0 %v3509
  %3849 = vmatprep.subr.bf16.mxu0 %v3512
  %3850 = vmatpush1.bf16.msra.mxu0 %v3511
  %3851 = vmatprep.mubr.bf16.mxu0 %v2772
  %3852 = vmatmul.mubr.bf16.gmra.mrb[0].mxu0 %v2771
  %v3853 = vpop.f32.mrb[0].mxu0
  %v3854 = vadd.f32 %v3813, %v3853
  %v3855 = vpop.f32.mrb[0].mxu0
  %v3856 = vadd.f32 %v3815, %v3855
  %v3857 = vpop.f32.mrb[0].mxu0
  %v3858 = vpop.f32.mrb[0].mxu0
  %3859 = vdwg.mxu0
  %3860 = vmatprep.subr.bf16.mxu0 %v3514
  %3861 = vmatpush1.bf16.msra.mxu0 %v3513
  %3862 = vmatprep.subr.bf16.mxu0 %v3516
  %3863 = vmatpush1.bf16.msra.mxu0 %v3515
  %3864 = vmatprep.subr.bf16.mxu0 %v3518
  %3865 = vmatpush1.bf16.msra.mxu0 %v3517
  %3866 = vmatprep.subr.bf16.mxu0 %v3520
  %3867 = vmatpush1.bf16.msra.mxu0 %v3519
  %3868 = vmatprep.subr.bf16.mxu0 %v3522
  %3869 = vmatpush1.bf16.msra.mxu0 %v3521
  %3870 = vmatprep.subr.bf16.mxu0 %v3524
  %3871 = vmatpush1.bf16.msra.mxu0 %v3523
  %3872 = vmatprep.subr.bf16.mxu0 %v3526
  %3873 = vmatpush1.bf16.msra.mxu0 %v3525
  %3874 = vmatprep.subr.bf16.mxu0 %v3528
  %3875 = vmatpush1.bf16.msra.mxu0 %v3527
  %3876 = vmatprep.subr.bf16.mxu0 %v3530
  %3877 = vmatpush1.bf16.msra.mxu0 %v3529
  %3878 = vmatprep.subr.bf16.mxu0 %v3532
  %3879 = vmatpush1.bf16.msra.mxu0 %v3531
  %3880 = vmatprep.subr.bf16.mxu0 %v3534
  %3881 = vmatpush1.bf16.msra.mxu0 %v3533
  %3882 = vmatprep.subr.bf16.mxu0 %v3536
  %3883 = vmatpush1.bf16.msra.mxu0 %v3535
  %3884 = vmatprep.subr.bf16.mxu0 %v3538
  %3885 = vmatpush1.bf16.msra.mxu0 %v3537
  %3886 = vmatprep.subr.bf16.mxu0 %v3540
  %3887 = vmatpush1.bf16.msra.mxu0 %v3539
  %3888 = vmatprep.subr.bf16.mxu0 %v3542
  %3889 = vmatpush1.bf16.msra.mxu0 %v3541
  %3890 = vmatprep.subr.bf16.mxu0 %v3544
  %3891 = vmatpush1.bf16.msra.mxu0 %v3543
  %3892 = vmatprep.mubr.bf16.mxu0 %v2774
  %3893 = vmatmul.mubr.bf16.gmra.mrb[0].mxu0 %v2773
  %v3894 = vpop.f32.mrb[0].mxu0
  %v3895 = vadd.f32 %v3854, %v3894
  %v3896 = vpop.f32.mrb[0].mxu0
  %v3897 = vadd.f32 %v3856, %v3896
  %v3898 = vpop.f32.mrb[0].mxu0
  %v3899 = vpop.f32.mrb[0].mxu0
  %3900 = vdwg.mxu0
  %3901 = vmatprep.subr.bf16.mxu0 %v3546
  %3902 = vmatpush1.bf16.msra.mxu0 %v3545
  %3903 = vmatprep.subr.bf16.mxu0 %v3548
  %3904 = vmatpush1.bf16.msra.mxu0 %v3547
  %3905 = vmatprep.subr.bf16.mxu0 %v3550
  %3906 = vmatpush1.bf16.msra.mxu0 %v3549
  %3907 = vmatprep.subr.bf16.mxu0 %v3552
  %3908 = vmatpush1.bf16.msra.mxu0 %v3551
  %3909 = vmatprep.subr.bf16.mxu0 %v3554
  %3910 = vmatpush1.bf16.msra.mxu0 %v3553
  %3911 = vmatprep.subr.bf16.mxu0 %v3556
  %3912 = vmatpush1.bf16.msra.mxu0 %v3555
  %3913 = vmatprep.subr.bf16.mxu0 %v3558
  %3914 = vmatpush1.bf16.msra.mxu0 %v3557
  %3915 = vmatprep.subr.bf16.mxu0 %v3560
  %3916 = vmatpush1.bf16.msra.mxu0 %v3559
  %3917 = vmatprep.subr.bf16.mxu0 %v3562
  %3918 = vmatpush1.bf16.msra.mxu0 %v3561
  %3919 = vmatprep.subr.bf16.mxu0 %v3564
  %3920 = vmatpush1.bf16.msra.mxu0 %v3563
  %3921 = vmatprep.subr.bf16.mxu0 %v3566
  %3922 = vmatpush1.bf16.msra.mxu0 %v3565
  %3923 = vmatprep.subr.bf16.mxu0 %v3568
  %3924 = vmatpush1.bf16.msra.mxu0 %v3567
  %3925 = vmatprep.subr.bf16.mxu0 %v3570
  %3926 = vmatpush1.bf16.msra.mxu0 %v3569
  %3927 = vmatprep.subr.bf16.mxu0 %v3572
  %3928 = vmatpush1.bf16.msra.mxu0 %v3571
  %3929 = vmatprep.subr.bf16.mxu0 %v3574
  %3930 = vmatpush1.bf16.msra.mxu0 %v3573
  %3931 = vmatprep.subr.bf16.mxu0 %v3576
  %3932 = vmatpush1.bf16.msra.mxu0 %v3575
  %3933 = vmatprep.mubr.bf16.mxu0 %v2776
  %3934 = vmatmul.mubr.bf16.gmra.mrb[0].mxu0 %v2775
  %v3935 = vpop.f32.mrb[0].mxu0
  %v3936 = vadd.f32 %v3895, %v3935
  %v3937 = vpop.f32.mrb[0].mxu0
  %v3938 = vadd.f32 %v3897, %v3937
  %v3939 = vpop.f32.mrb[0].mxu0
  %v3940 = vpop.f32.mrb[0].mxu0
  %3941 = vdwg.mxu0
  %v3942 = vrot.slane %v3936, 4
  %v3943 = vadd.f32 %v3936, %v3942
  %v3944 = vrot.slane %v3943, 2
  %v3945 = vadd.f32 %v3943, %v3944
  %v3946 = vrot.slane %v3945, 1
  %v3947 = vadd.f32 %v3945, %v3946
  %v3948 = vrot.slane %v3938, 4
  %v3949 = vadd.f32 %v3938, %v3948
  %v3950 = vrot.slane %v3949, 2
  %v3951 = vadd.f32 %v3949, %v3950
  %v3952 = vrot.slane %v3951, 1
  %v3953 = vadd.f32 %v3951, %v3952
  %v3954 = vmul.f32 %v3936, %v3936
  %v3955 = vmul.f32 %v3938, %v3938
  %v3956 = vrot.slane %v3954, 4
  %v3957 = vadd.f32 %v3954, %v3956
  %v3958 = vrot.slane %v3957, 2
  %v3959 = vadd.f32 %v3957, %v3958
  %v3960 = vrot.slane %v3959, 1
  %v3961 = vadd.f32 %v3959, %v3960
  %v3962 = vrot.slane %v3955, 4
  %v3963 = vadd.f32 %v3955, %v3962
  %v3964 = vrot.slane %v3963, 2
  %v3965 = vadd.f32 %v3963, %v3964
  %v3966 = vrot.slane %v3965, 1
  %v3967 = vadd.f32 %v3965, %v3966
  %v3968 = vsel %vm810, %v3947, %v3961
  %v3969 = vsel %vm810, %v3953, %v3967
  %v3970 = vld [vmem:[%s14] sm:$0xff]
  %v3971 = vld [vmem:[%s14 + $0x8] sm:$0xff]
  %v3972 = vld [vmem:[%s14 + $0x10] sm:$0xff]
  %v3973 = vld [vmem:[%s14 + $0x18] sm:$0xff]
  %v3974 = vld [vmem:[%s14 + $0x20] sm:$0xff]
  %v3975 = vld [vmem:[%s14 + $0x28] sm:$0xff]
  %v3976 = vld [vmem:[%s14 + $0x30] sm:$0xff]
  %v3977 = vld [vmem:[%s14 + $0x38] sm:$0xff]
  %v3978 = vld [vmem:[%s14 + $0x40] sm:$0xff]
  %v3979 = vld [vmem:[%s14 + $0x48] sm:$0xff]
  %v3980 = vld [vmem:[%s14 + $0x50] sm:$0xff]
  %v3981 = vld [vmem:[%s14 + $0x58] sm:$0xff]
  %v3982 = vld [vmem:[%s14 + $0x60] sm:$0xff]
  %v3983 = vld [vmem:[%s14 + $0x68] sm:$0xff]
  %v3984 = vld [vmem:[%s14 + $0x70] sm:$0xff]
  %v3985 = vld [vmem:[%s14 + $0x78] sm:$0xff]
  %v3986 = vld [vmem:[%s14 + $0x80] sm:$0xff]
  %v3987 = vld [vmem:[%s14 + $0x88] sm:$0xff]
  %v3988 = vld [vmem:[%s14 + $0x90] sm:$0xff]
  %v3989 = vld [vmem:[%s14 + $0x98] sm:$0xff]
  %v3990 = vld [vmem:[%s14 + $0xa0] sm:$0xff]
  %v3991 = vld [vmem:[%s14 + $0xa8] sm:$0xff]
  %v3992 = vld [vmem:[%s14 + $0xb0] sm:$0xff]
  %v3993 = vld [vmem:[%s14 + $0xb8] sm:$0xff]
  %v3994 = vld [vmem:[%s14 + $0xc0] sm:$0xff]
  %v3995 = vld [vmem:[%s14 + $0xc8] sm:$0xff]
  %v3996 = vld [vmem:[%s14 + $0xd0] sm:$0xff]
  %v3997 = vld [vmem:[%s14 + $0xd8] sm:$0xff]
  %v3998 = vld [vmem:[%s14 + $0xe0] sm:$0xff]
  %v3999 = vld [vmem:[%s14 + $0xe8] sm:$0xff]
  %v4000 = vld [vmem:[%s14 + $0xf0] sm:$0xff]
  %v4001 = vld [vmem:[%s14 + $0xf8] sm:$0xff]
  %4002 = vmatprep.subr.mxu0 0.0
  %4003 = vmatpush1.msra.mxu0 %v3970
  %4004 = vmatprep.subr.mxu0 0.0
  %4005 = vmatpush1.msra.mxu0 %v3971
  %4006 = vmatprep.subr.mxu0 0.0
  %4007 = vmatpush1.msra.mxu0 %v3972
  %4008 = vmatprep.subr.mxu0 0.0
  %4009 = vmatpush1.msra.mxu0 %v3973
  %4010 = vmatprep.subr.mxu0 0.0
  %4011 = vmatpush1.msra.mxu0 %v3974
  %4012 = vmatprep.subr.mxu0 0.0
  %4013 = vmatpush1.msra.mxu0 %v3975
  %4014 = vmatprep.subr.mxu0 0.0
  %4015 = vmatpush1.msra.mxu0 %v3976
  %4016 = vmatprep.subr.mxu0 0.0
  %4017 = vmatpush1.msra.mxu0 %v3977
  %4018 = vmatprep.subr.mxu0 0.0
  %4019 = vmatpush1.msra.mxu0 %v3978
  %4020 = vmatprep.subr.mxu0 0.0
  %4021 = vmatpush1.msra.mxu0 %v3979
  %4022 = vmatprep.subr.mxu0 0.0
  %4023 = vmatpush1.msra.mxu0 %v3980
  %4024 = vmatprep.subr.mxu0 0.0
  %4025 = vmatpush1.msra.mxu0 %v3981
  %4026 = vmatprep.subr.mxu0 0.0
  %4027 = vmatpush1.msra.mxu0 %v3982
  %4028 = vmatprep.subr.mxu0 0.0
  %4029 = vmatpush1.msra.mxu0 %v3983
  %4030 = vmatprep.subr.mxu0 0.0
  %4031 = vmatpush1.msra.mxu0 %v3984
  %4032 = vmatprep.subr.mxu0 0.0
  %4033 = vmatpush1.msra.mxu0 %v3985
  %4034 = vmatprep.subr.mxu0 0.0
  %4035 = vmatpush1.msra.mxu0 %v3986
  %4036 = vmatprep.subr.mxu0 0.0
  %4037 = vmatpush1.msra.mxu0 %v3987
  %4038 = vmatprep.subr.mxu0 0.0
  %4039 = vmatpush1.msra.mxu0 %v3988
  %4040 = vmatprep.subr.mxu0 0.0
  %4041 = vmatpush1.msra.mxu0 %v3989
  %4042 = vmatprep.subr.mxu0 0.0
  %4043 = vmatpush1.msra.mxu0 %v3990
  %4044 = vmatprep.subr.mxu0 0.0
  %4045 = vmatpush1.msra.mxu0 %v3991
  %4046 = vmatprep.subr.mxu0 0.0
  %4047 = vmatpush1.msra.mxu0 %v3992
  %4048 = vmatprep.subr.mxu0 0.0
  %4049 = vmatpush1.msra.mxu0 %v3993
  %4050 = vmatprep.subr.mxu0 0.0
  %4051 = vmatpush1.msra.mxu0 %v3994
  %4052 = vmatprep.subr.mxu0 0.0
  %4053 = vmatpush1.msra.mxu0 %v3995
  %4054 = vmatprep.subr.mxu0 0.0
  %4055 = vmatpush1.msra.mxu0 %v3996
  %4056 = vmatprep.subr.mxu0 0.0
  %4057 = vmatpush1.msra.mxu0 %v3997
  %4058 = vmatprep.subr.mxu0 0.0
  %4059 = vmatpush1.msra.mxu0 %v3998
  %4060 = vmatprep.subr.mxu0 0.0
  %4061 = vmatpush1.msra.mxu0 %v3999
  %4062 = vmatprep.subr.mxu0 0.0
  %4063 = vmatpush1.msra.mxu0 %v4000
  %4064 = vmatprep.subr.mxu0 0.0
  %4065 = vmatpush1.msra.mxu0 %v4001
  %4066 = vmatprep.mubr.f32.mxu0 %v3969
  %4067 = vmatmul.mubr.f32.gmra.mrb[0].mxu0 %v3968
  %v4068 = vpop.f32.mrb[0].mxu0
  %v4069 = vadd.f32 0.0, %v4068
  %v4070 = vpop.f32.mrb[0].mxu0
  %4071 = vdwg.mxu0
  %v4072 = vmul.f32 %v4069, 0.03125
  %v4073 = vmul.f32 %v4072, %v4072
  %v4075 = vrot.slane %v4073, 7
  %v4077 = vsub.f32 %v4072, %v4075
  %v4078 = vld [vmem:[%s16] sm:$0x1]
  %v4079 = vadd.f32 %v4077, 1e-05
  %v4080 = vrsqrt.pop %v4079
  %v4083 = vunpack.c.l.s4 1966171168
  %v4084 = vunpack.c.0.s8 %v4083
  %v4085 = vlaneseq
  %v4086 = vshrl.u32 %v4085, 7
  %v4087 = vsub.s32 %v4084, %v4086
  %v4088 = vrot.slane %v4080, %v4087
  %v4089 = vcombine.high %v4088, %v4088
  %v4091 = vunpack.c.l.s4 1966171168
  %v4092 = vunpack.c.0.s8 %v4091
  %v4093 = vlaneseq
  %v4094 = vshrl.u32 %v4093, 7
  %v4095 = vsub.s32 %v4092, %v4094
  %v4096 = vrot.slane %v4089, %v4095
  %v4098 = vmul.f32 %v4078, %v4096
  %v4099 = vld [vmem:[%s17] sm:$0x1]
  %v4100 = vmul.f32 %v4072, %v4098
  %v4101 = vsub.f32 %v4099, %v4100
  %v4103 = vlaneseq
  %v4104 = vshrl.u32 %v4103, 7
  %v4105 = vsub.s32 0, %v4104
  %v4106 = vrot.slane %v4101, %v4105
  %v4108 = vsel %vm810, %v4098, %v4106
  %v4109 = vld [vmem:[%s15] sm:$0xff]
  %v4110 = vld [vmem:[%s15 + $0x8] sm:$0xff]
  %v4111 = vld [vmem:[%s15 + $0x10] sm:$0xff]
  %v4112 = vld [vmem:[%s15 + $0x18] sm:$0xff]
  %v4113 = vld [vmem:[%s15 + $0x20] sm:$0xff]
  %v4114 = vld [vmem:[%s15 + $0x28] sm:$0xff]
  %v4115 = vld [vmem:[%s15 + $0x30] sm:$0xff]
  %v4116 = vld [vmem:[%s15 + $0x38] sm:$0xff]
  %v4117 = vld [vmem:[%s15 + $0x40] sm:$0xff]
  %v4118 = vld [vmem:[%s15 + $0x48] sm:$0xff]
  %v4119 = vld [vmem:[%s15 + $0x50] sm:$0xff]
  %v4120 = vld [vmem:[%s15 + $0x58] sm:$0xff]
  %v4121 = vld [vmem:[%s15 + $0x60] sm:$0xff]
  %v4122 = vld [vmem:[%s15 + $0x68] sm:$0xff]
  %v4123 = vld [vmem:[%s15 + $0x70] sm:$0xff]
  %v4124 = vld [vmem:[%s15 + $0x78] sm:$0xff]
  %vm4125 = vcmask 523264
  %v4127 = vsel %vm4125, %v4108, 0
  %4129 = vmatprep.subr.mxu0 %v4110
  %4130 = vmatpush1.msra.mxu0 %v4109
  %4131 = vmatprep.subr.mxu0 %v4112
  %4132 = vmatpush1.msra.mxu0 %v4111
  %4133 = vmatprep.subr.mxu0 %v4114
  %4134 = vmatpush1.msra.mxu0 %v4113
  %4135 = vmatprep.subr.mxu0 %v4116
  %4136 = vmatpush1.msra.mxu0 %v4115
  %4137 = vmatprep.subr.mxu0 %v4118
  %4138 = vmatpush1.msra.mxu0 %v4117
  %4139 = vmatprep.subr.mxu0 %v4120
  %4140 = vmatpush1.msra.mxu0 %v4119
  %4141 = vmatprep.subr.mxu0 %v4122
  %4142 = vmatpush1.msra.mxu0 %v4121
  %4143 = vmatprep.subr.mxu0 %v4124
  %4144 = vmatpush1.msra.mxu0 %v4123
  %4145 = vmatprep.subr.mxu0 0.0
  %4146 = vmatpush1.msra.mxu0 0.0
  %4147 = vmatprep.subr.mxu0 0.0
  %4148 = vmatpush1.msra.mxu0 0.0
  %4149 = vmatprep.subr.mxu0 0.0
  %4150 = vmatpush1.msra.mxu0 0.0
  %4151 = vmatprep.subr.mxu0 0.0
  %4152 = vmatpush1.msra.mxu0 0.0
  %4153 = vmatprep.subr.mxu0 0.0
  %4154 = vmatpush1.msra.mxu0 0.0
  %4155 = vmatprep.subr.mxu0 0.0
  %4156 = vmatpush1.msra.mxu0 0.0
  %4157 = vmatprep.subr.mxu0 0.0
  %4158 = vmatpush1.msra.mxu0 0.0
  %4159 = vmatprep.subr.mxu0 0.0
  %4160 = vmatpush1.msra.mxu0 0.0
  %4161 = vmatprep.subr.mxu0 0.0
  %4162 = vmatpush1.msra.mxu0 0.0
  %4163 = vmatprep.subr.mxu0 0.0
  %4164 = vmatpush1.msra.mxu0 0.0
  %4165 = vmatprep.subr.mxu0 0.0
  %4166 = vmatpush1.msra.mxu0 0.0
  %4167 = vmatprep.subr.mxu0 0.0
  %4168 = vmatpush1.msra.mxu0 0.0
  %4169 = vmatprep.subr.mxu0 0.0
  %4170 = vmatpush1.msra.mxu0 0.0
  %4171 = vmatprep.subr.mxu0 0.0
  %4172 = vmatpush1.msra.mxu0 0.0
  %4173 = vmatprep.subr.mxu0 0.0
  %4174 = vmatpush1.msra.mxu0 0.0
  %4175 = vmatprep.subr.mxu0 0.0
  %4176 = vmatpush1.msra.mxu0 0.0
  %4177 = vmatprep.subr.mxu0 0.0
  %4178 = vmatpush1.msra.mxu0 0.0
  %4179 = vmatprep.subr.mxu0 0.0
  %4180 = vmatpush1.msra.mxu0 0.0
  %4181 = vmatprep.subr.mxu0 0.0
  %4182 = vmatpush1.msra.mxu0 0.0
  %4183 = vmatprep.subr.mxu0 0.0
  %4184 = vmatpush1.msra.mxu0 0.0
  %4185 = vmatprep.subr.mxu0 0.0
  %4186 = vmatpush1.msra.mxu0 0.0
  %4187 = vmatprep.subr.mxu0 0.0
  %4188 = vmatpush1.msra.mxu0 0.0
  %4189 = vmatprep.subr.mxu0 0.0
  %4190 = vmatpush1.msra.mxu0 0.0
  %4191 = vmatprep.subr.mxu0 0.0
  %4192 = vmatpush1.msra.mxu0 0.0
  %4193 = vmatprep.mubr.f32.mxu0 0.0
  %4194 = vmatmul.mubr.f32.gmra.mrb[0].mxu0 %v4127
  %v4195 = vpop.f32.mrb[0].mxu0
  %v4196 = vadd.f32 0.0, %v4195
  %v4197 = vpop.f32.mrb[0].mxu0
  %v4198 = vadd.f32 0.0, %v4197
  %4199 = vdwg.mxu0
  %v4200 = vlaneseq
  %v4201 = vshrl.u32 %v4200, 7
  %v4202 = vsub.s32 0, %v4201
  %v4203 = vrot.slane %v4196, %v4202
  %v4204 = vlaneseq
  %v4205 = vshrl.u32 %v4204, 7
  %v4206 = vsub.s32 0, %v4205
  %v4207 = vrot.slane %v4198, %v4206
  %v4208 = vmul.f32 %v3936, %v4203
  %v4209 = vmul.f32 %v3938, %v4207
  %v4210 = vlaneseq
  %v4211 = vshrl.u32 %v4210, 7
  %v4212 = vsub.s32 1, %v4211
  %v4213 = vrot.slane %v4196, %v4212
  %v4214 = vlaneseq
  %v4215 = vshrl.u32 %v4214, 7
  %v4216 = vsub.s32 1, %v4215
  %v4217 = vrot.slane %v4198, %v4216
  %v4218 = vadd.f32 %v4208, %v4213
  %v4219 = vadd.f32 %v4209, %v4217
  %v4220 = vmax.f32 %v4218, 0.0
  %v4221 = vmax.f32 %v4219, 0.0
  %v4224 = vrot.slane %v4220, 3
  %v4225 = vrot.slane %v4221, 3
  %v4228 = vsel %vm810, %v4220, %v4224
  %v4229 = vsel %vm810, %v4221, %v4225
  %v4230 = vrot.slane %v4220, 1
  %v4231 = vrot.slane %v4221, 1
  %v4234 = vrot.slane %v4220, 4
  %v4235 = vrot.slane %v4221, 4
  %v4238 = vsel %vm810, %v4230, %v4234
  %v4239 = vsel %vm810, %v4231, %v4235
  %v4240 = vrot.slane %v4220, 2
  %v4241 = vrot.slane %v4221, 2
  %v4244 = vrot.slane %v4220, 5
  %v4245 = vrot.slane %v4221, 5
  %v4248 = vsel %vm810, %v4240, %v4244
  %v4249 = vsel %vm810, %v4241, %v4245
  %v4250 = vrot.slane %v4220, 6
  %v4251 = vrot.slane %v4221, 6
  %v4254 = vsel %vm810, %v4224, %v4250
  %v4255 = vsel %vm810, %v4225, %v4251
  %v4256 = vld [vmem:[%s18] sm:$0xff]
  %v4257 = vld [vmem:[%s18 + $0x8] sm:$0x3]
  %v4260 = vlaneseq
  %v4261 = vshrl.u32 %v4260, 7
  %v4262 = vsub.s32 0, %v4261
  %v4263 = vrot.slane %v4256, %v4262
  %v4264 = vlaneseq
  %v4265 = vshrl.u32 %v4264, 7
  %v4266 = vsub.s32 1, %v4265
  %v4267 = vrot.slane %v4256, %v4266
  %v4268 = vlaneseq
  %v4269 = vshrl.u32 %v4268, 7
  %v4270 = vsub.s32 2, %v4269
  %v4271 = vrot.slane %v4256, %v4270
  %v4272 = vlaneseq
  %v4273 = vshrl.u32 %v4272, 7
  %v4274 = vsub.s32 3, %v4273
  %v4275 = vrot.slane %v4256, %v4274
  %v4276 = vlaneseq
  %v4277 = vshrl.u32 %v4276, 7
  %v4278 = vsub.s32 4, %v4277
  %v4279 = vrot.slane %v4256, %v4278
  %v4280 = vlaneseq
  %v4281 = vshrl.u32 %v4280, 7
  %v4282 = vsub.s32 5, %v4281
  %v4283 = vrot.slane %v4256, %v4282
  %v4284 = vlaneseq
  %v4285 = vshrl.u32 %v4284, 7
  %v4286 = vsub.s32 6, %v4285
  %v4287 = vrot.slane %v4256, %v4286
  %v4288 = vlaneseq
  %v4289 = vshrl.u32 %v4288, 7
  %v4290 = vsub.s32 7, %v4289
  %v4291 = vrot.slane %v4256, %v4290
  %v4292 = vlaneseq
  %v4293 = vshrl.u32 %v4292, 7
  %v4294 = vsub.s32 0, %v4293
  %v4295 = vrot.slane %v4257, %v4294
  %v4296 = vlaneseq
  %v4297 = vshrl.u32 %v4296, 7
  %v4298 = vsub.s32 1, %v4297
  %v4299 = vrot.slane %v4257, %v4298
  %v4310 = vmul.f32 %v4263, 0.0
  %v4311 = vmul.f32 %v4267, 0.0
  %v4312 = vmul.f32 %v4228, %v4271
  %v4313 = vmul.f32 %v4229, %v4275
  %v4314 = vmul.f32 %v4238, %v4279
  %v4315 = vmul.f32 %v4239, %v4283
  %v4316 = vmul.f32 %v4248, %v4287
  %v4317 = vmul.f32 %v4249, %v4291
  %v4318 = vmul.f32 %v4254, %v4295
  %v4319 = vmul.f32 %v4255, %v4299
  %vm4320 = vcmask 1041408
  %v4321 = vsel %vm4320, %v4310, 0.0
  %v4322 = vsel %vm4320, %v4311, 0.0
  %v4323 = vadd.f32 %v4321, %v4322
  %v4324 = vsel %vm4320, %v4312, 0.0
  %v4325 = vadd.f32 %v4323, %v4324
  %v4326 = vsel %vm4320, %v4313, 0.0
  %v4327 = vadd.f32 %v4325, %v4326
  %v4328 = vsel %vm4320, %v4314, 0.0
  %v4329 = vadd.f32 %v4327, %v4328
  %v4330 = vsel %vm4320, %v4315, 0.0
  %v4331 = vadd.f32 %v4329, %v4330
  %v4332 = vsel %vm4320, %v4316, 0.0
  %v4333 = vadd.f32 %v4331, %v4332
  %v4334 = vsel %vm4320, %v4317, 0.0
  %v4335 = vadd.f32 %v4333, %v4334
  %v4336 = vsel %vm4320, %v4318, 0.0
  %v4337 = vadd.f32 %v4335, %v4336
  %v4338 = vsel %vm4320, %v4319, 0.0
  %v4339 = vadd.f32 %v4337, %v4338
  %4340 = vadd.xlane.f32.xlu0 %v4339
  %v4341 = vpop.xlane.xlu0 %4340
  %vm4342 = vcmask 1024
  %4343 = vst.msk [vmem:[%s19] sm:$0x3] %vm4342, %v4341
  // Predicated region
  $region78: #{dc_discriminator_forward.1} parent=0 // pred_check
    _
  $region79: #{dc_discriminator_forward.1} parent=0 // pred_check_branch
    %4345 = sbr.rel (0) target = $region81
  $region80: #{dc_discriminator_forward.1} parent=0 // pred_region
    _
  $region81: #{dc_discriminator_forward.1} parent=0 // pred_fallthru
    _
  // Predicated region
  $region82: #{dc_discriminator_forward.1} parent=0 // pred_check
    _
  $region83: #{dc_discriminator_forward.1} parent=0 // pred_check_branch
    %4347 = sbr.rel (0) target = $region85
  $region84: #{dc_discriminator_forward.1} parent=0 // pred_region
    _
  $region85: #{dc_discriminator_forward.1} parent=0 // pred_fallthru
    _

</llo_original>
